<compile_context>
chip_gen: v6e
topology: v6e:2x2x1
jax: 0.10.0
libtpu: 0.0.40
codegen_flags: <defaults>
</compile_context>

<pallas_src>
import jax
import jax.numpy as jnp
from jax.experimental import pallas as pl
from jax.experimental.pallas import tpu as pltpu

# ---------------- scaled-down ViT configuration ----------------
IMG = 32            # image size (224 in the real model)
PS = 16             # patch size (ViT-B/16)
C = 3               # RGB channels
CPP = C * PS * PS   # flattened patch length
D = 32              # embed dim (768 in the real model)
DEPTH = 2           # transformer blocks (12 in the real model)
NH = 4              # attention heads
HD = D // NH        # head dim
MLP = 4 * D         # MLP hidden dim
NP = (IMG // PS) ** 2
NT = NP + 1         # tokens incl. cls token
NUM_TARGET = 8      # num_target_genes (fc1 width);  fc2 width is 1
LN_EPS = 1e-6       # timm ViT LayerNorm eps

BS = 2              # batch


# ---------------- fused whole-forward kernel ----------------
def fused_vit_kernel(
        patches_ref, pe_w_ref, extra_ref,
        ln1_g_ref, ln1_b_ref, qkv_w_ref, qkv_b_ref, proj_w_ref, proj_b_ref,
        ln2_g_ref, ln2_b_ref, mlp1_w_ref, mlp1_b_ref, mlp2_w_ref, mlp2_b_ref,
        lnf_g_ref, lnf_b_ref, head_w_ref, head_b_ref,
        out1_ref, out2_ref):
    f32 = jnp.float32

    def ln(z, g, b):
        mu = jnp.mean(z, axis=-1, keepdims=True)
        zc = z - mu
        var = jnp.mean(zc * zc, axis=-1, keepdims=True)
        return zc * jax.lax.rsqrt(var + LN_EPS) * g + b

    # ---- patch-embed conv (k=s=16) as a matmul; row 0 of patches is an all-zero
    # placeholder for the cls token, and extra_ref carries [cls+pos0 ; pos+pe_b] so
    # no in-kernel concatenate is needed.
    tok = jnp.dot(patches_ref[0], pe_w_ref[...], preferred_element_type=f32)   # (NT, D)
    x = tok + extra_ref[...]                                                    # (NT, D)

    scale = HD ** -0.5
    for d in range(DEPTH):
        # ---------------- multi-head self-attention ----------------
        h = ln(x, ln1_g_ref[d], ln1_b_ref[d])
        qkv = jnp.dot(h, qkv_w_ref[d], preferred_element_type=f32) + qkv_b_ref[d]  # (NT, 3D)
        proj_w = proj_w_ref[d]                                                     # (D, D)
        attn = jnp.zeros((NT, D), f32)
        for hi in range(NH):
            q = qkv[:, hi * HD:(hi + 1) * HD] * scale
            k = qkv[:, D + hi * HD:D + (hi + 1) * HD]
            v = qkv[:, 2 * D + hi * HD:2 * D + (hi + 1) * HD]
            s = jax.lax.dot_general(q, k, (((1,), (1,)), ((), ())),
                                    preferred_element_type=f32)                    # (NT, NT)
            s = s - jnp.max(s, axis=-1, keepdims=True)
            p = jnp.exp(s)
            p = p / jnp.sum(p, axis=-1, keepdims=True)
            o = jnp.dot(p, v, preferred_element_type=f32)                          # (NT, HD)
            # per-head slice of the output projection == concat(heads) @ proj_w
            attn = attn + jnp.dot(o, proj_w[hi * HD:(hi + 1) * HD, :],
                                  preferred_element_type=f32)
        x = x + attn + proj_b_ref[d]
        # ---------------- MLP ----------------
        h = ln(x, ln2_g_ref[d], ln2_b_ref[d])
        h = jnp.dot(h, mlp1_w_ref[d], preferred_element_type=f32) + mlp1_b_ref[d]
        # TODO(synk): PyTorch nn.GELU default is the exact erf form; tanh approximation
        # is used here for guaranteed Mosaic lowering.
        h = jax.nn.gelu(h, approximate=True)
        x = x + jnp.dot(h, mlp2_w_ref[d], preferred_element_type=f32) + mlp2_b_ref[d]

    # ---- final LN, cls-token pooling, fused fc1 / sigmoid(fc2) heads ----
    x = ln(x, lnf_g_ref[...], lnf_b_ref[...])
    feat = x[0:1, :]                                                               # (1, D)
    logits = jnp.dot(feat, head_w_ref[...], preferred_element_type=f32) + head_b_ref[...]
    out1_ref[0] = logits[:, :NUM_TARGET]
    out2_ref[0] = jax.nn.sigmoid(logits[:, NUM_TARGET:NUM_TARGET + 1])


# ---------------- wrapper ----------------
def _stack(blocks, name, shape):
    return jnp.stack([blk[name].reshape(shape) for blk in blocks])


def forward(params, x):
    """AnnotateViT.forward: x (B, C, IMG, IMG) -> (output1 (B, T), output2 (B, 1))."""
    B = x.shape[0]
    Hp = Wp = IMG // PS
    # im2col for the k=s=16 patch-embed conv (one small host-side transpose; everything
    # else runs inside the fused Pallas kernel).
    patches = x.reshape(B, C, Hp, PS, Wp, PS).transpose(0, 2, 4, 1, 3, 5)
    patches = patches.reshape(B, NP, CPP)
    patches_ext = jnp.concatenate(
        [jnp.zeros((B, 1, CPP), patches.dtype), patches], axis=1)       # (B, NT, CPP)

    pe_b = params['pe_b'].reshape(1, D)
    cls = params['cls'].reshape(1, D)
    pos = params['pos'].reshape(NT, D)
    # additive term per token: row 0 = cls + pos[0]; rows 1.. = pos + patch-embed bias
    extra = jnp.concatenate([cls + pos[0:1], pos[1:] + pe_b], axis=0)   # (NT, D)

    blocks = params['blocks']
    ln1_g = _stack(blocks, 'ln1_g', (1, D));   ln1_b = _stack(blocks, 'ln1_b', (1, D))
    qkv_w = _stack(blocks, 'qkv_w', (D, 3 * D)); qkv_b = _stack(blocks, 'qkv_b', (1, 3 * D))
    proj_w = _stack(blocks, 'proj_w', (D, D)); proj_b = _stack(blocks, 'proj_b', (1, D))
    ln2_g = _stack(blocks, 'ln2_g', (1, D));   ln2_b = _stack(blocks, 'ln2_b', (1, D))
    mlp1_w = _stack(blocks, 'mlp1_w', (D, MLP)); mlp1_b = _stack(blocks, 'mlp1_b', (1, MLP))
    mlp2_w = _stack(blocks, 'mlp2_w', (MLP, D)); mlp2_b = _stack(blocks, 'mlp2_b', (1, D))

    # fuse the two heads into one (D, T+1) matmul; sigmoid of the last column in-kernel
    head_w = jnp.concatenate([params['fc1_w'], params['fc2_w']], axis=1)
    head_b = jnp.concatenate([params['fc1_b'], params['fc2_b']]).reshape(1, NUM_TARGET + 1)

    def full(shp):
        return pl.BlockSpec(shp, lambda b, _s=shp: (0,) * len(_s))

    out1, out2 = pl.pallas_call(
        fused_vit_kernel,
        grid=(B,),
        in_specs=[
            pl.BlockSpec((1, NT, CPP), lambda b: (b, 0, 0)),   # per-image patch slab
            full((CPP, D)), full((NT, D)),
            full((DEPTH, 1, D)), full((DEPTH, 1, D)),
            full((DEPTH, D, 3 * D)), full((DEPTH, 1, 3 * D)),
            full((DEPTH, D, D)), full((DEPTH, 1, D)),
            full((DEPTH, 1, D)), full((DEPTH, 1, D)),
            full((DEPTH, D, MLP)), full((DEPTH, 1, MLP)),
            full((DEPTH, MLP, D)), full((DEPTH, 1, D)),
            full((1, D)), full((1, D)),
            full((D, NUM_TARGET + 1)), full((1, NUM_TARGET + 1)),
        ],
        out_specs=(pl.BlockSpec((1, 1, NUM_TARGET), lambda b: (b, 0, 0)),
                   pl.BlockSpec((1, 1, 1), lambda b: (b, 0, 0))),
        out_shape=(jax.ShapeDtypeStruct((B, 1, NUM_TARGET), jnp.float32),
                   jax.ShapeDtypeStruct((B, 1, 1), jnp.float32)),
        compiler_params=pltpu.CompilerParams(
            dimension_semantics=("parallel",)),   # batch-parallel across TCs on v7x
    )(patches_ext, params['pe_w'], extra,
      ln1_g, ln1_b, qkv_w, qkv_b, proj_w, proj_b,
      ln2_g, ln2_b, mlp1_w, mlp1_b, mlp2_w, mlp2_b,
      params['lnf_g'].reshape(1, D), params['lnf_b'].reshape(1, D),
      head_w, head_b)
    return out1.reshape(B, NUM_TARGET), out2.reshape(B, 1)


# ---------------- pure-JAX reference (for a correctness sanity check) ----------------
def _ref_ln(z, g, b):
    mu = jnp.mean(z, axis=-1, keepdims=True)
    zc = z - mu
    var = jnp.mean(zc * zc, axis=-1, keepdims=True)
    return zc * jax.lax.rsqrt(var + LN_EPS) * g + b


def reference_forward(params, x):
    hp = jax.lax.Precision.HIGHEST
    B = x.shape[0]
    Hp = Wp = IMG // PS
    patches = x.reshape(B, C, Hp, PS, Wp, PS).transpose(0, 2, 4, 1, 3, 5).reshape(B, NP, CPP)
    tok = jnp.einsum('bpk,kd->bpd', patches, params['pe_w'], precision=hp) + params['pe_b']
    cls = jnp.broadcast_to(params['cls'].reshape(1, 1, D), (B, 1, D))
    z = jnp.concatenate([cls, tok], axis=1) + params['pos'].reshape(1, NT, D)
    for blk in params['blocks']:
        h = _ref_ln(z, blk['ln1_g'], blk['ln1_b'])
        qkv = jnp.einsum('bnd,de->bne', h, blk['qkv_w'], precision=hp) + blk['qkv_b']
        qkv = qkv.reshape(B, NT, 3, NH, HD).transpose(2, 0, 3, 1, 4)
        q, k, v = qkv[0], qkv[1], qkv[2]                          # (B, NH, NT, HD)
        s = jnp.einsum('bhqd,bhkd->bhqk', q * HD ** -0.5, k, precision=hp)
        p = jax.nn.softmax(s, axis=-1)
        o = jnp.einsum('bhqk,bhkd->bhqd', p, v, precision=hp)
        o = o.transpose(0, 2, 1, 3).reshape(B, NT, D)
        z = z + jnp.einsum('bnd,de->bne', o, blk['proj_w'], precision=hp) + blk['proj_b']
        h = _ref_ln(z, blk['ln2_g'], blk['ln2_b'])
        h = jnp.einsum('bnd,de->bne', h, blk['mlp1_w'], precision=hp) + blk['mlp1_b']
        h = jax.nn.gelu(h, approximate=True)
        z = z + jnp.einsum('bnd,de->bne', h, blk['mlp2_w'], precision=hp) + blk['mlp2_b']
    z = _ref_ln(z, params['lnf_g'], params['lnf_b'])
    feat = z[:, 0]
    o1 = jnp.dot(feat, params['fc1_w'], precision=hp) + params['fc1_b']
    o2 = jax.nn.sigmoid(jnp.dot(feat, params['fc2_w'], precision=hp) + params['fc2_b'])
    return o1, o2


# ---------------- synthetic parameters ----------------
def init_params(key):
    keys = iter(jax.random.split(key, 128))

    def nrm(shape, std=0.02):
        return jax.random.normal(next(keys), shape, jnp.float32) * std

    params = {
        'pe_w': nrm((CPP, D)), 'pe_b': jnp.zeros((D,), jnp.float32),
        'cls': nrm((1, 1, D)),
        'pos': nrm((1, NT, D)),
        'lnf_g': jnp.ones((D,), jnp.float32), 'lnf_b': jnp.zeros((D,), jnp.float32),
        'fc1_w': nrm((D, NUM_TARGET)), 'fc1_b': jnp.zeros((NUM_TARGET,), jnp.float32),
        'fc2_w': nrm((D, 1)), 'fc2_b': jnp.zeros((1,), jnp.float32),
        'blocks': [],
    }
    for _ in range(DEPTH):
        params['blocks'].append({
            'ln1_g': jnp.ones((D,), jnp.float32), 'ln1_b': jnp.zeros((D,), jnp.float32),
            'qkv_w': nrm((D, 3 * D)), 'qkv_b': jnp.zeros((3 * D,), jnp.float32),
            'proj_w': nrm((D, D)), 'proj_b': jnp.zeros((D,), jnp.float32),
            'ln2_g': jnp.ones((D,), jnp.float32), 'ln2_b': jnp.zeros((D,), jnp.float32),
            'mlp1_w': nrm((D, MLP)), 'mlp1_b': jnp.zeros((MLP,), jnp.float32),
            'mlp2_w': nrm((MLP, D)), 'mlp2_b': jnp.zeros((D,), jnp.float32),
        })
    return params


if __name__ == "__main__":
    key = jax.random.PRNGKey(0)
    kp, kx = jax.random.split(key)
    params = init_params(kp)
    x = jax.random.normal(kx, (BS, C, IMG, IMG), jnp.float32)

    fwd = jax.jit(forward)
    out1, out2 = jax.block_until_ready(fwd(params, x))

    assert out1.shape == (BS, NUM_TARGET)
    assert out2.shape == (BS, 1)
    assert bool(jnp.all(jnp.isfinite(out1)))
    assert bool(jnp.all((out2 >= 0) & (out2 <= 1)))

    # sanity check against a pure-JAX reference (loose bound: catches structural bugs,
    # tolerant of matmul-precision differences)
    r1, r2 = jax.jit(reference_forward)(params, x)
    err = max(float(jnp.max(jnp.abs(out1 - r1))), float(jnp.max(jnp.abs(out2 - r2))))
    assert err < 5e-2, f"mismatch vs reference: {err}"

    print("KERNEL_OK")
</pallas_src>

<mosaic_0001>
module attributes {stable_mosaic.version = 11 : i64} {
  func.func @fused_vit_kernel(%arg0: i32, %arg1: memref<1x5x768xf32, #tpu.memory_space<vmem>>, %arg2: memref<768x32xf32, #tpu.memory_space<vmem>>, %arg3: memref<5x32xf32, #tpu.memory_space<vmem>>, %arg4: memref<2x1x32xf32, #tpu.memory_space<vmem>>, %arg5: memref<2x1x32xf32, #tpu.memory_space<vmem>>, %arg6: memref<2x32x96xf32, #tpu.memory_space<vmem>>, %arg7: memref<2x1x96xf32, #tpu.memory_space<vmem>>, %arg8: memref<2x32x32xf32, #tpu.memory_space<vmem>>, %arg9: memref<2x1x32xf32, #tpu.memory_space<vmem>>, %arg10: memref<2x1x32xf32, #tpu.memory_space<vmem>>, %arg11: memref<2x1x32xf32, #tpu.memory_space<vmem>>, %arg12: memref<2x32x128xf32, #tpu.memory_space<vmem>>, %arg13: memref<2x1x128xf32, #tpu.memory_space<vmem>>, %arg14: memref<2x128x32xf32, #tpu.memory_space<vmem>>, %arg15: memref<2x1x32xf32, #tpu.memory_space<vmem>>, %arg16: memref<1x32xf32, #tpu.memory_space<vmem>>, %arg17: memref<1x32xf32, #tpu.memory_space<vmem>>, %arg18: memref<32x9xf32, #tpu.memory_space<vmem>>, %arg19: memref<1x9xf32, #tpu.memory_space<vmem>>, %arg20: memref<1x1x8xf32, #tpu.memory_space<vmem>>, %arg21: memref<1x1x1xf32, #tpu.memory_space<vmem>>) attributes {dimension_semantics = [#tpu.dimension_semantics<parallel>], iteration_bounds = array<i64: 2>, scalar_prefetch = 0 : i64, scratch_operands = 0 : i64, tpu.core_type = #tpu.core_type<tc>, window_params = [{transform_indices = @transform_0, window_bounds = array<i64: 1, 5, 768>}, {pipeline_mode = #tpu.pipeline_mode<synchronous>, transform_indices = @transform_1, window_bounds = array<i64: 768, 32>}, {pipeline_mode = #tpu.pipeline_mode<synchronous>, transform_indices = @transform_2, window_bounds = array<i64: 5, 32>}, {pipeline_mode = #tpu.pipeline_mode<synchronous>, transform_indices = @transform_3, window_bounds = array<i64: 2, 1, 32>}, {pipeline_mode = #tpu.pipeline_mode<synchronous>, transform_indices = @transform_4, window_bounds = array<i64: 2, 1, 32>}, {pipeline_mode = #tpu.pipeline_mode<synchronous>, transform_indices = @transform_5, window_bounds = array<i64: 2, 32, 96>}, {pipeline_mode = #tpu.pipeline_mode<synchronous>, transform_indices = @transform_6, window_bounds = array<i64: 2, 1, 96>}, {pipeline_mode = #tpu.pipeline_mode<synchronous>, transform_indices = @transform_7, window_bounds = array<i64: 2, 32, 32>}, {pipeline_mode = #tpu.pipeline_mode<synchronous>, transform_indices = @transform_8, window_bounds = array<i64: 2, 1, 32>}, {pipeline_mode = #tpu.pipeline_mode<synchronous>, transform_indices = @transform_9, window_bounds = array<i64: 2, 1, 32>}, {pipeline_mode = #tpu.pipeline_mode<synchronous>, transform_indices = @transform_10, window_bounds = array<i64: 2, 1, 32>}, {pipeline_mode = #tpu.pipeline_mode<synchronous>, transform_indices = @transform_11, window_bounds = array<i64: 2, 32, 128>}, {pipeline_mode = #tpu.pipeline_mode<synchronous>, transform_indices = @transform_12, window_bounds = array<i64: 2, 1, 128>}, {pipeline_mode = #tpu.pipeline_mode<synchronous>, transform_indices = @transform_13, window_bounds = array<i64: 2, 128, 32>}, {pipeline_mode = #tpu.pipeline_mode<synchronous>, transform_indices = @transform_14, window_bounds = array<i64: 2, 1, 32>}, {pipeline_mode = #tpu.pipeline_mode<synchronous>, transform_indices = @transform_15, window_bounds = array<i64: 1, 32>}, {pipeline_mode = #tpu.pipeline_mode<synchronous>, transform_indices = @transform_16, window_bounds = array<i64: 1, 32>}, {pipeline_mode = #tpu.pipeline_mode<synchronous>, transform_indices = @transform_17, window_bounds = array<i64: 32, 9>}, {pipeline_mode = #tpu.pipeline_mode<synchronous>, transform_indices = @transform_18, window_bounds = array<i64: 1, 9>}, {transform_indices = @transform_19, window_bounds = array<i64: 1, 1, 8>}, {transform_indices = @transform_20, window_bounds = array<i64: 1, 1, 1>}]} {
    %c0 = arith.constant 0 : index
    %c0_0 = arith.constant 0 : index
    %c0_1 = arith.constant 0 : index
    %0 = vector.load %arg1[%c0, %c0_0, %c0_1] : memref<1x5x768xf32, #tpu.memory_space<vmem>>, vector<1x5x768xf32>
    %1 = vector.shape_cast %0 : vector<1x5x768xf32> to vector<5x768xf32>
    %c0_2 = arith.constant 0 : index
    %c0_3 = arith.constant 0 : index
    %2 = vector.load %arg2[%c0_2, %c0_3] : memref<768x32xf32, #tpu.memory_space<vmem>>, vector<768x32xf32>
    %cst = arith.constant dense<0.000000e+00> : vector<5x32xf32>
    %3 = tpu.matmul %1, %2, %cst {dimension_numbers = #tpu.dot_dimension_numbers<[1], [0], [0], [1], [0, 0, 1, 1], [], []>} : vector<5x768xf32>, vector<768x32xf32>, vector<5x32xf32> -> vector<5x32xf32>
    %c0_4 = arith.constant 0 : index
    %c0_5 = arith.constant 0 : index
    %4 = vector.load %arg3[%c0_4, %c0_5] : memref<5x32xf32, #tpu.memory_space<vmem>>, vector<5x32xf32>
    %5 = arith.addf %3, %4 : vector<5x32xf32>
    %c0_6 = arith.constant 0 : index
    %c0_7 = arith.constant 0 : index
    %c0_8 = arith.constant 0 : index
    %6 = vector.load %arg4[%c0_6, %c0_7, %c0_8] : memref<2x1x32xf32, #tpu.memory_space<vmem>>, vector<1x1x32xf32>
    %7 = vector.shape_cast %6 : vector<1x1x32xf32> to vector<1x32xf32>
    %c0_9 = arith.constant 0 : index
    %c0_10 = arith.constant 0 : index
    %c0_11 = arith.constant 0 : index
    %8 = vector.load %arg5[%c0_9, %c0_10, %c0_11] : memref<2x1x32xf32, #tpu.memory_space<vmem>>, vector<1x1x32xf32>
    %9 = vector.shape_cast %8 : vector<1x1x32xf32> to vector<1x32xf32>
    %cst_12 = arith.constant dense<0.000000e+00> : vector<5xf32>
    %10 = vector.multi_reduction <add>, %5, %cst_12 [1] : vector<5x32xf32> to vector<5xf32>
    %11 = vector.shape_cast %10 : vector<5xf32> to vector<5x1xf32>
    %cst_13 = arith.constant 3.200000e+01 : f32
    %12 = vector.broadcast %cst_13 : f32 to vector<5x1xf32>
    %13 = arith.divf %11, %12 : vector<5x1xf32>
    %14 = vector.broadcast %13 : vector<5x1xf32> to vector<5x32xf32>
    %15 = arith.subf %5, %14 : vector<5x32xf32>
    %16 = arith.mulf %15, %15 : vector<5x32xf32>
    %cst_14 = arith.constant dense<0.000000e+00> : vector<5xf32>
    %17 = vector.multi_reduction <add>, %16, %cst_14 [1] : vector<5x32xf32> to vector<5xf32>
    %18 = vector.shape_cast %17 : vector<5xf32> to vector<5x1xf32>
    %cst_15 = arith.constant 3.200000e+01 : f32
    %19 = vector.broadcast %cst_15 : f32 to vector<5x1xf32>
    %20 = arith.divf %18, %19 : vector<5x1xf32>
    %cst_16 = arith.constant 9.99999997E-7 : f32
    %21 = vector.broadcast %cst_16 : f32 to vector<5x1xf32>
    %22 = arith.addf %20, %21 : vector<5x1xf32>
    %23 = math.rsqrt %22 : vector<5x1xf32>
    %24 = vector.broadcast %23 : vector<5x1xf32> to vector<5x32xf32>
    %25 = arith.mulf %15, %24 : vector<5x32xf32>
    %26 = vector.broadcast %7 : vector<1x32xf32> to vector<5x32xf32>
    %27 = arith.mulf %25, %26 : vector<5x32xf32>
    %28 = vector.broadcast %9 : vector<1x32xf32> to vector<5x32xf32>
    %29 = arith.addf %27, %28 : vector<5x32xf32>
    %c0_17 = arith.constant 0 : index
    %c0_18 = arith.constant 0 : index
    %c0_19 = arith.constant 0 : index
    %30 = vector.load %arg6[%c0_17, %c0_18, %c0_19] : memref<2x32x96xf32, #tpu.memory_space<vmem>>, vector<1x32x96xf32>
    %31 = vector.shape_cast %30 : vector<1x32x96xf32> to vector<32x96xf32>
    %cst_20 = arith.constant dense<0.000000e+00> : vector<5x96xf32>
    %32 = tpu.matmul %29, %31, %cst_20 {dimension_numbers = #tpu.dot_dimension_numbers<[1], [0], [0], [1], [0, 0, 1, 1], [], []>} : vector<5x32xf32>, vector<32x96xf32>, vector<5x96xf32> -> vector<5x96xf32>
    %c0_21 = arith.constant 0 : index
    %c0_22 = arith.constant 0 : index
    %c0_23 = arith.constant 0 : index
    %33 = vector.load %arg7[%c0_21, %c0_22, %c0_23] : memref<2x1x96xf32, #tpu.memory_space<vmem>>, vector<1x1x96xf32>
    %34 = vector.shape_cast %33 : vector<1x1x96xf32> to vector<1x96xf32>
    %35 = vector.broadcast %34 : vector<1x96xf32> to vector<5x96xf32>
    %36 = arith.addf %32, %35 : vector<5x96xf32>
    %c0_24 = arith.constant 0 : index
    %c0_25 = arith.constant 0 : index
    %c0_26 = arith.constant 0 : index
    %37 = vector.load %arg8[%c0_24, %c0_25, %c0_26] : memref<2x32x32xf32, #tpu.memory_space<vmem>>, vector<1x32x32xf32>
    %38 = vector.shape_cast %37 : vector<1x32x32xf32> to vector<32x32xf32>
    %cst_27 = arith.constant 0.000000e+00 : f32
    %39 = vector.broadcast %cst_27 : f32 to vector<5x32xf32>
    %40 = vector.extract_strided_slice %36 {offsets = [0, 0], sizes = [5, 8], strides = [1, 1]} : vector<5x96xf32> to vector<5x8xf32>
    %cst_28 = arith.constant 0.353553385 : f32
    %41 = vector.broadcast %cst_28 : f32 to vector<5x8xf32>
    %42 = arith.mulf %40, %41 : vector<5x8xf32>
    %43 = vector.extract_strided_slice %36 {offsets = [0, 32], sizes = [5, 8], strides = [1, 1]} : vector<5x96xf32> to vector<5x8xf32>
    %44 = vector.extract_strided_slice %36 {offsets = [0, 64], sizes = [5, 8], strides = [1, 1]} : vector<5x96xf32> to vector<5x8xf32>
    %cst_29 = arith.constant dense<0.000000e+00> : vector<5x5xf32>
    %45 = tpu.matmul %42, %43, %cst_29 {dimension_numbers = #tpu.dot_dimension_numbers<[1], [1], [0], [0], [0, 0, 1, 0], [], []>} : vector<5x8xf32>, vector<5x8xf32>, vector<5x5xf32> -> vector<5x5xf32>
    %cst_30 = arith.constant dense<0xFF800000> : vector<5xf32>
    %46 = vector.multi_reduction <maximumf>, %45, %cst_30 [1] : vector<5x5xf32> to vector<5xf32>
    %47 = vector.shape_cast %46 : vector<5xf32> to vector<5x1xf32>
    %48 = vector.broadcast %47 : vector<5x1xf32> to vector<5x5xf32>
    %49 = arith.subf %45, %48 : vector<5x5xf32>
    %50 = math.exp %49 : vector<5x5xf32>
    %cst_31 = arith.constant dense<0.000000e+00> : vector<5xf32>
    %51 = vector.multi_reduction <add>, %50, %cst_31 [1] : vector<5x5xf32> to vector<5xf32>
    %52 = vector.shape_cast %51 : vector<5xf32> to vector<5x1xf32>
    %53 = vector.broadcast %52 : vector<5x1xf32> to vector<5x5xf32>
    %54 = arith.divf %50, %53 : vector<5x5xf32>
    %cst_32 = arith.constant dense<0.000000e+00> : vector<5x8xf32>
    %55 = tpu.matmul %54, %44, %cst_32 {dimension_numbers = #tpu.dot_dimension_numbers<[1], [0], [0], [1], [0, 0, 1, 1], [], []>} : vector<5x5xf32>, vector<5x8xf32>, vector<5x8xf32> -> vector<5x8xf32>
    %56 = vector.extract_strided_slice %38 {offsets = [0, 0], sizes = [8, 32], strides = [1, 1]} : vector<32x32xf32> to vector<8x32xf32>
    %cst_33 = arith.constant dense<0.000000e+00> : vector<5x32xf32>
    %57 = tpu.matmul %55, %56, %cst_33 {dimension_numbers = #tpu.dot_dimension_numbers<[1], [0], [0], [1], [0, 0, 1, 1], [], []>} : vector<5x8xf32>, vector<8x32xf32>, vector<5x32xf32> -> vector<5x32xf32>
    %58 = arith.addf %39, %57 : vector<5x32xf32>
    %59 = vector.extract_strided_slice %36 {offsets = [0, 8], sizes = [5, 8], strides = [1, 1]} : vector<5x96xf32> to vector<5x8xf32>
    %cst_34 = arith.constant 0.353553385 : f32
    %60 = vector.broadcast %cst_34 : f32 to vector<5x8xf32>
    %61 = arith.mulf %59, %60 : vector<5x8xf32>
    %62 = vector.extract_strided_slice %36 {offsets = [0, 40], sizes = [5, 8], strides = [1, 1]} : vector<5x96xf32> to vector<5x8xf32>
    %63 = vector.extract_strided_slice %36 {offsets = [0, 72], sizes = [5, 8], strides = [1, 1]} : vector<5x96xf32> to vector<5x8xf32>
    %cst_35 = arith.constant dense<0.000000e+00> : vector<5x5xf32>
    %64 = tpu.matmul %61, %62, %cst_35 {dimension_numbers = #tpu.dot_dimension_numbers<[1], [1], [0], [0], [0, 0, 1, 0], [], []>} : vector<5x8xf32>, vector<5x8xf32>, vector<5x5xf32> -> vector<5x5xf32>
    %cst_36 = arith.constant dense<0xFF800000> : vector<5xf32>
    %65 = vector.multi_reduction <maximumf>, %64, %cst_36 [1] : vector<5x5xf32> to vector<5xf32>
    %66 = vector.shape_cast %65 : vector<5xf32> to vector<5x1xf32>
    %67 = vector.broadcast %66 : vector<5x1xf32> to vector<5x5xf32>
    %68 = arith.subf %64, %67 : vector<5x5xf32>
    %69 = math.exp %68 : vector<5x5xf32>
    %cst_37 = arith.constant dense<0.000000e+00> : vector<5xf32>
    %70 = vector.multi_reduction <add>, %69, %cst_37 [1] : vector<5x5xf32> to vector<5xf32>
    %71 = vector.shape_cast %70 : vector<5xf32> to vector<5x1xf32>
    %72 = vector.broadcast %71 : vector<5x1xf32> to vector<5x5xf32>
    %73 = arith.divf %69, %72 : vector<5x5xf32>
    %cst_38 = arith.constant dense<0.000000e+00> : vector<5x8xf32>
    %74 = tpu.matmul %73, %63, %cst_38 {dimension_numbers = #tpu.dot_dimension_numbers<[1], [0], [0], [1], [0, 0, 1, 1], [], []>} : vector<5x5xf32>, vector<5x8xf32>, vector<5x8xf32> -> vector<5x8xf32>
    %75 = vector.extract_strided_slice %38 {offsets = [8, 0], sizes = [8, 32], strides = [1, 1]} : vector<32x32xf32> to vector<8x32xf32>
    %cst_39 = arith.constant dense<0.000000e+00> : vector<5x32xf32>
    %76 = tpu.matmul %74, %75, %cst_39 {dimension_numbers = #tpu.dot_dimension_numbers<[1], [0], [0], [1], [0, 0, 1, 1], [], []>} : vector<5x8xf32>, vector<8x32xf32>, vector<5x32xf32> -> vector<5x32xf32>
    %77 = arith.addf %58, %76 : vector<5x32xf32>
    %78 = vector.extract_strided_slice %36 {offsets = [0, 16], sizes = [5, 8], strides = [1, 1]} : vector<5x96xf32> to vector<5x8xf32>
    %cst_40 = arith.constant 0.353553385 : f32
    %79 = vector.broadcast %cst_40 : f32 to vector<5x8xf32>
    %80 = arith.mulf %78, %79 : vector<5x8xf32>
    %81 = vector.extract_strided_slice %36 {offsets = [0, 48], sizes = [5, 8], strides = [1, 1]} : vector<5x96xf32> to vector<5x8xf32>
    %82 = vector.extract_strided_slice %36 {offsets = [0, 80], sizes = [5, 8], strides = [1, 1]} : vector<5x96xf32> to vector<5x8xf32>
    %cst_41 = arith.constant dense<0.000000e+00> : vector<5x5xf32>
    %83 = tpu.matmul %80, %81, %cst_41 {dimension_numbers = #tpu.dot_dimension_numbers<[1], [1], [0], [0], [0, 0, 1, 0], [], []>} : vector<5x8xf32>, vector<5x8xf32>, vector<5x5xf32> -> vector<5x5xf32>
    %cst_42 = arith.constant dense<0xFF800000> : vector<5xf32>
    %84 = vector.multi_reduction <maximumf>, %83, %cst_42 [1] : vector<5x5xf32> to vector<5xf32>
    %85 = vector.shape_cast %84 : vector<5xf32> to vector<5x1xf32>
    %86 = vector.broadcast %85 : vector<5x1xf32> to vector<5x5xf32>
    %87 = arith.subf %83, %86 : vector<5x5xf32>
    %88 = math.exp %87 : vector<5x5xf32>
    %cst_43 = arith.constant dense<0.000000e+00> : vector<5xf32>
    %89 = vector.multi_reduction <add>, %88, %cst_43 [1] : vector<5x5xf32> to vector<5xf32>
    %90 = vector.shape_cast %89 : vector<5xf32> to vector<5x1xf32>
    %91 = vector.broadcast %90 : vector<5x1xf32> to vector<5x5xf32>
    %92 = arith.divf %88, %91 : vector<5x5xf32>
    %cst_44 = arith.constant dense<0.000000e+00> : vector<5x8xf32>
    %93 = tpu.matmul %92, %82, %cst_44 {dimension_numbers = #tpu.dot_dimension_numbers<[1], [0], [0], [1], [0, 0, 1, 1], [], []>} : vector<5x5xf32>, vector<5x8xf32>, vector<5x8xf32> -> vector<5x8xf32>
    %94 = vector.extract_strided_slice %38 {offsets = [16, 0], sizes = [8, 32], strides = [1, 1]} : vector<32x32xf32> to vector<8x32xf32>
    %cst_45 = arith.constant dense<0.000000e+00> : vector<5x32xf32>
    %95 = tpu.matmul %93, %94, %cst_45 {dimension_numbers = #tpu.dot_dimension_numbers<[1], [0], [0], [1], [0, 0, 1, 1], [], []>} : vector<5x8xf32>, vector<8x32xf32>, vector<5x32xf32> -> vector<5x32xf32>
    %96 = arith.addf %77, %95 : vector<5x32xf32>
    %97 = vector.extract_strided_slice %36 {offsets = [0, 24], sizes = [5, 8], strides = [1, 1]} : vector<5x96xf32> to vector<5x8xf32>
    %cst_46 = arith.constant 0.353553385 : f32
    %98 = vector.broadcast %cst_46 : f32 to vector<5x8xf32>
    %99 = arith.mulf %97, %98 : vector<5x8xf32>
    %100 = vector.extract_strided_slice %36 {offsets = [0, 56], sizes = [5, 8], strides = [1, 1]} : vector<5x96xf32> to vector<5x8xf32>
    %101 = vector.extract_strided_slice %36 {offsets = [0, 88], sizes = [5, 8], strides = [1, 1]} : vector<5x96xf32> to vector<5x8xf32>
    %cst_47 = arith.constant dense<0.000000e+00> : vector<5x5xf32>
    %102 = tpu.matmul %99, %100, %cst_47 {dimension_numbers = #tpu.dot_dimension_numbers<[1], [1], [0], [0], [0, 0, 1, 0], [], []>} : vector<5x8xf32>, vector<5x8xf32>, vector<5x5xf32> -> vector<5x5xf32>
    %cst_48 = arith.constant dense<0xFF800000> : vector<5xf32>
    %103 = vector.multi_reduction <maximumf>, %102, %cst_48 [1] : vector<5x5xf32> to vector<5xf32>
    %104 = vector.shape_cast %103 : vector<5xf32> to vector<5x1xf32>
    %105 = vector.broadcast %104 : vector<5x1xf32> to vector<5x5xf32>
    %106 = arith.subf %102, %105 : vector<5x5xf32>
    %107 = math.exp %106 : vector<5x5xf32>
    %cst_49 = arith.constant dense<0.000000e+00> : vector<5xf32>
    %108 = vector.multi_reduction <add>, %107, %cst_49 [1] : vector<5x5xf32> to vector<5xf32>
    %109 = vector.shape_cast %108 : vector<5xf32> to vector<5x1xf32>
    %110 = vector.broadcast %109 : vector<5x1xf32> to vector<5x5xf32>
    %111 = arith.divf %107, %110 : vector<5x5xf32>
    %cst_50 = arith.constant dense<0.000000e+00> : vector<5x8xf32>
    %112 = tpu.matmul %111, %101, %cst_50 {dimension_numbers = #tpu.dot_dimension_numbers<[1], [0], [0], [1], [0, 0, 1, 1], [], []>} : vector<5x5xf32>, vector<5x8xf32>, vector<5x8xf32> -> vector<5x8xf32>
    %113 = vector.extract_strided_slice %38 {offsets = [24, 0], sizes = [8, 32], strides = [1, 1]} : vector<32x32xf32> to vector<8x32xf32>
    %cst_51 = arith.constant dense<0.000000e+00> : vector<5x32xf32>
    %114 = tpu.matmul %112, %113, %cst_51 {dimension_numbers = #tpu.dot_dimension_numbers<[1], [0], [0], [1], [0, 0, 1, 1], [], []>} : vector<5x8xf32>, vector<8x32xf32>, vector<5x32xf32> -> vector<5x32xf32>
    %115 = arith.addf %96, %114 : vector<5x32xf32>
    %116 = arith.addf %5, %115 : vector<5x32xf32>
    %c0_52 = arith.constant 0 : index
    %c0_53 = arith.constant 0 : index
    %c0_54 = arith.constant 0 : index
    %117 = vector.load %arg9[%c0_52, %c0_53, %c0_54] : memref<2x1x32xf32, #tpu.memory_space<vmem>>, vector<1x1x32xf32>
    %118 = vector.shape_cast %117 : vector<1x1x32xf32> to vector<1x32xf32>
    %119 = vector.broadcast %118 : vector<1x32xf32> to vector<5x32xf32>
    %120 = arith.addf %116, %119 : vector<5x32xf32>
    %c0_55 = arith.constant 0 : index
    %c0_56 = arith.constant 0 : index
    %c0_57 = arith.constant 0 : index
    %121 = vector.load %arg10[%c0_55, %c0_56, %c0_57] : memref<2x1x32xf32, #tpu.memory_space<vmem>>, vector<1x1x32xf32>
    %122 = vector.shape_cast %121 : vector<1x1x32xf32> to vector<1x32xf32>
    %c0_58 = arith.constant 0 : index
    %c0_59 = arith.constant 0 : index
    %c0_60 = arith.constant 0 : index
    %123 = vector.load %arg11[%c0_58, %c0_59, %c0_60] : memref<2x1x32xf32, #tpu.memory_space<vmem>>, vector<1x1x32xf32>
    %124 = vector.shape_cast %123 : vector<1x1x32xf32> to vector<1x32xf32>
    %cst_61 = arith.constant dense<0.000000e+00> : vector<5xf32>
    %125 = vector.multi_reduction <add>, %120, %cst_61 [1] : vector<5x32xf32> to vector<5xf32>
    %126 = vector.shape_cast %125 : vector<5xf32> to vector<5x1xf32>
    %cst_62 = arith.constant 3.200000e+01 : f32
    %127 = vector.broadcast %cst_62 : f32 to vector<5x1xf32>
    %128 = arith.divf %126, %127 : vector<5x1xf32>
    %129 = vector.broadcast %128 : vector<5x1xf32> to vector<5x32xf32>
    %130 = arith.subf %120, %129 : vector<5x32xf32>
    %131 = arith.mulf %130, %130 : vector<5x32xf32>
    %cst_63 = arith.constant dense<0.000000e+00> : vector<5xf32>
    %132 = vector.multi_reduction <add>, %131, %cst_63 [1] : vector<5x32xf32> to vector<5xf32>
    %133 = vector.shape_cast %132 : vector<5xf32> to vector<5x1xf32>
    %cst_64 = arith.constant 3.200000e+01 : f32
    %134 = vector.broadcast %cst_64 : f32 to vector<5x1xf32>
    %135 = arith.divf %133, %134 : vector<5x1xf32>
    %cst_65 = arith.constant 9.99999997E-7 : f32
    %136 = vector.broadcast %cst_65 : f32 to vector<5x1xf32>
    %137 = arith.addf %135, %136 : vector<5x1xf32>
    %138 = math.rsqrt %137 : vector<5x1xf32>
    %139 = vector.broadcast %138 : vector<5x1xf32> to vector<5x32xf32>
    %140 = arith.mulf %130, %139 : vector<5x32xf32>
    %141 = vector.broadcast %122 : vector<1x32xf32> to vector<5x32xf32>
    %142 = arith.mulf %140, %141 : vector<5x32xf32>
    %143 = vector.broadcast %124 : vector<1x32xf32> to vector<5x32xf32>
    %144 = arith.addf %142, %143 : vector<5x32xf32>
    %c0_66 = arith.constant 0 : index
    %c0_67 = arith.constant 0 : index
    %c0_68 = arith.constant 0 : index
    %145 = vector.load %arg12[%c0_66, %c0_67, %c0_68] : memref<2x32x128xf32, #tpu.memory_space<vmem>>, vector<1x32x128xf32>
    %146 = vector.shape_cast %145 : vector<1x32x128xf32> to vector<32x128xf32>
    %cst_69 = arith.constant dense<0.000000e+00> : vector<5x128xf32>
    %147 = tpu.matmul %144, %146, %cst_69 {dimension_numbers = #tpu.dot_dimension_numbers<[1], [0], [0], [1], [0, 0, 1, 1], [], []>} : vector<5x32xf32>, vector<32x128xf32>, vector<5x128xf32> -> vector<5x128xf32>
    %c0_70 = arith.constant 0 : index
    %c0_71 = arith.constant 0 : index
    %c0_72 = arith.constant 0 : index
    %148 = vector.load %arg13[%c0_70, %c0_71, %c0_72] : memref<2x1x128xf32, #tpu.memory_space<vmem>>, vector<1x1x128xf32>
    %149 = vector.shape_cast %148 : vector<1x1x128xf32> to vector<1x128xf32>
    %150 = vector.broadcast %149 : vector<1x128xf32> to vector<5x128xf32>
    %151 = arith.addf %147, %150 : vector<5x128xf32>
    %152 = arith.mulf %151, %151 : vector<5x128xf32>
    %153 = arith.mulf %151, %152 : vector<5x128xf32>
    %cst_73 = arith.constant 4.471500e-02 : f32
    %154 = vector.broadcast %cst_73 : f32 to vector<5x128xf32>
    %155 = arith.mulf %154, %153 : vector<5x128xf32>
    %156 = arith.addf %151, %155 : vector<5x128xf32>
    %cst_74 = arith.constant 0.797884583 : f32
    %157 = vector.broadcast %cst_74 : f32 to vector<5x128xf32>
    %158 = arith.mulf %157, %156 : vector<5x128xf32>
    %159 = math.tanh %158 : vector<5x128xf32>
    %cst_75 = arith.constant 1.000000e+00 : f32
    %160 = vector.broadcast %cst_75 : f32 to vector<5x128xf32>
    %161 = arith.addf %160, %159 : vector<5x128xf32>
    %cst_76 = arith.constant 5.000000e-01 : f32
    %162 = vector.broadcast %cst_76 : f32 to vector<5x128xf32>
    %163 = arith.mulf %162, %161 : vector<5x128xf32>
    %164 = arith.mulf %151, %163 : vector<5x128xf32>
    %c0_77 = arith.constant 0 : index
    %c0_78 = arith.constant 0 : index
    %c0_79 = arith.constant 0 : index
    %165 = vector.load %arg14[%c0_77, %c0_78, %c0_79] : memref<2x128x32xf32, #tpu.memory_space<vmem>>, vector<1x128x32xf32>
    %166 = vector.shape_cast %165 : vector<1x128x32xf32> to vector<128x32xf32>
    %cst_80 = arith.constant dense<0.000000e+00> : vector<5x32xf32>
    %167 = tpu.matmul %164, %166, %cst_80 {dimension_numbers = #tpu.dot_dimension_numbers<[1], [0], [0], [1], [0, 0, 1, 1], [], []>} : vector<5x128xf32>, vector<128x32xf32>, vector<5x32xf32> -> vector<5x32xf32>
    %168 = arith.addf %120, %167 : vector<5x32xf32>
    %c0_81 = arith.constant 0 : index
    %c0_82 = arith.constant 0 : index
    %c0_83 = arith.constant 0 : index
    %169 = vector.load %arg15[%c0_81, %c0_82, %c0_83] : memref<2x1x32xf32, #tpu.memory_space<vmem>>, vector<1x1x32xf32>
    %170 = vector.shape_cast %169 : vector<1x1x32xf32> to vector<1x32xf32>
    %171 = vector.broadcast %170 : vector<1x32xf32> to vector<5x32xf32>
    %172 = arith.addf %168, %171 : vector<5x32xf32>
    %c1 = arith.constant 1 : index
    %c0_84 = arith.constant 0 : index
    %c0_85 = arith.constant 0 : index
    %173 = vector.load %arg4[%c1, %c0_84, %c0_85] : memref<2x1x32xf32, #tpu.memory_space<vmem>>, vector<1x1x32xf32>
    %174 = vector.shape_cast %173 : vector<1x1x32xf32> to vector<1x32xf32>
    %c1_86 = arith.constant 1 : index
    %c0_87 = arith.constant 0 : index
    %c0_88 = arith.constant 0 : index
    %175 = vector.load %arg5[%c1_86, %c0_87, %c0_88] : memref<2x1x32xf32, #tpu.memory_space<vmem>>, vector<1x1x32xf32>
    %176 = vector.shape_cast %175 : vector<1x1x32xf32> to vector<1x32xf32>
    %cst_89 = arith.constant dense<0.000000e+00> : vector<5xf32>
    %177 = vector.multi_reduction <add>, %172, %cst_89 [1] : vector<5x32xf32> to vector<5xf32>
    %178 = vector.shape_cast %177 : vector<5xf32> to vector<5x1xf32>
    %cst_90 = arith.constant 3.200000e+01 : f32
    %179 = vector.broadcast %cst_90 : f32 to vector<5x1xf32>
    %180 = arith.divf %178, %179 : vector<5x1xf32>
    %181 = vector.broadcast %180 : vector<5x1xf32> to vector<5x32xf32>
    %182 = arith.subf %172, %181 : vector<5x32xf32>
    %183 = arith.mulf %182, %182 : vector<5x32xf32>
    %cst_91 = arith.constant dense<0.000000e+00> : vector<5xf32>
    %184 = vector.multi_reduction <add>, %183, %cst_91 [1] : vector<5x32xf32> to vector<5xf32>
    %185 = vector.shape_cast %184 : vector<5xf32> to vector<5x1xf32>
    %cst_92 = arith.constant 3.200000e+01 : f32
    %186 = vector.broadcast %cst_92 : f32 to vector<5x1xf32>
    %187 = arith.divf %185, %186 : vector<5x1xf32>
    %cst_93 = arith.constant 9.99999997E-7 : f32
    %188 = vector.broadcast %cst_93 : f32 to vector<5x1xf32>
    %189 = arith.addf %187, %188 : vector<5x1xf32>
    %190 = math.rsqrt %189 : vector<5x1xf32>
    %191 = vector.broadcast %190 : vector<5x1xf32> to vector<5x32xf32>
    %192 = arith.mulf %182, %191 : vector<5x32xf32>
    %193 = vector.broadcast %174 : vector<1x32xf32> to vector<5x32xf32>
    %194 = arith.mulf %192, %193 : vector<5x32xf32>
    %195 = vector.broadcast %176 : vector<1x32xf32> to vector<5x32xf32>
    %196 = arith.addf %194, %195 : vector<5x32xf32>
    %c1_94 = arith.constant 1 : index
    %c0_95 = arith.constant 0 : index
    %c0_96 = arith.constant 0 : index
    %197 = vector.load %arg6[%c1_94, %c0_95, %c0_96] : memref<2x32x96xf32, #tpu.memory_space<vmem>>, vector<1x32x96xf32>
    %198 = vector.shape_cast %197 : vector<1x32x96xf32> to vector<32x96xf32>
    %cst_97 = arith.constant dense<0.000000e+00> : vector<5x96xf32>
    %199 = tpu.matmul %196, %198, %cst_97 {dimension_numbers = #tpu.dot_dimension_numbers<[1], [0], [0], [1], [0, 0, 1, 1], [], []>} : vector<5x32xf32>, vector<32x96xf32>, vector<5x96xf32> -> vector<5x96xf32>
    %c1_98 = arith.constant 1 : index
    %c0_99 = arith.constant 0 : index
    %c0_100 = arith.constant 0 : index
    %200 = vector.load %arg7[%c1_98, %c0_99, %c0_100] : memref<2x1x96xf32, #tpu.memory_space<vmem>>, vector<1x1x96xf32>
    %201 = vector.shape_cast %200 : vector<1x1x96xf32> to vector<1x96xf32>
    %202 = vector.broadcast %201 : vector<1x96xf32> to vector<5x96xf32>
    %203 = arith.addf %199, %202 : vector<5x96xf32>
    %c1_101 = arith.constant 1 : index
    %c0_102 = arith.constant 0 : index
    %c0_103 = arith.constant 0 : index
    %204 = vector.load %arg8[%c1_101, %c0_102, %c0_103] : memref<2x32x32xf32, #tpu.memory_space<vmem>>, vector<1x32x32xf32>
    %205 = vector.shape_cast %204 : vector<1x32x32xf32> to vector<32x32xf32>
    %cst_104 = arith.constant 0.000000e+00 : f32
    %206 = vector.broadcast %cst_104 : f32 to vector<5x32xf32>
    %207 = vector.extract_strided_slice %203 {offsets = [0, 0], sizes = [5, 8], strides = [1, 1]} : vector<5x96xf32> to vector<5x8xf32>
    %cst_105 = arith.constant 0.353553385 : f32
    %208 = vector.broadcast %cst_105 : f32 to vector<5x8xf32>
    %209 = arith.mulf %207, %208 : vector<5x8xf32>
    %210 = vector.extract_strided_slice %203 {offsets = [0, 32], sizes = [5, 8], strides = [1, 1]} : vector<5x96xf32> to vector<5x8xf32>
    %211 = vector.extract_strided_slice %203 {offsets = [0, 64], sizes = [5, 8], strides = [1, 1]} : vector<5x96xf32> to vector<5x8xf32>
    %cst_106 = arith.constant dense<0.000000e+00> : vector<5x5xf32>
    %212 = tpu.matmul %209, %210, %cst_106 {dimension_numbers = #tpu.dot_dimension_numbers<[1], [1], [0], [0], [0, 0, 1, 0], [], []>} : vector<5x8xf32>, vector<5x8xf32>, vector<5x5xf32> -> vector<5x5xf32>
    %cst_107 = arith.constant dense<0xFF800000> : vector<5xf32>
    %213 = vector.multi_reduction <maximumf>, %212, %cst_107 [1] : vector<5x5xf32> to vector<5xf32>
    %214 = vector.shape_cast %213 : vector<5xf32> to vector<5x1xf32>
    %215 = vector.broadcast %214 : vector<5x1xf32> to vector<5x5xf32>
    %216 = arith.subf %212, %215 : vector<5x5xf32>
    %217 = math.exp %216 : vector<5x5xf32>
    %cst_108 = arith.constant dense<0.000000e+00> : vector<5xf32>
    %218 = vector.multi_reduction <add>, %217, %cst_108 [1] : vector<5x5xf32> to vector<5xf32>
    %219 = vector.shape_cast %218 : vector<5xf32> to vector<5x1xf32>
    %220 = vector.broadcast %219 : vector<5x1xf32> to vector<5x5xf32>
    %221 = arith.divf %217, %220 : vector<5x5xf32>
    %cst_109 = arith.constant dense<0.000000e+00> : vector<5x8xf32>
    %222 = tpu.matmul %221, %211, %cst_109 {dimension_numbers = #tpu.dot_dimension_numbers<[1], [0], [0], [1], [0, 0, 1, 1], [], []>} : vector<5x5xf32>, vector<5x8xf32>, vector<5x8xf32> -> vector<5x8xf32>
    %223 = vector.extract_strided_slice %205 {offsets = [0, 0], sizes = [8, 32], strides = [1, 1]} : vector<32x32xf32> to vector<8x32xf32>
    %cst_110 = arith.constant dense<0.000000e+00> : vector<5x32xf32>
    %224 = tpu.matmul %222, %223, %cst_110 {dimension_numbers = #tpu.dot_dimension_numbers<[1], [0], [0], [1], [0, 0, 1, 1], [], []>} : vector<5x8xf32>, vector<8x32xf32>, vector<5x32xf32> -> vector<5x32xf32>
    %225 = arith.addf %206, %224 : vector<5x32xf32>
    %226 = vector.extract_strided_slice %203 {offsets = [0, 8], sizes = [5, 8], strides = [1, 1]} : vector<5x96xf32> to vector<5x8xf32>
    %cst_111 = arith.constant 0.353553385 : f32
    %227 = vector.broadcast %cst_111 : f32 to vector<5x8xf32>
    %228 = arith.mulf %226, %227 : vector<5x8xf32>
    %229 = vector.extract_strided_slice %203 {offsets = [0, 40], sizes = [5, 8], strides = [1, 1]} : vector<5x96xf32> to vector<5x8xf32>
    %230 = vector.extract_strided_slice %203 {offsets = [0, 72], sizes = [5, 8], strides = [1, 1]} : vector<5x96xf32> to vector<5x8xf32>
    %cst_112 = arith.constant dense<0.000000e+00> : vector<5x5xf32>
    %231 = tpu.matmul %228, %229, %cst_112 {dimension_numbers = #tpu.dot_dimension_numbers<[1], [1], [0], [0], [0, 0, 1, 0], [], []>} : vector<5x8xf32>, vector<5x8xf32>, vector<5x5xf32> -> vector<5x5xf32>
    %cst_113 = arith.constant dense<0xFF800000> : vector<5xf32>
    %232 = vector.multi_reduction <maximumf>, %231, %cst_113 [1] : vector<5x5xf32> to vector<5xf32>
    %233 = vector.shape_cast %232 : vector<5xf32> to vector<5x1xf32>
    %234 = vector.broadcast %233 : vector<5x1xf32> to vector<5x5xf32>
    %235 = arith.subf %231, %234 : vector<5x5xf32>
    %236 = math.exp %235 : vector<5x5xf32>
    %cst_114 = arith.constant dense<0.000000e+00> : vector<5xf32>
    %237 = vector.multi_reduction <add>, %236, %cst_114 [1] : vector<5x5xf32> to vector<5xf32>
    %238 = vector.shape_cast %237 : vector<5xf32> to vector<5x1xf32>
    %239 = vector.broadcast %238 : vector<5x1xf32> to vector<5x5xf32>
    %240 = arith.divf %236, %239 : vector<5x5xf32>
    %cst_115 = arith.constant dense<0.000000e+00> : vector<5x8xf32>
    %241 = tpu.matmul %240, %230, %cst_115 {dimension_numbers = #tpu.dot_dimension_numbers<[1], [0], [0], [1], [0, 0, 1, 1], [], []>} : vector<5x5xf32>, vector<5x8xf32>, vector<5x8xf32> -> vector<5x8xf32>
    %242 = vector.extract_strided_slice %205 {offsets = [8, 0], sizes = [8, 32], strides = [1, 1]} : vector<32x32xf32> to vector<8x32xf32>
    %cst_116 = arith.constant dense<0.000000e+00> : vector<5x32xf32>
    %243 = tpu.matmul %241, %242, %cst_116 {dimension_numbers = #tpu.dot_dimension_numbers<[1], [0], [0], [1], [0, 0, 1, 1], [], []>} : vector<5x8xf32>, vector<8x32xf32>, vector<5x32xf32> -> vector<5x32xf32>
    %244 = arith.addf %225, %243 : vector<5x32xf32>
    %245 = vector.extract_strided_slice %203 {offsets = [0, 16], sizes = [5, 8], strides = [1, 1]} : vector<5x96xf32> to vector<5x8xf32>
    %cst_117 = arith.constant 0.353553385 : f32
    %246 = vector.broadcast %cst_117 : f32 to vector<5x8xf32>
    %247 = arith.mulf %245, %246 : vector<5x8xf32>
    %248 = vector.extract_strided_slice %203 {offsets = [0, 48], sizes = [5, 8], strides = [1, 1]} : vector<5x96xf32> to vector<5x8xf32>
    %249 = vector.extract_strided_slice %203 {offsets = [0, 80], sizes = [5, 8], strides = [1, 1]} : vector<5x96xf32> to vector<5x8xf32>
    %cst_118 = arith.constant dense<0.000000e+00> : vector<5x5xf32>
    %250 = tpu.matmul %247, %248, %cst_118 {dimension_numbers = #tpu.dot_dimension_numbers<[1], [1], [0], [0], [0, 0, 1, 0], [], []>} : vector<5x8xf32>, vector<5x8xf32>, vector<5x5xf32> -> vector<5x5xf32>
    %cst_119 = arith.constant dense<0xFF800000> : vector<5xf32>
    %251 = vector.multi_reduction <maximumf>, %250, %cst_119 [1] : vector<5x5xf32> to vector<5xf32>
    %252 = vector.shape_cast %251 : vector<5xf32> to vector<5x1xf32>
    %253 = vector.broadcast %252 : vector<5x1xf32> to vector<5x5xf32>
    %254 = arith.subf %250, %253 : vector<5x5xf32>
    %255 = math.exp %254 : vector<5x5xf32>
    %cst_120 = arith.constant dense<0.000000e+00> : vector<5xf32>
    %256 = vector.multi_reduction <add>, %255, %cst_120 [1] : vector<5x5xf32> to vector<5xf32>
    %257 = vector.shape_cast %256 : vector<5xf32> to vector<5x1xf32>
    %258 = vector.broadcast %257 : vector<5x1xf32> to vector<5x5xf32>
    %259 = arith.divf %255, %258 : vector<5x5xf32>
    %cst_121 = arith.constant dense<0.000000e+00> : vector<5x8xf32>
    %260 = tpu.matmul %259, %249, %cst_121 {dimension_numbers = #tpu.dot_dimension_numbers<[1], [0], [0], [1], [0, 0, 1, 1], [], []>} : vector<5x5xf32>, vector<5x8xf32>, vector<5x8xf32> -> vector<5x8xf32>
    %261 = vector.extract_strided_slice %205 {offsets = [16, 0], sizes = [8, 32], strides = [1, 1]} : vector<32x32xf32> to vector<8x32xf32>
    %cst_122 = arith.constant dense<0.000000e+00> : vector<5x32xf32>
    %262 = tpu.matmul %260, %261, %cst_122 {dimension_numbers = #tpu.dot_dimension_numbers<[1], [0], [0], [1], [0, 0, 1, 1], [], []>} : vector<5x8xf32>, vector<8x32xf32>, vector<5x32xf32> -> vector<5x32xf32>
    %263 = arith.addf %244, %262 : vector<5x32xf32>
    %264 = vector.extract_strided_slice %203 {offsets = [0, 24], sizes = [5, 8], strides = [1, 1]} : vector<5x96xf32> to vector<5x8xf32>
    %cst_123 = arith.constant 0.353553385 : f32
    %265 = vector.broadcast %cst_123 : f32 to vector<5x8xf32>
    %266 = arith.mulf %264, %265 : vector<5x8xf32>
    %267 = vector.extract_strided_slice %203 {offsets = [0, 56], sizes = [5, 8], strides = [1, 1]} : vector<5x96xf32> to vector<5x8xf32>
    %268 = vector.extract_strided_slice %203 {offsets = [0, 88], sizes = [5, 8], strides = [1, 1]} : vector<5x96xf32> to vector<5x8xf32>
    %cst_124 = arith.constant dense<0.000000e+00> : vector<5x5xf32>
    %269 = tpu.matmul %266, %267, %cst_124 {dimension_numbers = #tpu.dot_dimension_numbers<[1], [1], [0], [0], [0, 0, 1, 0], [], []>} : vector<5x8xf32>, vector<5x8xf32>, vector<5x5xf32> -> vector<5x5xf32>
    %cst_125 = arith.constant dense<0xFF800000> : vector<5xf32>
    %270 = vector.multi_reduction <maximumf>, %269, %cst_125 [1] : vector<5x5xf32> to vector<5xf32>
    %271 = vector.shape_cast %270 : vector<5xf32> to vector<5x1xf32>
    %272 = vector.broadcast %271 : vector<5x1xf32> to vector<5x5xf32>
    %273 = arith.subf %269, %272 : vector<5x5xf32>
    %274 = math.exp %273 : vector<5x5xf32>
    %cst_126 = arith.constant dense<0.000000e+00> : vector<5xf32>
    %275 = vector.multi_reduction <add>, %274, %cst_126 [1] : vector<5x5xf32> to vector<5xf32>
    %276 = vector.shape_cast %275 : vector<5xf32> to vector<5x1xf32>
    %277 = vector.broadcast %276 : vector<5x1xf32> to vector<5x5xf32>
    %278 = arith.divf %274, %277 : vector<5x5xf32>
    %cst_127 = arith.constant dense<0.000000e+00> : vector<5x8xf32>
    %279 = tpu.matmul %278, %268, %cst_127 {dimension_numbers = #tpu.dot_dimension_numbers<[1], [0], [0], [1], [0, 0, 1, 1], [], []>} : vector<5x5xf32>, vector<5x8xf32>, vector<5x8xf32> -> vector<5x8xf32>
    %280 = vector.extract_strided_slice %205 {offsets = [24, 0], sizes = [8, 32], strides = [1, 1]} : vector<32x32xf32> to vector<8x32xf32>
    %cst_128 = arith.constant dense<0.000000e+00> : vector<5x32xf32>
    %281 = tpu.matmul %279, %280, %cst_128 {dimension_numbers = #tpu.dot_dimension_numbers<[1], [0], [0], [1], [0, 0, 1, 1], [], []>} : vector<5x8xf32>, vector<8x32xf32>, vector<5x32xf32> -> vector<5x32xf32>
    %282 = arith.addf %263, %281 : vector<5x32xf32>
    %283 = arith.addf %172, %282 : vector<5x32xf32>
    %c1_129 = arith.constant 1 : index
    %c0_130 = arith.constant 0 : index
    %c0_131 = arith.constant 0 : index
    %284 = vector.load %arg9[%c1_129, %c0_130, %c0_131] : memref<2x1x32xf32, #tpu.memory_space<vmem>>, vector<1x1x32xf32>
    %285 = vector.shape_cast %284 : vector<1x1x32xf32> to vector<1x32xf32>
    %286 = vector.broadcast %285 : vector<1x32xf32> to vector<5x32xf32>
    %287 = arith.addf %283, %286 : vector<5x32xf32>
    %c1_132 = arith.constant 1 : index
    %c0_133 = arith.constant 0 : index
    %c0_134 = arith.constant 0 : index
    %288 = vector.load %arg10[%c1_132, %c0_133, %c0_134] : memref<2x1x32xf32, #tpu.memory_space<vmem>>, vector<1x1x32xf32>
    %289 = vector.shape_cast %288 : vector<1x1x32xf32> to vector<1x32xf32>
    %c1_135 = arith.constant 1 : index
    %c0_136 = arith.constant 0 : index
    %c0_137 = arith.constant 0 : index
    %290 = vector.load %arg11[%c1_135, %c0_136, %c0_137] : memref<2x1x32xf32, #tpu.memory_space<vmem>>, vector<1x1x32xf32>
    %291 = vector.shape_cast %290 : vector<1x1x32xf32> to vector<1x32xf32>
    %cst_138 = arith.constant dense<0.000000e+00> : vector<5xf32>
    %292 = vector.multi_reduction <add>, %287, %cst_138 [1] : vector<5x32xf32> to vector<5xf32>
    %293 = vector.shape_cast %292 : vector<5xf32> to vector<5x1xf32>
    %cst_139 = arith.constant 3.200000e+01 : f32
    %294 = vector.broadcast %cst_139 : f32 to vector<5x1xf32>
    %295 = arith.divf %293, %294 : vector<5x1xf32>
    %296 = vector.broadcast %295 : vector<5x1xf32> to vector<5x32xf32>
    %297 = arith.subf %287, %296 : vector<5x32xf32>
    %298 = arith.mulf %297, %297 : vector<5x32xf32>
    %cst_140 = arith.constant dense<0.000000e+00> : vector<5xf32>
    %299 = vector.multi_reduction <add>, %298, %cst_140 [1] : vector<5x32xf32> to vector<5xf32>
    %300 = vector.shape_cast %299 : vector<5xf32> to vector<5x1xf32>
    %cst_141 = arith.constant 3.200000e+01 : f32
    %301 = vector.broadcast %cst_141 : f32 to vector<5x1xf32>
    %302 = arith.divf %300, %301 : vector<5x1xf32>
    %cst_142 = arith.constant 9.99999997E-7 : f32
    %303 = vector.broadcast %cst_142 : f32 to vector<5x1xf32>
    %304 = arith.addf %302, %303 : vector<5x1xf32>
    %305 = math.rsqrt %304 : vector<5x1xf32>
    %306 = vector.broadcast %305 : vector<5x1xf32> to vector<5x32xf32>
    %307 = arith.mulf %297, %306 : vector<5x32xf32>
    %308 = vector.broadcast %289 : vector<1x32xf32> to vector<5x32xf32>
    %309 = arith.mulf %307, %308 : vector<5x32xf32>
    %310 = vector.broadcast %291 : vector<1x32xf32> to vector<5x32xf32>
    %311 = arith.addf %309, %310 : vector<5x32xf32>
    %c1_143 = arith.constant 1 : index
    %c0_144 = arith.constant 0 : index
    %c0_145 = arith.constant 0 : index
    %312 = vector.load %arg12[%c1_143, %c0_144, %c0_145] : memref<2x32x128xf32, #tpu.memory_space<vmem>>, vector<1x32x128xf32>
    %313 = vector.shape_cast %312 : vector<1x32x128xf32> to vector<32x128xf32>
    %cst_146 = arith.constant dense<0.000000e+00> : vector<5x128xf32>
    %314 = tpu.matmul %311, %313, %cst_146 {dimension_numbers = #tpu.dot_dimension_numbers<[1], [0], [0], [1], [0, 0, 1, 1], [], []>} : vector<5x32xf32>, vector<32x128xf32>, vector<5x128xf32> -> vector<5x128xf32>
    %c1_147 = arith.constant 1 : index
    %c0_148 = arith.constant 0 : index
    %c0_149 = arith.constant 0 : index
    %315 = vector.load %arg13[%c1_147, %c0_148, %c0_149] : memref<2x1x128xf32, #tpu.memory_space<vmem>>, vector<1x1x128xf32>
    %316 = vector.shape_cast %315 : vector<1x1x128xf32> to vector<1x128xf32>
    %317 = vector.broadcast %316 : vector<1x128xf32> to vector<5x128xf32>
    %318 = arith.addf %314, %317 : vector<5x128xf32>
    %319 = arith.mulf %318, %318 : vector<5x128xf32>
    %320 = arith.mulf %318, %319 : vector<5x128xf32>
    %cst_150 = arith.constant 4.471500e-02 : f32
    %321 = vector.broadcast %cst_150 : f32 to vector<5x128xf32>
    %322 = arith.mulf %321, %320 : vector<5x128xf32>
    %323 = arith.addf %318, %322 : vector<5x128xf32>
    %cst_151 = arith.constant 0.797884583 : f32
    %324 = vector.broadcast %cst_151 : f32 to vector<5x128xf32>
    %325 = arith.mulf %324, %323 : vector<5x128xf32>
    %326 = math.tanh %325 : vector<5x128xf32>
    %cst_152 = arith.constant 1.000000e+00 : f32
    %327 = vector.broadcast %cst_152 : f32 to vector<5x128xf32>
    %328 = arith.addf %327, %326 : vector<5x128xf32>
    %cst_153 = arith.constant 5.000000e-01 : f32
    %329 = vector.broadcast %cst_153 : f32 to vector<5x128xf32>
    %330 = arith.mulf %329, %328 : vector<5x128xf32>
    %331 = arith.mulf %318, %330 : vector<5x128xf32>
    %c1_154 = arith.constant 1 : index
    %c0_155 = arith.constant 0 : index
    %c0_156 = arith.constant 0 : index
    %332 = vector.load %arg14[%c1_154, %c0_155, %c0_156] : memref<2x128x32xf32, #tpu.memory_space<vmem>>, vector<1x128x32xf32>
    %333 = vector.shape_cast %332 : vector<1x128x32xf32> to vector<128x32xf32>
    %cst_157 = arith.constant dense<0.000000e+00> : vector<5x32xf32>
    %334 = tpu.matmul %331, %333, %cst_157 {dimension_numbers = #tpu.dot_dimension_numbers<[1], [0], [0], [1], [0, 0, 1, 1], [], []>} : vector<5x128xf32>, vector<128x32xf32>, vector<5x32xf32> -> vector<5x32xf32>
    %335 = arith.addf %287, %334 : vector<5x32xf32>
    %c1_158 = arith.constant 1 : index
    %c0_159 = arith.constant 0 : index
    %c0_160 = arith.constant 0 : index
    %336 = vector.load %arg15[%c1_158, %c0_159, %c0_160] : memref<2x1x32xf32, #tpu.memory_space<vmem>>, vector<1x1x32xf32>
    %337 = vector.shape_cast %336 : vector<1x1x32xf32> to vector<1x32xf32>
    %338 = vector.broadcast %337 : vector<1x32xf32> to vector<5x32xf32>
    %339 = arith.addf %335, %338 : vector<5x32xf32>
    %c0_161 = arith.constant 0 : index
    %c0_162 = arith.constant 0 : index
    %340 = vector.load %arg16[%c0_161, %c0_162] : memref<1x32xf32, #tpu.memory_space<vmem>>, vector<1x32xf32>
    %c0_163 = arith.constant 0 : index
    %c0_164 = arith.constant 0 : index
    %341 = vector.load %arg17[%c0_163, %c0_164] : memref<1x32xf32, #tpu.memory_space<vmem>>, vector<1x32xf32>
    %cst_165 = arith.constant dense<0.000000e+00> : vector<5xf32>
    %342 = vector.multi_reduction <add>, %339, %cst_165 [1] : vector<5x32xf32> to vector<5xf32>
    %343 = vector.shape_cast %342 : vector<5xf32> to vector<5x1xf32>
    %cst_166 = arith.constant 3.200000e+01 : f32
    %344 = vector.broadcast %cst_166 : f32 to vector<5x1xf32>
    %345 = arith.divf %343, %344 : vector<5x1xf32>
    %346 = vector.broadcast %345 : vector<5x1xf32> to vector<5x32xf32>
    %347 = arith.subf %339, %346 : vector<5x32xf32>
    %348 = arith.mulf %347, %347 : vector<5x32xf32>
    %cst_167 = arith.constant dense<0.000000e+00> : vector<5xf32>
    %349 = vector.multi_reduction <add>, %348, %cst_167 [1] : vector<5x32xf32> to vector<5xf32>
    %350 = vector.shape_cast %349 : vector<5xf32> to vector<5x1xf32>
    %cst_168 = arith.constant 3.200000e+01 : f32
    %351 = vector.broadcast %cst_168 : f32 to vector<5x1xf32>
    %352 = arith.divf %350, %351 : vector<5x1xf32>
    %cst_169 = arith.constant 9.99999997E-7 : f32
    %353 = vector.broadcast %cst_169 : f32 to vector<5x1xf32>
    %354 = arith.addf %352, %353 : vector<5x1xf32>
    %355 = math.rsqrt %354 : vector<5x1xf32>
    %356 = vector.broadcast %355 : vector<5x1xf32> to vector<5x32xf32>
    %357 = arith.mulf %347, %356 : vector<5x32xf32>
    %358 = vector.broadcast %340 : vector<1x32xf32> to vector<5x32xf32>
    %359 = arith.mulf %357, %358 : vector<5x32xf32>
    %360 = vector.broadcast %341 : vector<1x32xf32> to vector<5x32xf32>
    %361 = arith.addf %359, %360 : vector<5x32xf32>
    %362 = vector.extract_strided_slice %361 {offsets = [0, 0], sizes = [1, 32], strides = [1, 1]} : vector<5x32xf32> to vector<1x32xf32>
    %c0_170 = arith.constant 0 : index
    %c0_171 = arith.constant 0 : index
    %363 = vector.load %arg18[%c0_170, %c0_171] : memref<32x9xf32, #tpu.memory_space<vmem>>, vector<32x9xf32>
    %cst_172 = arith.constant dense<0.000000e+00> : vector<1x9xf32>
    %364 = tpu.matmul %362, %363, %cst_172 {dimension_numbers = #tpu.dot_dimension_numbers<[1], [0], [0], [1], [0, 0, 1, 1], [], []>} : vector<1x32xf32>, vector<32x9xf32>, vector<1x9xf32> -> vector<1x9xf32>
    %c0_173 = arith.constant 0 : index
    %c0_174 = arith.constant 0 : index
    %365 = vector.load %arg19[%c0_173, %c0_174] : memref<1x9xf32, #tpu.memory_space<vmem>>, vector<1x9xf32>
    %366 = arith.addf %364, %365 : vector<1x9xf32>
    %367 = vector.extract_strided_slice %366 {offsets = [0, 0], sizes = [1, 8], strides = [1, 1]} : vector<1x9xf32> to vector<1x8xf32>
    %c0_175 = arith.constant 0 : index
    %c0_176 = arith.constant 0 : index
    %c0_177 = arith.constant 0 : index
    %368 = vector.load %arg20[%c0_175, %c0_176, %c0_177] : memref<1x1x8xf32, #tpu.memory_space<vmem>>, vector<1x1x8xf32>
    %369 = vector.shape_cast %368 : vector<1x1x8xf32> to vector<1x8xf32>
    %370 = vector.shape_cast %367 : vector<1x8xf32> to vector<1x1x8xf32>
    tpu.vector_store %arg20[%c0_175, %c0_176, %c0_177], %370 {strides = array<i32>} : memref<1x1x8xf32, #tpu.memory_space<vmem>>, vector<1x1x8xf32>,
    %371 = vector.extract_strided_slice %366 {offsets = [0, 8], sizes = [1, 1], strides = [1, 1]} : vector<1x9xf32> to vector<1x1xf32>
    %372 = arith.negf %371 : vector<1x1xf32>
    %373 = math.exp %372 : vector<1x1xf32>
    %cst_178 = arith.constant 1.000000e+00 : f32
    %374 = vector.broadcast %cst_178 : f32 to vector<1x1xf32>
    %375 = arith.addf %374, %373 : vector<1x1xf32>
    %376 = arith.divf %374, %375 : vector<1x1xf32>
    %c0_179 = arith.constant 0 : index
    %c0_180 = arith.constant 0 : index
    %c0_181 = arith.constant 0 : index
    %377 = vector.load %arg21[%c0_179, %c0_180, %c0_181] : memref<1x1x1xf32, #tpu.memory_space<vmem>>, vector<1x1x1xf32>
    %378 = vector.shape_cast %377 : vector<1x1x1xf32> to vector<1x1xf32>
    %379 = vector.shape_cast %376 : vector<1x1xf32> to vector<1x1x1xf32>
    tpu.vector_store %arg21[%c0_179, %c0_180, %c0_181], %379 {strides = array<i32>} : memref<1x1x1xf32, #tpu.memory_space<vmem>>, vector<1x1x1xf32>,
    return
  }
  func.func @transform_0(%arg0: i32) -> (i32, i32, i32) {
    %c0_i32 = arith.constant 0 : i32
    %c0_i32_0 = arith.constant 0 : i32
    %c0_i32_1 = arith.constant 0 : i32
    return %arg0, %c0_i32, %c0_i32_0 : i32, i32, i32
  }
  func.func @transform_1(%arg0: i32) -> (i32, i32) {
    %c0_i32 = arith.constant 0 : i32
    %c0_i32_0 = arith.constant 0 : i32
    %c0_i32_1 = arith.constant 0 : i32
    return %c0_i32, %c0_i32_0 : i32, i32
  }
  func.func @transform_2(%arg0: i32) -> (i32, i32) {
    %c0_i32 = arith.constant 0 : i32
    %c0_i32_0 = arith.constant 0 : i32
    %c0_i32_1 = arith.constant 0 : i32
    return %c0_i32, %c0_i32_0 : i32, i32
  }
  func.func @transform_3(%arg0: i32) -> (i32, i32, i32) {
    %c0_i32 = arith.constant 0 : i32
    %c0_i32_0 = arith.constant 0 : i32
    %c0_i32_1 = arith.constant 0 : i32
    %c0_i32_2 = arith.constant 0 : i32
    return %c0_i32, %c0_i32_0, %c0_i32_1 : i32, i32, i32
  }
  func.func @transform_4(%arg0: i32) -> (i32, i32, i32) {
    %c0_i32 = arith.constant 0 : i32
    %c0_i32_0 = arith.constant 0 : i32
    %c0_i32_1 = arith.constant 0 : i32
    %c0_i32_2 = arith.constant 0 : i32
    return %c0_i32, %c0_i32_0, %c0_i32_1 : i32, i32, i32
  }
  func.func @transform_5(%arg0: i32) -> (i32, i32, i32) {
    %c0_i32 = arith.constant 0 : i32
    %c0_i32_0 = arith.constant 0 : i32
    %c0_i32_1 = arith.constant 0 : i32
    %c0_i32_2 = arith.constant 0 : i32
    return %c0_i32, %c0_i32_0, %c0_i32_1 : i32, i32, i32
  }
  func.func @transform_6(%arg0: i32) -> (i32, i32, i32) {
    %c0_i32 = arith.constant 0 : i32
    %c0_i32_0 = arith.constant 0 : i32
    %c0_i32_1 = arith.constant 0 : i32
    %c0_i32_2 = arith.constant 0 : i32
    return %c0_i32, %c0_i32_0, %c0_i32_1 : i32, i32, i32
  }
  func.func @transform_7(%arg0: i32) -> (i32, i32, i32) {
    %c0_i32 = arith.constant 0 : i32
    %c0_i32_0 = arith.constant 0 : i32
    %c0_i32_1 = arith.constant 0 : i32
    %c0_i32_2 = arith.constant 0 : i32
    return %c0_i32, %c0_i32_0, %c0_i32_1 : i32, i32, i32
  }
  func.func @transform_8(%arg0: i32) -> (i32, i32, i32) {
    %c0_i32 = arith.constant 0 : i32
    %c0_i32_0 = arith.constant 0 : i32
    %c0_i32_1 = arith.constant 0 : i32
    %c0_i32_2 = arith.constant 0 : i32
    return %c0_i32, %c0_i32_0, %c0_i32_1 : i32, i32, i32
  }
  func.func @transform_9(%arg0: i32) -> (i32, i32, i32) {
    %c0_i32 = arith.constant 0 : i32
    %c0_i32_0 = arith.constant 0 : i32
    %c0_i32_1 = arith.constant 0 : i32
    %c0_i32_2 = arith.constant 0 : i32
    return %c0_i32, %c0_i32_0, %c0_i32_1 : i32, i32, i32
  }
  func.func @transform_10(%arg0: i32) -> (i32, i32, i32) {
    %c0_i32 = arith.constant 0 : i32
    %c0_i32_0 = arith.constant 0 : i32
    %c0_i32_1 = arith.constant 0 : i32
    %c0_i32_2 = arith.constant 0 : i32
    return %c0_i32, %c0_i32_0, %c0_i32_1 : i32, i32, i32
  }
  func.func @transform_11(%arg0: i32) -> (i32, i32, i32) {
    %c0_i32 = arith.constant 0 : i32
    %c0_i32_0 = arith.constant 0 : i32
    %c0_i32_1 = arith.constant 0 : i32
    %c0_i32_2 = arith.constant 0 : i32
    return %c0_i32, %c0_i32_0, %c0_i32_1 : i32, i32, i32
  }
  func.func @transform_12(%arg0: i32) -> (i32, i32, i32) {
    %c0_i32 = arith.constant 0 : i32
    %c0_i32_0 = arith.constant 0 : i32
    %c0_i32_1 = arith.constant 0 : i32
    %c0_i32_2 = arith.constant 0 : i32
    return %c0_i32, %c0_i32_0, %c0_i32_1 : i32, i32, i32
  }
  func.func @transform_13(%arg0: i32) -> (i32, i32, i32) {
    %c0_i32 = arith.constant 0 : i32
    %c0_i32_0 = arith.constant 0 : i32
    %c0_i32_1 = arith.constant 0 : i32
    %c0_i32_2 = arith.constant 0 : i32
    return %c0_i32, %c0_i32_0, %c0_i32_1 : i32, i32, i32
  }
  func.func @transform_14(%arg0: i32) -> (i32, i32, i32) {
    %c0_i32 = arith.constant 0 : i32
    %c0_i32_0 = arith.constant 0 : i32
    %c0_i32_1 = arith.constant 0 : i32
    %c0_i32_2 = arith.constant 0 : i32
    return %c0_i32, %c0_i32_0, %c0_i32_1 : i32, i32, i32
  }
  func.func @transform_15(%arg0: i32) -> (i32, i32) {
    %c0_i32 = arith.constant 0 : i32
    %c0_i32_0 = arith.constant 0 : i32
    %c0_i32_1 = arith.constant 0 : i32
    return %c0_i32, %c0_i32_0 : i32, i32
  }
  func.func @transform_16(%arg0: i32) -> (i32, i32) {
    %c0_i32 = arith.constant 0 : i32
    %c0_i32_0 = arith.constant 0 : i32
    %c0_i32_1 = arith.constant 0 : i32
    return %c0_i32, %c0_i32_0 : i32, i32
  }
  func.func @transform_17(%arg0: i32) -> (i32, i32) {
    %c0_i32 = arith.constant 0 : i32
    %c0_i32_0 = arith.constant 0 : i32
    %c0_i32_1 = arith.constant 0 : i32
    return %c0_i32, %c0_i32_0 : i32, i32
  }
  func.func @transform_18(%arg0: i32) -> (i32, i32) {
    %c0_i32 = arith.constant 0 : i32
    %c0_i32_0 = arith.constant 0 : i32
    %c0_i32_1 = arith.constant 0 : i32
    return %c0_i32, %c0_i32_0 : i32, i32
  }
  func.func @transform_19(%arg0: i32) -> (i32, i32, i32) {
    %c0_i32 = arith.constant 0 : i32
    %c0_i32_0 = arith.constant 0 : i32
    %c0_i32_1 = arith.constant 0 : i32
    return %arg0, %c0_i32, %c0_i32_0 : i32, i32, i32
  }
  func.func @transform_20(%arg0: i32) -> (i32, i32, i32) {
    %c0_i32 = arith.constant 0 : i32
    %c0_i32_0 = arith.constant 0 : i32
    %c0_i32_1 = arith.constant 0 : i32
    return %arg0, %c0_i32, %c0_i32_0 : i32, i32, i32
  }
}

</mosaic_0001>

<llo_original>
// kernel: forward.1
$region0: #{forward.1}
  #allocation0 [shape = 'u32[]', space=smem, size = 0x4, offset = 0x4, fixed_abs, tag = 'smem constant byte address 0x4 - core index']
  #allocation1 [shape = 'u32[144,128]{1,0:T(1,128)}', space=vmem, size = 0x12000, scoped, tag = 'internal scratch']
  %s0 = inlined_call_operand.vmem [shape: f32[2,5,768], index: 0, kind: input, shape index: {}]
  %s1 = inlined_call_operand.vmem [shape: f32[768,32], index: 1, kind: input, shape index: {}]
  %s2 = inlined_call_operand.vmem [shape: f32[5,32], index: 2, kind: input, shape index: {}]
  %s3 = inlined_call_operand.vmem [shape: f32[2,1,32], index: 3, kind: input, shape index: {}]
  %s4 = inlined_call_operand.vmem [shape: f32[2,1,32], index: 4, kind: input, shape index: {}]
  %s5 = inlined_call_operand.vmem [shape: f32[2,32,96], index: 5, kind: input, shape index: {}]
  %s6 = inlined_call_operand.vmem [shape: f32[2,1,96], index: 6, kind: input, shape index: {}]
  %s7 = inlined_call_operand.vmem [shape: f32[2,32,32], index: 7, kind: input, shape index: {}]
  %s8 = inlined_call_operand.vmem [shape: f32[2,1,32], index: 8, kind: input, shape index: {}]
  %s9 = inlined_call_operand.vmem [shape: f32[2,1,32], index: 9, kind: input, shape index: {}]
  %s10 = inlined_call_operand.vmem [shape: f32[2,1,32], index: 10, kind: input, shape index: {}]
  %s11 = inlined_call_operand.vmem [shape: f32[2,32,128], index: 11, kind: input, shape index: {}]
  %s12 = inlined_call_operand.vmem [shape: f32[2,1,128], index: 12, kind: input, shape index: {}]
  %s13 = inlined_call_operand.vmem [shape: f32[2,128,32], index: 13, kind: input, shape index: {}]
  %s14 = inlined_call_operand.vmem [shape: f32[2,1,32], index: 14, kind: input, shape index: {}]
  %s15 = inlined_call_operand.vmem [shape: f32[1,32], index: 15, kind: input, shape index: {}]
  %s16 = inlined_call_operand.vmem [shape: f32[1,32], index: 16, kind: input, shape index: {}]
  %s17 = inlined_call_operand.vmem [shape: f32[32,9], index: 17, kind: input, shape index: {}]
  %s18 = inlined_call_operand.vmem [shape: f32[1,9], index: 18, kind: input, shape index: {}]
  %s19 = inlined_call_operand.hbm [shape: f32[2,1,8], index: 19, kind: output, shape index: {0}]
  %s20 = inlined_call_operand.vmem [shape: f32[2,1,1], index: 20, kind: output, shape index: {1}]
  %21 = xla_tuple %s19, %s20
  %s22 = sld [smem:[#allocation0]]
  $region117: #{forward.1} parent=0
    _
  %s24 = ssub.s32 1, %s22
  %s25 = scalar_select 0, %s24, %s22
  $region1: #{forward.1} parent=0
    #allocation2 [shape = 'u8[1024]{0}', space=vmem, size = 0x400, scoped, tag = 'output window, operand 0']
    #allocation3 [shape = 's32[2]{0}', space=sflag, size = 0x8, scoped, tag = 'scoped memory for forward.1']
    %26 = vsyncpa [#allocation3], 0
    %s27 = scalar_lea.sflag [#allocation3], 1
    %28 = vsyncpa %s27, 0
    loop: start=0, step=1, limit=4
    $region2: #{forward.1} parent=1 // loop_pre_header
      _
    $region3: #{forward.1} parent=1 // loop_header
      %s30 = sphi 0, %s34
      %p31 = scmp.ge.s32.totalorder %s30, 4
      %s40 = sphi 0, %s42
      %s43 = sphi 0, %s40
      %s44 = sphi 0, %s43
      %s60 = sphi 0, %s44
      %s64 = sphi 0, %s64
      %s66 = sphi 0, %s64
      %s67 = sphi 0, %s66
      %s81 = sphi 0, %s67
      %s85 = sphi 0, %s85
      %s87 = sphi 0, %s85
      %s88 = sphi 0, %s87
      %s102 = sphi 0, %s88
      %s106 = sphi 0, %s106
      %s108 = sphi 0, %s106
      %s109 = sphi 0, %s108
      %s123 = sphi 0, %s109
      %s127 = sphi 0, %s127
      %s129 = sphi 0, %s127
      %s130 = sphi 0, %s129
      %s144 = sphi 0, %s130
      %s148 = sphi 0, %s148
      %s150 = sphi 0, %s148
      %s151 = sphi 0, %s150
      %s165 = sphi 0, %s151
      %s169 = sphi 0, %s169
      %s171 = sphi 0, %s169
      %s172 = sphi 0, %s171
      %s186 = sphi 0, %s172
      %s190 = sphi 0, %s190
      %s192 = sphi 0, %s190
      %s193 = sphi 0, %s192
      %s207 = sphi 0, %s193
      %s211 = sphi 0, %s211
      %s213 = sphi 0, %s211
      %s214 = sphi 0, %s213
      %s228 = sphi 0, %s214
      %s232 = sphi 0, %s232
      %s234 = sphi 0, %s232
      %s235 = sphi 0, %s234
      %s249 = sphi 0, %s235
      %s253 = sphi 0, %s253
      %s255 = sphi 0, %s253
      %s256 = sphi 0, %s255
      %s270 = sphi 0, %s256
      %s274 = sphi 0, %s274
      %s276 = sphi 0, %s274
      %s277 = sphi 0, %s276
      %s291 = sphi 0, %s277
      %s295 = sphi 0, %s295
      %s297 = sphi 0, %s295
      %s298 = sphi 0, %s297
      %s312 = sphi 0, %s298
      %s316 = sphi 0, %s316
      %s318 = sphi 0, %s316
      %s319 = sphi 0, %s318
      %s333 = sphi 0, %s319
      %s337 = sphi 0, %s337
      %s339 = sphi 0, %s337
      %s340 = sphi 0, %s339
      %s354 = sphi 0, %s340
      %s358 = sphi 0, %s358
      %s360 = sphi 0, %s358
      %s361 = sphi 0, %s360
      %s375 = sphi 0, %s361
      %s379 = sphi 0, %s379
      %s381 = sphi 0, %s379
      %s382 = sphi 0, %s381
      %s396 = sphi 0, %s382
      %s400 = sphi 0, %s400
      %s402 = sphi 0, %s400
      %s403 = sphi 0, %s402
      %s417 = sphi 0, %s403
      %s421 = sphi 0, %s421
      %s423 = sphi 0, %s421
      %s424 = sphi 0, %s423
      %s438 = sphi 0, %s424
      %s444 = sphi 0, %s446
      %s447 = sphi 0, %s444
      %s448 = sphi 0, %s447
      %s464 = sphi 0, %s448
      %s470 = sphi 0, %s472
      %s473 = sphi 0, %s470
      %s474 = sphi 0, %s473
      %s490 = sphi 0, %s474
    $region4: #{forward.1} parent=1 // loop_header_branch
      %33 = sbr.rel (%p31) target = $region8
    $region5: #{forward.1} parent=1 // loop_body
      %s35 = ssub.s32 %s30, 1
      %s36 = ssub.s32 %s30, 2
      %s37 = sadd.s32 %s30, 1
      %s38 = ssub.s32 %s30, %s37
      %p39 = scmp.eq.s32.totalorder %s38, 0
      %s41 = sadd.s32 %s40, 1
      %s42 = scalar_select %p39, %s40, %s41
      %p45 = pneg %p39
      %p46 = scmp.eq.s32.totalorder %s30, 1
      %p47 = por %p45, %p46
      %p48 = scmp.ne.s32.totalorder %s40, %s43
      %p49 = scmp.eq.s32.totalorder %s30, 0
      %p50 = por %p48, %p49
      %p51 = scmp.ne.s32.totalorder %s40, %s43
      %p52 = scmp.eq.s32.totalorder %s35, 1
      %p53 = por %p51, %p52
      %p54 = scmp.ne.s32.totalorder %s43, %s44
      %p55 = scmp.eq.s32.totalorder %s35, 0
      %p56 = por %p54, %p55
      %p57 = scmp.ne.s32.totalorder %s43, %s44
      %p58 = scmp.eq.s32.totalorder %s36, 1
      %p59 = por %p57, %p58
      %p61 = scmp.ne.s32.totalorder %s44, %s60
      %p62 = scmp.eq.s32.totalorder %s36, 0
      %p63 = por %p61, %p62
      %s65 = sadd.s32 %s64, 1
      %p68 = scmp.eq.s32.totalorder %s30, 1
      %p69 = scmp.ne.s32.totalorder %s64, %s66
      %p70 = scmp.eq.s32.totalorder %s30, 0
      %p71 = por %p69, %p70
      %p72 = scmp.ne.s32.totalorder %s64, %s66
      %p73 = scmp.eq.s32.totalorder %s35, 1
      %p74 = por %p72, %p73
      %p75 = scmp.ne.s32.totalorder %s66, %s67
      %p76 = scmp.eq.s32.totalorder %s35, 0
      %p77 = por %p75, %p76
      %p78 = scmp.ne.s32.totalorder %s66, %s67
      %p79 = scmp.eq.s32.totalorder %s36, 1
      %p80 = por %p78, %p79
      %p82 = scmp.ne.s32.totalorder %s67, %s81
      %p83 = scmp.eq.s32.totalorder %s36, 0
      %p84 = por %p82, %p83
      %s86 = sadd.s32 %s85, 1
      %p89 = scmp.eq.s32.totalorder %s30, 1
      %p90 = scmp.ne.s32.totalorder %s85, %s87
      %p91 = scmp.eq.s32.totalorder %s30, 0
      %p92 = por %p90, %p91
      %p93 = scmp.ne.s32.totalorder %s85, %s87
      %p94 = scmp.eq.s32.totalorder %s35, 1
      %p95 = por %p93, %p94
      %p96 = scmp.ne.s32.totalorder %s87, %s88
      %p97 = scmp.eq.s32.totalorder %s35, 0
      %p98 = por %p96, %p97
      %p99 = scmp.ne.s32.totalorder %s87, %s88
      %p100 = scmp.eq.s32.totalorder %s36, 1
      %p101 = por %p99, %p100
      %p103 = scmp.ne.s32.totalorder %s88, %s102
      %p104 = scmp.eq.s32.totalorder %s36, 0
      %p105 = por %p103, %p104
      %s107 = sadd.s32 %s106, 1
      %p110 = scmp.eq.s32.totalorder %s30, 1
      %p111 = scmp.ne.s32.totalorder %s106, %s108
      %p112 = scmp.eq.s32.totalorder %s30, 0
      %p113 = por %p111, %p112
      %p114 = scmp.ne.s32.totalorder %s106, %s108
      %p115 = scmp.eq.s32.totalorder %s35, 1
      %p116 = por %p114, %p115
      %p117 = scmp.ne.s32.totalorder %s108, %s109
      %p118 = scmp.eq.s32.totalorder %s35, 0
      %p119 = por %p117, %p118
      %p120 = scmp.ne.s32.totalorder %s108, %s109
      %p121 = scmp.eq.s32.totalorder %s36, 1
      %p122 = por %p120, %p121
      %p124 = scmp.ne.s32.totalorder %s109, %s123
      %p125 = scmp.eq.s32.totalorder %s36, 0
      %p126 = por %p124, %p125
      %s128 = sadd.s32 %s127, 1
      %p131 = scmp.eq.s32.totalorder %s30, 1
      %p132 = scmp.ne.s32.totalorder %s127, %s129
      %p133 = scmp.eq.s32.totalorder %s30, 0
      %p134 = por %p132, %p133
      %p135 = scmp.ne.s32.totalorder %s127, %s129
      %p136 = scmp.eq.s32.totalorder %s35, 1
      %p137 = por %p135, %p136
      %p138 = scmp.ne.s32.totalorder %s129, %s130
      %p139 = scmp.eq.s32.totalorder %s35, 0
      %p140 = por %p138, %p139
      %p141 = scmp.ne.s32.totalorder %s129, %s130
      %p142 = scmp.eq.s32.totalorder %s36, 1
      %p143 = por %p141, %p142
      %p145 = scmp.ne.s32.totalorder %s130, %s144
      %p146 = scmp.eq.s32.totalorder %s36, 0
      %p147 = por %p145, %p146
      %s149 = sadd.s32 %s148, 1
      %p152 = scmp.eq.s32.totalorder %s30, 1
      %p153 = scmp.ne.s32.totalorder %s148, %s150
      %p154 = scmp.eq.s32.totalorder %s30, 0
      %p155 = por %p153, %p154
      %p156 = scmp.ne.s32.totalorder %s148, %s150
      %p157 = scmp.eq.s32.totalorder %s35, 1
      %p158 = por %p156, %p157
      %p159 = scmp.ne.s32.totalorder %s150, %s151
      %p160 = scmp.eq.s32.totalorder %s35, 0
      %p161 = por %p159, %p160
      %p162 = scmp.ne.s32.totalorder %s150, %s151
      %p163 = scmp.eq.s32.totalorder %s36, 1
      %p164 = por %p162, %p163
      %p166 = scmp.ne.s32.totalorder %s151, %s165
      %p167 = scmp.eq.s32.totalorder %s36, 0
      %p168 = por %p166, %p167
      %s170 = sadd.s32 %s169, 1
      %p173 = scmp.eq.s32.totalorder %s30, 1
      %p174 = scmp.ne.s32.totalorder %s169, %s171
      %p175 = scmp.eq.s32.totalorder %s30, 0
      %p176 = por %p174, %p175
      %p177 = scmp.ne.s32.totalorder %s169, %s171
      %p178 = scmp.eq.s32.totalorder %s35, 1
      %p179 = por %p177, %p178
      %p180 = scmp.ne.s32.totalorder %s171, %s172
      %p181 = scmp.eq.s32.totalorder %s35, 0
      %p182 = por %p180, %p181
      %p183 = scmp.ne.s32.totalorder %s171, %s172
      %p184 = scmp.eq.s32.totalorder %s36, 1
      %p185 = por %p183, %p184
      %p187 = scmp.ne.s32.totalorder %s172, %s186
      %p188 = scmp.eq.s32.totalorder %s36, 0
      %p189 = por %p187, %p188
      %s191 = sadd.s32 %s190, 1
      %p194 = scmp.eq.s32.totalorder %s30, 1
      %p195 = scmp.ne.s32.totalorder %s190, %s192
      %p196 = scmp.eq.s32.totalorder %s30, 0
      %p197 = por %p195, %p196
      %p198 = scmp.ne.s32.totalorder %s190, %s192
      %p199 = scmp.eq.s32.totalorder %s35, 1
      %p200 = por %p198, %p199
      %p201 = scmp.ne.s32.totalorder %s192, %s193
      %p202 = scmp.eq.s32.totalorder %s35, 0
      %p203 = por %p201, %p202
      %p204 = scmp.ne.s32.totalorder %s192, %s193
      %p205 = scmp.eq.s32.totalorder %s36, 1
      %p206 = por %p204, %p205
      %p208 = scmp.ne.s32.totalorder %s193, %s207
      %p209 = scmp.eq.s32.totalorder %s36, 0
      %p210 = por %p208, %p209
      %s212 = sadd.s32 %s211, 1
      %p215 = scmp.eq.s32.totalorder %s30, 1
      %p216 = scmp.ne.s32.totalorder %s211, %s213
      %p217 = scmp.eq.s32.totalorder %s30, 0
      %p218 = por %p216, %p217
      %p219 = scmp.ne.s32.totalorder %s211, %s213
      %p220 = scmp.eq.s32.totalorder %s35, 1
      %p221 = por %p219, %p220
      %p222 = scmp.ne.s32.totalorder %s213, %s214
      %p223 = scmp.eq.s32.totalorder %s35, 0
      %p224 = por %p222, %p223
      %p225 = scmp.ne.s32.totalorder %s213, %s214
      %p226 = scmp.eq.s32.totalorder %s36, 1
      %p227 = por %p225, %p226
      %p229 = scmp.ne.s32.totalorder %s214, %s228
      %p230 = scmp.eq.s32.totalorder %s36, 0
      %p231 = por %p229, %p230
      %s233 = sadd.s32 %s232, 1
      %p236 = scmp.eq.s32.totalorder %s30, 1
      %p237 = scmp.ne.s32.totalorder %s232, %s234
      %p238 = scmp.eq.s32.totalorder %s30, 0
      %p239 = por %p237, %p238
      %p240 = scmp.ne.s32.totalorder %s232, %s234
      %p241 = scmp.eq.s32.totalorder %s35, 1
      %p242 = por %p240, %p241
      %p243 = scmp.ne.s32.totalorder %s234, %s235
      %p244 = scmp.eq.s32.totalorder %s35, 0
      %p245 = por %p243, %p244
      %p246 = scmp.ne.s32.totalorder %s234, %s235
      %p247 = scmp.eq.s32.totalorder %s36, 1
      %p248 = por %p246, %p247
      %p250 = scmp.ne.s32.totalorder %s235, %s249
      %p251 = scmp.eq.s32.totalorder %s36, 0
      %p252 = por %p250, %p251
      %s254 = sadd.s32 %s253, 1
      %p257 = scmp.eq.s32.totalorder %s30, 1
      %p258 = scmp.ne.s32.totalorder %s253, %s255
      %p259 = scmp.eq.s32.totalorder %s30, 0
      %p260 = por %p258, %p259
      %p261 = scmp.ne.s32.totalorder %s253, %s255
      %p262 = scmp.eq.s32.totalorder %s35, 1
      %p263 = por %p261, %p262
      %p264 = scmp.ne.s32.totalorder %s255, %s256
      %p265 = scmp.eq.s32.totalorder %s35, 0
      %p266 = por %p264, %p265
      %p267 = scmp.ne.s32.totalorder %s255, %s256
      %p268 = scmp.eq.s32.totalorder %s36, 1
      %p269 = por %p267, %p268
      %p271 = scmp.ne.s32.totalorder %s256, %s270
      %p272 = scmp.eq.s32.totalorder %s36, 0
      %p273 = por %p271, %p272
      %s275 = sadd.s32 %s274, 1
      %p278 = scmp.eq.s32.totalorder %s30, 1
      %p279 = scmp.ne.s32.totalorder %s274, %s276
      %p280 = scmp.eq.s32.totalorder %s30, 0
      %p281 = por %p279, %p280
      %p282 = scmp.ne.s32.totalorder %s274, %s276
      %p283 = scmp.eq.s32.totalorder %s35, 1
      %p284 = por %p282, %p283
      %p285 = scmp.ne.s32.totalorder %s276, %s277
      %p286 = scmp.eq.s32.totalorder %s35, 0
      %p287 = por %p285, %p286
      %p288 = scmp.ne.s32.totalorder %s276, %s277
      %p289 = scmp.eq.s32.totalorder %s36, 1
      %p290 = por %p288, %p289
      %p292 = scmp.ne.s32.totalorder %s277, %s291
      %p293 = scmp.eq.s32.totalorder %s36, 0
      %p294 = por %p292, %p293
      %s296 = sadd.s32 %s295, 1
      %p299 = scmp.eq.s32.totalorder %s30, 1
      %p300 = scmp.ne.s32.totalorder %s295, %s297
      %p301 = scmp.eq.s32.totalorder %s30, 0
      %p302 = por %p300, %p301
      %p303 = scmp.ne.s32.totalorder %s295, %s297
      %p304 = scmp.eq.s32.totalorder %s35, 1
      %p305 = por %p303, %p304
      %p306 = scmp.ne.s32.totalorder %s297, %s298
      %p307 = scmp.eq.s32.totalorder %s35, 0
      %p308 = por %p306, %p307
      %p309 = scmp.ne.s32.totalorder %s297, %s298
      %p310 = scmp.eq.s32.totalorder %s36, 1
      %p311 = por %p309, %p310
      %p313 = scmp.ne.s32.totalorder %s298, %s312
      %p314 = scmp.eq.s32.totalorder %s36, 0
      %p315 = por %p313, %p314
      %s317 = sadd.s32 %s316, 1
      %p320 = scmp.eq.s32.totalorder %s30, 1
      %p321 = scmp.ne.s32.totalorder %s316, %s318
      %p322 = scmp.eq.s32.totalorder %s30, 0
      %p323 = por %p321, %p322
      %p324 = scmp.ne.s32.totalorder %s316, %s318
      %p325 = scmp.eq.s32.totalorder %s35, 1
      %p326 = por %p324, %p325
      %p327 = scmp.ne.s32.totalorder %s318, %s319
      %p328 = scmp.eq.s32.totalorder %s35, 0
      %p329 = por %p327, %p328
      %p330 = scmp.ne.s32.totalorder %s318, %s319
      %p331 = scmp.eq.s32.totalorder %s36, 1
      %p332 = por %p330, %p331
      %p334 = scmp.ne.s32.totalorder %s319, %s333
      %p335 = scmp.eq.s32.totalorder %s36, 0
      %p336 = por %p334, %p335
      %s338 = sadd.s32 %s337, 1
      %p341 = scmp.eq.s32.totalorder %s30, 1
      %p342 = scmp.ne.s32.totalorder %s337, %s339
      %p343 = scmp.eq.s32.totalorder %s30, 0
      %p344 = por %p342, %p343
      %p345 = scmp.ne.s32.totalorder %s337, %s339
      %p346 = scmp.eq.s32.totalorder %s35, 1
      %p347 = por %p345, %p346
      %p348 = scmp.ne.s32.totalorder %s339, %s340
      %p349 = scmp.eq.s32.totalorder %s35, 0
      %p350 = por %p348, %p349
      %p351 = scmp.ne.s32.totalorder %s339, %s340
      %p352 = scmp.eq.s32.totalorder %s36, 1
      %p353 = por %p351, %p352
      %p355 = scmp.ne.s32.totalorder %s340, %s354
      %p356 = scmp.eq.s32.totalorder %s36, 0
      %p357 = por %p355, %p356
      %s359 = sadd.s32 %s358, 1
      %p362 = scmp.eq.s32.totalorder %s30, 1
      %p363 = scmp.ne.s32.totalorder %s358, %s360
      %p364 = scmp.eq.s32.totalorder %s30, 0
      %p365 = por %p363, %p364
      %p366 = scmp.ne.s32.totalorder %s358, %s360
      %p367 = scmp.eq.s32.totalorder %s35, 1
      %p368 = por %p366, %p367
      %p369 = scmp.ne.s32.totalorder %s360, %s361
      %p370 = scmp.eq.s32.totalorder %s35, 0
      %p371 = por %p369, %p370
      %p372 = scmp.ne.s32.totalorder %s360, %s361
      %p373 = scmp.eq.s32.totalorder %s36, 1
      %p374 = por %p372, %p373
      %p376 = scmp.ne.s32.totalorder %s361, %s375
      %p377 = scmp.eq.s32.totalorder %s36, 0
      %p378 = por %p376, %p377
      %s380 = sadd.s32 %s379, 1
      %p383 = scmp.eq.s32.totalorder %s30, 1
      %p384 = scmp.ne.s32.totalorder %s379, %s381
      %p385 = scmp.eq.s32.totalorder %s30, 0
      %p386 = por %p384, %p385
      %p387 = scmp.ne.s32.totalorder %s379, %s381
      %p388 = scmp.eq.s32.totalorder %s35, 1
      %p389 = por %p387, %p388
      %p390 = scmp.ne.s32.totalorder %s381, %s382
      %p391 = scmp.eq.s32.totalorder %s35, 0
      %p392 = por %p390, %p391
      %p393 = scmp.ne.s32.totalorder %s381, %s382
      %p394 = scmp.eq.s32.totalorder %s36, 1
      %p395 = por %p393, %p394
      %p397 = scmp.ne.s32.totalorder %s382, %s396
      %p398 = scmp.eq.s32.totalorder %s36, 0
      %p399 = por %p397, %p398
      %s401 = sadd.s32 %s400, 1
      %p404 = scmp.eq.s32.totalorder %s30, 1
      %p405 = scmp.ne.s32.totalorder %s400, %s402
      %p406 = scmp.eq.s32.totalorder %s30, 0
      %p407 = por %p405, %p406
      %p408 = scmp.ne.s32.totalorder %s400, %s402
      %p409 = scmp.eq.s32.totalorder %s35, 1
      %p410 = por %p408, %p409
      %p411 = scmp.ne.s32.totalorder %s402, %s403
      %p412 = scmp.eq.s32.totalorder %s35, 0
      %p413 = por %p411, %p412
      %p414 = scmp.ne.s32.totalorder %s402, %s403
      %p415 = scmp.eq.s32.totalorder %s36, 1
      %p416 = por %p414, %p415
      %p418 = scmp.ne.s32.totalorder %s403, %s417
      %p419 = scmp.eq.s32.totalorder %s36, 0
      %p420 = por %p418, %p419
      %s422 = sadd.s32 %s421, 1
      %p425 = scmp.eq.s32.totalorder %s30, 1
      %p426 = scmp.ne.s32.totalorder %s421, %s423
      %p427 = scmp.eq.s32.totalorder %s30, 0
      %p428 = por %p426, %p427
      %p429 = scmp.ne.s32.totalorder %s421, %s423
      %p430 = scmp.eq.s32.totalorder %s35, 1
      %p431 = por %p429, %p430
      %p432 = scmp.ne.s32.totalorder %s423, %s424
      %p433 = scmp.eq.s32.totalorder %s35, 0
      %p434 = por %p432, %p433
      %p435 = scmp.ne.s32.totalorder %s423, %s424
      %p436 = scmp.eq.s32.totalorder %s36, 1
      %p437 = por %p435, %p436
      %p439 = scmp.ne.s32.totalorder %s424, %s438
      %p440 = scmp.eq.s32.totalorder %s36, 0
      %p441 = por %p439, %p440
      %s442 = ssub.s32 %s30, %s37
      %p443 = scmp.eq.s32.totalorder %s442, 0
      %s445 = sadd.s32 %s444, 1
      %s446 = scalar_select %p443, %s444, %s445
      %p449 = pneg %p443
      %p450 = scmp.eq.s32.totalorder %s30, 1
      %p451 = por %p449, %p450
      %p452 = scmp.ne.s32.totalorder %s444, %s447
      %p453 = scmp.eq.s32.totalorder %s30, 0
      %p454 = por %p452, %p453
      %p455 = scmp.ne.s32.totalorder %s444, %s447
      %p456 = scmp.eq.s32.totalorder %s35, 1
      %p457 = por %p455, %p456
      %p458 = scmp.ne.s32.totalorder %s447, %s448
      %p459 = scmp.eq.s32.totalorder %s35, 0
      %p460 = por %p458, %p459
      %p461 = scmp.ne.s32.totalorder %s447, %s448
      %p462 = scmp.eq.s32.totalorder %s36, 1
      %p463 = por %p461, %p462
      %p465 = scmp.ne.s32.totalorder %s448, %s464
      %p466 = scmp.eq.s32.totalorder %s36, 0
      %p467 = por %p465, %p466
      %s468 = ssub.s32 %s30, %s37
      %p469 = scmp.eq.s32.totalorder %s468, 0
      %s471 = sadd.s32 %s470, 1
      %s472 = scalar_select %p469, %s470, %s471
      %p475 = pneg %p469
      %p476 = scmp.eq.s32.totalorder %s30, 1
      %p477 = por %p475, %p476
      %p478 = scmp.ne.s32.totalorder %s470, %s473
      %p479 = scmp.eq.s32.totalorder %s30, 0
      %p480 = por %p478, %p479
      %p481 = scmp.ne.s32.totalorder %s470, %s473
      %p482 = scmp.eq.s32.totalorder %s35, 1
      %p483 = por %p481, %p482
      %p484 = scmp.ne.s32.totalorder %s473, %s474
      %p485 = scmp.eq.s32.totalorder %s35, 0
      %p486 = por %p484, %p485
      %p487 = scmp.ne.s32.totalorder %s473, %s474
      %p488 = scmp.eq.s32.totalorder %s36, 1
      %p489 = por %p487, %p488
      %p491 = scmp.ne.s32.totalorder %s474, %s490
      %p492 = scmp.eq.s32.totalorder %s36, 0
      %p493 = por %p491, %p492
      %p494 = scmp.le.s32.totalorder 1, %s30
      %p495 = scmp.lt.s32.totalorder %s30, 3
      %p496 = pnand %p494, %p495
      %p497 = pneg %p496
      // Predicated region
      $region9: #{forward.1} parent=5 // pred_check
        _
      $region10: #{forward.1} parent=5 // pred_check_branch
        %499 = sbr.rel (%p496) target = $region12
      $region11: #{forward.1} parent=5 // pred_region
        %s500 = ssub.s32 %s30, 1
        // Predicated region
        $region13: #{forward.1} parent=11 // pred_check
          %p501 = pneg %p77
        $region14: #{forward.1} parent=11 // pred_check_branch
          %503 = sbr.rel (%p501) target = $region16
        $region15: #{forward.1} parent=11 // pred_region
          _
        $region16: #{forward.1} parent=11 // pred_fallthru
          _
        // Predicated region
        $region17: #{forward.1} parent=11 // pred_check
          %p504 = pneg %p98
        $region18: #{forward.1} parent=11 // pred_check_branch
          %506 = sbr.rel (%p504) target = $region20
        $region19: #{forward.1} parent=11 // pred_region
          _
        $region20: #{forward.1} parent=11 // pred_fallthru
          _
        // Predicated region
        $region21: #{forward.1} parent=11 // pred_check
          %p507 = pneg %p119
        $region22: #{forward.1} parent=11 // pred_check_branch
          %509 = sbr.rel (%p507) target = $region24
        $region23: #{forward.1} parent=11 // pred_region
          _
        $region24: #{forward.1} parent=11 // pred_fallthru
          _
        // Predicated region
        $region25: #{forward.1} parent=11 // pred_check
          %p510 = pneg %p140
        $region26: #{forward.1} parent=11 // pred_check_branch
          %512 = sbr.rel (%p510) target = $region28
        $region27: #{forward.1} parent=11 // pred_region
          _
        $region28: #{forward.1} parent=11 // pred_fallthru
          _
        // Predicated region
        $region29: #{forward.1} parent=11 // pred_check
          %p513 = pneg %p161
        $region30: #{forward.1} parent=11 // pred_check_branch
          %515 = sbr.rel (%p513) target = $region32
        $region31: #{forward.1} parent=11 // pred_region
          _
        $region32: #{forward.1} parent=11 // pred_fallthru
          _
        // Predicated region
        $region33: #{forward.1} parent=11 // pred_check
          %p516 = pneg %p182
        $region34: #{forward.1} parent=11 // pred_check_branch
          %518 = sbr.rel (%p516) target = $region36
        $region35: #{forward.1} parent=11 // pred_region
          _
        $region36: #{forward.1} parent=11 // pred_fallthru
          _
        // Predicated region
        $region37: #{forward.1} parent=11 // pred_check
          %p519 = pneg %p203
        $region38: #{forward.1} parent=11 // pred_check_branch
          %521 = sbr.rel (%p519) target = $region40
        $region39: #{forward.1} parent=11 // pred_region
          _
        $region40: #{forward.1} parent=11 // pred_fallthru
          _
        // Predicated region
        $region41: #{forward.1} parent=11 // pred_check
          %p522 = pneg %p224
        $region42: #{forward.1} parent=11 // pred_check_branch
          %524 = sbr.rel (%p522) target = $region44
        $region43: #{forward.1} parent=11 // pred_region
          _
        $region44: #{forward.1} parent=11 // pred_fallthru
          _
        // Predicated region
        $region45: #{forward.1} parent=11 // pred_check
          %p525 = pneg %p245
        $region46: #{forward.1} parent=11 // pred_check_branch
          %527 = sbr.rel (%p525) target = $region48
        $region47: #{forward.1} parent=11 // pred_region
          _
        $region48: #{forward.1} parent=11 // pred_fallthru
          _
        // Predicated region
        $region49: #{forward.1} parent=11 // pred_check
          %p528 = pneg %p266
        $region50: #{forward.1} parent=11 // pred_check_branch
          %530 = sbr.rel (%p528) target = $region52
        $region51: #{forward.1} parent=11 // pred_region
          _
        $region52: #{forward.1} parent=11 // pred_fallthru
          _
        // Predicated region
        $region53: #{forward.1} parent=11 // pred_check
          %p531 = pneg %p287
        $region54: #{forward.1} parent=11 // pred_check_branch
          %533 = sbr.rel (%p531) target = $region56
        $region55: #{forward.1} parent=11 // pred_region
          _
        $region56: #{forward.1} parent=11 // pred_fallthru
          _
        // Predicated region
        $region57: #{forward.1} parent=11 // pred_check
          %p534 = pneg %p308
        $region58: #{forward.1} parent=11 // pred_check_branch
          %536 = sbr.rel (%p534) target = $region60
        $region59: #{forward.1} parent=11 // pred_region
          _
        $region60: #{forward.1} parent=11 // pred_fallthru
          _
        // Predicated region
        $region61: #{forward.1} parent=11 // pred_check
          %p537 = pneg %p329
        $region62: #{forward.1} parent=11 // pred_check_branch
          %539 = sbr.rel (%p537) target = $region64
        $region63: #{forward.1} parent=11 // pred_region
          _
        $region64: #{forward.1} parent=11 // pred_fallthru
          _
        // Predicated region
        $region65: #{forward.1} parent=11 // pred_check
          %p540 = pneg %p350
        $region66: #{forward.1} parent=11 // pred_check_branch
          %542 = sbr.rel (%p540) target = $region68
        $region67: #{forward.1} parent=11 // pred_region
          _
        $region68: #{forward.1} parent=11 // pred_fallthru
          _
        // Predicated region
        $region69: #{forward.1} parent=11 // pred_check
          %p543 = pneg %p371
        $region70: #{forward.1} parent=11 // pred_check_branch
          %545 = sbr.rel (%p543) target = $region72
        $region71: #{forward.1} parent=11 // pred_region
          _
        $region72: #{forward.1} parent=11 // pred_fallthru
          _
        // Predicated region
        $region73: #{forward.1} parent=11 // pred_check
          %p546 = pneg %p392
        $region74: #{forward.1} parent=11 // pred_check_branch
          %548 = sbr.rel (%p546) target = $region76
        $region75: #{forward.1} parent=11 // pred_region
          _
        $region76: #{forward.1} parent=11 // pred_fallthru
          _
        // Predicated region
        $region77: #{forward.1} parent=11 // pred_check
          %p549 = pneg %p413
        $region78: #{forward.1} parent=11 // pred_check_branch
          %551 = sbr.rel (%p549) target = $region80
        $region79: #{forward.1} parent=11 // pred_region
          _
        $region80: #{forward.1} parent=11 // pred_fallthru
          _
        // Predicated region
        $region81: #{forward.1} parent=11 // pred_check
          %p552 = pneg %p434
        $region82: #{forward.1} parent=11 // pred_check_branch
          %554 = sbr.rel (%p552) target = $region84
        $region83: #{forward.1} parent=11 // pred_region
          _
        $region84: #{forward.1} parent=11 // pred_fallthru
          _
      $region12: #{forward.1} parent=5 // pred_fallthru
        _
      %p555 = scmp.lt.s32.totalorder %s30, 2
      // Predicated region
      $region85: #{forward.1} parent=5 // pred_check
        %p556 = pneg %p555
      $region86: #{forward.1} parent=5 // pred_check_branch
        %558 = sbr.rel (%p556) target = $region88
      $region87: #{forward.1} parent=5 // pred_region
        // Predicated region
        $region89: #{forward.1} parent=87 // pred_check
          %p559 = pneg %p50
        $region90: #{forward.1} parent=87 // pred_check_branch
          %561 = sbr.rel (%p559) target = $region92
        $region91: #{forward.1} parent=87 // pred_region
          %p562 = scmp.lt.s32.totalorder %s30, 1
          %s563 = scalar_select %p562, %s30, 1
          %s564 = smul.addr %s563, 6
          %s565 = smul.addr %s564, 8
          %s566 = scalar_lea.vmem %s0, %s565
        $region92: #{forward.1} parent=87 // pred_fallthru
          _
      $region88: #{forward.1} parent=5 // pred_fallthru
        _
      %p567 = scmp.le.s32.totalorder 1, %s30
      %p568 = scmp.lt.s32.totalorder %s30, 3
      %p569 = pnand %p567, %p568
      %p570 = pneg %p569
      // Predicated region
      $region93: #{forward.1} parent=5 // pred_check
        _
      $region94: #{forward.1} parent=5 // pred_check_branch
        %572 = sbr.rel (%p569) target = $region96
      $region95: #{forward.1} parent=5 // pred_region
        %s573 = ssub.s32 %s30, 1
        %p574 = scmp.lt.s32.totalorder %s35, 1
        %s575 = scalar_select %p574, %s35, 1
        %s576 = smul.addr %s575, 6
        %s577 = smul.addr %s576, 8
        %s578 = scalar_lea.vmem %s0, %s577
        %p579 = pneg %p56
        %p580 = pneg %p53
        %p581 = pneg %p77
        %p582 = pneg %p74
        %p583 = pneg %p98
        %p584 = pneg %p95
        %p585 = pneg %p119
        %p586 = pneg %p116
        %p587 = pneg %p140
        %p588 = pneg %p137
        %p589 = pneg %p161
        %p590 = pneg %p158
        %p591 = pneg %p182
        %p592 = pneg %p179
        %p593 = pneg %p203
        %p594 = pneg %p200
        %p595 = pneg %p224
        %p596 = pneg %p221
        %p597 = pneg %p245
        %p598 = pneg %p242
        %p599 = pneg %p266
        %p600 = pneg %p263
        %p601 = pneg %p287
        %p602 = pneg %p284
        %p603 = pneg %p308
        %p604 = pneg %p305
        %p605 = pneg %p329
        %p606 = pneg %p326
        %p607 = pneg %p350
        %p608 = pneg %p347
        %p609 = pneg %p371
        %p610 = pneg %p368
        %p611 = pneg %p392
        %p612 = pneg %p389
        %p613 = pneg %p413
        %p614 = pneg %p410
        %p615 = pneg %p434
        %p616 = pneg %p431
        %p617 = pneg %p460
        %p618 = pneg %p457
        %s619 = sand.u32 %s447, 1
        %s620 = scalar_lea.sflag [#allocation3], %s619
        %s621 = sand.u32 %s447, 1
        %s622 = scalar_lea.vmem [#allocation2], %s621
        %p623 = pneg %p486
        %p624 = pneg %p483
        %p625 = scmp.lt.s32.totalorder %s35, 1
        %s626 = scalar_select %p625, %s35, 1
        %s627 = scalar_lea.vmem %s20, %s626
        %p628 = scmp.lt.s32.totalorder %s35, 1
        %s629 = scalar_select %p628, %s35, 1
        %s630 = smul.addr %s629, 6
        %s631 = smul.addr %s630, 8
        %s632 = scalar_lea.vmem %s0, %s631
        %p633 = scmp.lt.s32.totalorder %s35, 1
        %s634 = scalar_select %p633, %s35, 1
        %s635 = scalar_lea.vmem %s20, %s634
        %v636 = vld [vmem:[%s632] sm:$0x1f]
        %v637 = vld [vmem:[%s632 + $0x8] sm:$0x1f]
        %v638 = vld [vmem:[%s632 + $0x10] sm:$0x1f]
        %v639 = vld [vmem:[%s632 + $0x18] sm:$0x1f]
        %v640 = vld [vmem:[%s632 + $0x20] sm:$0x1f]
        %v641 = vld [vmem:[%s632 + $0x28] sm:$0x1f]
        %v642 = vld [vmem:[%s1] sm:$0xff]
        %v643 = vld [vmem:[%s1 + $0x8] sm:$0xff]
        %v644 = vld [vmem:[%s1 + $0x10] sm:$0xff]
        %v645 = vld [vmem:[%s1 + $0x18] sm:$0xff]
        %v646 = vld [vmem:[%s1 + $0x20] sm:$0xff]
        %v647 = vld [vmem:[%s1 + $0x28] sm:$0xff]
        %v648 = vld [vmem:[%s1 + $0x30] sm:$0xff]
        %v649 = vld [vmem:[%s1 + $0x38] sm:$0xff]
        %v650 = vld [vmem:[%s1 + $0x40] sm:$0xff]
        %v651 = vld [vmem:[%s1 + $0x48] sm:$0xff]
        %v652 = vld [vmem:[%s1 + $0x50] sm:$0xff]
        %v653 = vld [vmem:[%s1 + $0x58] sm:$0xff]
        %v654 = vld [vmem:[%s1 + $0x60] sm:$0xff]
        %v655 = vld [vmem:[%s1 + $0x68] sm:$0xff]
        %v656 = vld [vmem:[%s1 + $0x70] sm:$0xff]
        %v657 = vld [vmem:[%s1 + $0x78] sm:$0xff]
        %v658 = vld [vmem:[%s1 + $0x80] sm:$0xff]
        %v659 = vld [vmem:[%s1 + $0x88] sm:$0xff]
        %v660 = vld [vmem:[%s1 + $0x90] sm:$0xff]
        %v661 = vld [vmem:[%s1 + $0x98] sm:$0xff]
        %v662 = vld [vmem:[%s1 + $0xa0] sm:$0xff]
        %v663 = vld [vmem:[%s1 + $0xa8] sm:$0xff]
        %v664 = vld [vmem:[%s1 + $0xb0] sm:$0xff]
        %v665 = vld [vmem:[%s1 + $0xb8] sm:$0xff]
        %v666 = vld [vmem:[%s1 + $0xc0] sm:$0xff]
        %v667 = vld [vmem:[%s1 + $0xc8] sm:$0xff]
        %v668 = vld [vmem:[%s1 + $0xd0] sm:$0xff]
        %v669 = vld [vmem:[%s1 + $0xd8] sm:$0xff]
        %v670 = vld [vmem:[%s1 + $0xe0] sm:$0xff]
        %v671 = vld [vmem:[%s1 + $0xe8] sm:$0xff]
        %v672 = vld [vmem:[%s1 + $0xf0] sm:$0xff]
        %v673 = vld [vmem:[%s1 + $0xf8] sm:$0xff]
        %v674 = vld [vmem:[%s1 + $0x100] sm:$0xff]
        %v675 = vld [vmem:[%s1 + $0x108] sm:$0xff]
        %v676 = vld [vmem:[%s1 + $0x110] sm:$0xff]
        %v677 = vld [vmem:[%s1 + $0x118] sm:$0xff]
        %v678 = vld [vmem:[%s1 + $0x120] sm:$0xff]
        %v679 = vld [vmem:[%s1 + $0x128] sm:$0xff]
        %v680 = vld [vmem:[%s1 + $0x130] sm:$0xff]
        %v681 = vld [vmem:[%s1 + $0x138] sm:$0xff]
        %v682 = vld [vmem:[%s1 + $0x140] sm:$0xff]
        %v683 = vld [vmem:[%s1 + $0x148] sm:$0xff]
        %v684 = vld [vmem:[%s1 + $0x150] sm:$0xff]
        %v685 = vld [vmem:[%s1 + $0x158] sm:$0xff]
        %v686 = vld [vmem:[%s1 + $0x160] sm:$0xff]
        %v687 = vld [vmem:[%s1 + $0x168] sm:$0xff]
        %v688 = vld [vmem:[%s1 + $0x170] sm:$0xff]
        %v689 = vld [vmem:[%s1 + $0x178] sm:$0xff]
        %v690 = vld [vmem:[%s1 + $0x180] sm:$0xff]
        %v691 = vld [vmem:[%s1 + $0x188] sm:$0xff]
        %v692 = vld [vmem:[%s1 + $0x190] sm:$0xff]
        %v693 = vld [vmem:[%s1 + $0x198] sm:$0xff]
        %v694 = vld [vmem:[%s1 + $0x1a0] sm:$0xff]
        %v695 = vld [vmem:[%s1 + $0x1a8] sm:$0xff]
        %v696 = vld [vmem:[%s1 + $0x1b0] sm:$0xff]
        %v697 = vld [vmem:[%s1 + $0x1b8] sm:$0xff]
        %v698 = vld [vmem:[%s1 + $0x1c0] sm:$0xff]
        %v699 = vld [vmem:[%s1 + $0x1c8] sm:$0xff]
        %v700 = vld [vmem:[%s1 + $0x1d0] sm:$0xff]
        %v701 = vld [vmem:[%s1 + $0x1d8] sm:$0xff]
        %v702 = vld [vmem:[%s1 + $0x1e0] sm:$0xff]
        %v703 = vld [vmem:[%s1 + $0x1e8] sm:$0xff]
        %v704 = vld [vmem:[%s1 + $0x1f0] sm:$0xff]
        %v705 = vld [vmem:[%s1 + $0x1f8] sm:$0xff]
        %v706 = vld [vmem:[%s1 + $0x200] sm:$0xff]
        %v707 = vld [vmem:[%s1 + $0x208] sm:$0xff]
        %v708 = vld [vmem:[%s1 + $0x210] sm:$0xff]
        %v709 = vld [vmem:[%s1 + $0x218] sm:$0xff]
        %v710 = vld [vmem:[%s1 + $0x220] sm:$0xff]
        %v711 = vld [vmem:[%s1 + $0x228] sm:$0xff]
        %v712 = vld [vmem:[%s1 + $0x230] sm:$0xff]
        %v713 = vld [vmem:[%s1 + $0x238] sm:$0xff]
        %v714 = vld [vmem:[%s1 + $0x240] sm:$0xff]
        %v715 = vld [vmem:[%s1 + $0x248] sm:$0xff]
        %v716 = vld [vmem:[%s1 + $0x250] sm:$0xff]
        %v717 = vld [vmem:[%s1 + $0x258] sm:$0xff]
        %v718 = vld [vmem:[%s1 + $0x260] sm:$0xff]
        %v719 = vld [vmem:[%s1 + $0x268] sm:$0xff]
        %v720 = vld [vmem:[%s1 + $0x270] sm:$0xff]
        %v721 = vld [vmem:[%s1 + $0x278] sm:$0xff]
        %v722 = vld [vmem:[%s1 + $0x280] sm:$0xff]
        %v723 = vld [vmem:[%s1 + $0x288] sm:$0xff]
        %v724 = vld [vmem:[%s1 + $0x290] sm:$0xff]
        %v725 = vld [vmem:[%s1 + $0x298] sm:$0xff]
        %v726 = vld [vmem:[%s1 + $0x2a0] sm:$0xff]
        %v727 = vld [vmem:[%s1 + $0x2a8] sm:$0xff]
        %v728 = vld [vmem:[%s1 + $0x2b0] sm:$0xff]
        %v729 = vld [vmem:[%s1 + $0x2b8] sm:$0xff]
        %v730 = vld [vmem:[%s1 + $0x2c0] sm:$0xff]
        %v731 = vld [vmem:[%s1 + $0x2c8] sm:$0xff]
        %v732 = vld [vmem:[%s1 + $0x2d0] sm:$0xff]
        %v733 = vld [vmem:[%s1 + $0x2d8] sm:$0xff]
        %v734 = vld [vmem:[%s1 + $0x2e0] sm:$0xff]
        %v735 = vld [vmem:[%s1 + $0x2e8] sm:$0xff]
        %v736 = vld [vmem:[%s1 + $0x2f0] sm:$0xff]
        %v737 = vld [vmem:[%s1 + $0x2f8] sm:$0xff]
        %v738 = vld [vmem:[%s2] sm:$0x1f]
        %739 = vmatprep.subr.mxu0 0.0
        %740 = vmatpush1.msra.mxu0 %v657
        %741 = vmatprep.subr.mxu0 0.0
        %742 = vmatpush1.msra.mxu0 %v656
        %743 = vmatprep.subr.mxu0 0.0
        %744 = vmatpush1.msra.mxu0 %v655
        %745 = vmatprep.subr.mxu0 0.0
        %746 = vmatpush1.msra.mxu0 %v654
        %747 = vmatprep.subr.mxu0 0.0
        %748 = vmatpush1.msra.mxu0 %v653
        %749 = vmatprep.subr.mxu0 0.0
        %750 = vmatpush1.msra.mxu0 %v652
        %751 = vmatprep.subr.mxu0 0.0
        %752 = vmatpush1.msra.mxu0 %v651
        %753 = vmatprep.subr.mxu0 0.0
        %754 = vmatpush1.msra.mxu0 %v650
        %755 = vmatprep.subr.mxu0 0.0
        %756 = vmatpush1.msra.mxu0 %v649
        %757 = vmatprep.subr.mxu0 0.0
        %758 = vmatpush1.msra.mxu0 %v648
        %759 = vmatprep.subr.mxu0 0.0
        %760 = vmatpush1.msra.mxu0 %v647
        %761 = vmatprep.subr.mxu0 0.0
        %762 = vmatpush1.msra.mxu0 %v646
        %763 = vmatprep.subr.mxu0 0.0
        %764 = vmatpush1.msra.mxu0 %v645
        %765 = vmatprep.subr.mxu0 0.0
        %766 = vmatpush1.msra.mxu0 %v644
        %767 = vmatprep.subr.mxu0 0.0
        %768 = vmatpush1.msra.mxu0 %v643
        %769 = vmatprep.subr.mxu0 0.0
        %770 = vmatpush1.msra.mxu0 %v642
        %771 = vmatprep.subr.mxu0 0.0
        %772 = vmatpush2.msra.mxu0 %v673
        %773 = vmatprep.subr.mxu0 0.0
        %774 = vmatpush2.msra.mxu0 %v672
        %775 = vmatprep.subr.mxu0 0.0
        %776 = vmatpush2.msra.mxu0 %v671
        %777 = vmatprep.subr.mxu0 0.0
        %778 = vmatpush2.msra.mxu0 %v670
        %779 = vmatprep.subr.mxu0 0.0
        %780 = vmatpush2.msra.mxu0 %v669
        %781 = vmatprep.subr.mxu0 0.0
        %782 = vmatpush2.msra.mxu0 %v668
        %783 = vmatprep.subr.mxu0 0.0
        %784 = vmatpush2.msra.mxu0 %v667
        %785 = vmatprep.subr.mxu0 0.0
        %786 = vmatpush2.msra.mxu0 %v666
        %787 = vmatprep.subr.mxu0 0.0
        %788 = vmatpush2.msra.mxu0 %v665
        %789 = vmatprep.subr.mxu0 0.0
        %790 = vmatpush2.msra.mxu0 %v664
        %791 = vmatprep.subr.mxu0 0.0
        %792 = vmatpush2.msra.mxu0 %v663
        %793 = vmatprep.subr.mxu0 0.0
        %794 = vmatpush2.msra.mxu0 %v662
        %795 = vmatprep.subr.mxu0 0.0
        %796 = vmatpush2.msra.mxu0 %v661
        %797 = vmatprep.subr.mxu0 0.0
        %798 = vmatpush2.msra.mxu0 %v660
        %799 = vmatprep.subr.mxu0 0.0
        %800 = vmatpush2.msra.mxu0 %v659
        %801 = vmatprep.subr.mxu0 0.0
        %802 = vmatpush2.msra.mxu0 %v658
        %803 = vmatprep.mubr.f32.mxu0 %v637
        %804 = vmatmul.mubr.f32.gmra.mxu0 %v636
        %v805 = vpop.f32.mrf.mxu0
        %v806 = vadd.f32 %v738, %v805
        %v807 = vpop.f32.mrf.mxu0
        %808 = vdwg.mxu0
        %809 = vmatprep.subr.mxu0 0.0
        %810 = vmatpush1.msra.mxu0 %v689
        %811 = vmatprep.subr.mxu0 0.0
        %812 = vmatpush1.msra.mxu0 %v688
        %813 = vmatprep.subr.mxu0 0.0
        %814 = vmatpush1.msra.mxu0 %v687
        %815 = vmatprep.subr.mxu0 0.0
        %816 = vmatpush1.msra.mxu0 %v686
        %817 = vmatprep.subr.mxu0 0.0
        %818 = vmatpush1.msra.mxu0 %v685
        %819 = vmatprep.subr.mxu0 0.0
        %820 = vmatpush1.msra.mxu0 %v684
        %821 = vmatprep.subr.mxu0 0.0
        %822 = vmatpush1.msra.mxu0 %v683
        %823 = vmatprep.subr.mxu0 0.0
        %824 = vmatpush1.msra.mxu0 %v682
        %825 = vmatprep.subr.mxu0 0.0
        %826 = vmatpush1.msra.mxu0 %v681
        %827 = vmatprep.subr.mxu0 0.0
        %828 = vmatpush1.msra.mxu0 %v680
        %829 = vmatprep.subr.mxu0 0.0
        %830 = vmatpush1.msra.mxu0 %v679
        %831 = vmatprep.subr.mxu0 0.0
        %832 = vmatpush1.msra.mxu0 %v678
        %833 = vmatprep.subr.mxu0 0.0
        %834 = vmatpush1.msra.mxu0 %v677
        %835 = vmatprep.subr.mxu0 0.0
        %836 = vmatpush1.msra.mxu0 %v676
        %837 = vmatprep.subr.mxu0 0.0
        %838 = vmatpush1.msra.mxu0 %v675
        %839 = vmatprep.subr.mxu0 0.0
        %840 = vmatpush1.msra.mxu0 %v674
        %841 = vmatprep.subr.mxu0 0.0
        %842 = vmatpush2.msra.mxu0 %v705
        %843 = vmatprep.subr.mxu0 0.0
        %844 = vmatpush2.msra.mxu0 %v704
        %845 = vmatprep.subr.mxu0 0.0
        %846 = vmatpush2.msra.mxu0 %v703
        %847 = vmatprep.subr.mxu0 0.0
        %848 = vmatpush2.msra.mxu0 %v702
        %849 = vmatprep.subr.mxu0 0.0
        %850 = vmatpush2.msra.mxu0 %v701
        %851 = vmatprep.subr.mxu0 0.0
        %852 = vmatpush2.msra.mxu0 %v700
        %853 = vmatprep.subr.mxu0 0.0
        %854 = vmatpush2.msra.mxu0 %v699
        %855 = vmatprep.subr.mxu0 0.0
        %856 = vmatpush2.msra.mxu0 %v698
        %857 = vmatprep.subr.mxu0 0.0
        %858 = vmatpush2.msra.mxu0 %v697
        %859 = vmatprep.subr.mxu0 0.0
        %860 = vmatpush2.msra.mxu0 %v696
        %861 = vmatprep.subr.mxu0 0.0
        %862 = vmatpush2.msra.mxu0 %v695
        %863 = vmatprep.subr.mxu0 0.0
        %864 = vmatpush2.msra.mxu0 %v694
        %865 = vmatprep.subr.mxu0 0.0
        %866 = vmatpush2.msra.mxu0 %v693
        %867 = vmatprep.subr.mxu0 0.0
        %868 = vmatpush2.msra.mxu0 %v692
        %869 = vmatprep.subr.mxu0 0.0
        %870 = vmatpush2.msra.mxu0 %v691
        %871 = vmatprep.subr.mxu0 0.0
        %872 = vmatpush2.msra.mxu0 %v690
        %873 = vmatprep.mubr.f32.mxu0 %v639
        %874 = vmatmul.mubr.f32.gmra.mxu0 %v638
        %v875 = vpop.f32.mrf.mxu0
        %v876 = vadd.f32 %v806, %v875
        %v877 = vpop.f32.mrf.mxu0
        %878 = vdwg.mxu0
        %879 = vmatprep.subr.mxu0 0.0
        %880 = vmatpush1.msra.mxu0 %v721
        %881 = vmatprep.subr.mxu0 0.0
        %882 = vmatpush1.msra.mxu0 %v720
        %883 = vmatprep.subr.mxu0 0.0
        %884 = vmatpush1.msra.mxu0 %v719
        %885 = vmatprep.subr.mxu0 0.0
        %886 = vmatpush1.msra.mxu0 %v718
        %887 = vmatprep.subr.mxu0 0.0
        %888 = vmatpush1.msra.mxu0 %v717
        %889 = vmatprep.subr.mxu0 0.0
        %890 = vmatpush1.msra.mxu0 %v716
        %891 = vmatprep.subr.mxu0 0.0
        %892 = vmatpush1.msra.mxu0 %v715
        %893 = vmatprep.subr.mxu0 0.0
        %894 = vmatpush1.msra.mxu0 %v714
        %895 = vmatprep.subr.mxu0 0.0
        %896 = vmatpush1.msra.mxu0 %v713
        %897 = vmatprep.subr.mxu0 0.0
        %898 = vmatpush1.msra.mxu0 %v712
        %899 = vmatprep.subr.mxu0 0.0
        %900 = vmatpush1.msra.mxu0 %v711
        %901 = vmatprep.subr.mxu0 0.0
        %902 = vmatpush1.msra.mxu0 %v710
        %903 = vmatprep.subr.mxu0 0.0
        %904 = vmatpush1.msra.mxu0 %v709
        %905 = vmatprep.subr.mxu0 0.0
        %906 = vmatpush1.msra.mxu0 %v708
        %907 = vmatprep.subr.mxu0 0.0
        %908 = vmatpush1.msra.mxu0 %v707
        %909 = vmatprep.subr.mxu0 0.0
        %910 = vmatpush1.msra.mxu0 %v706
        %911 = vmatprep.subr.mxu0 0.0
        %912 = vmatpush2.msra.mxu0 %v737
        %913 = vmatprep.subr.mxu0 0.0
        %914 = vmatpush2.msra.mxu0 %v736
        %915 = vmatprep.subr.mxu0 0.0
        %916 = vmatpush2.msra.mxu0 %v735
        %917 = vmatprep.subr.mxu0 0.0
        %918 = vmatpush2.msra.mxu0 %v734
        %919 = vmatprep.subr.mxu0 0.0
        %920 = vmatpush2.msra.mxu0 %v733
        %921 = vmatprep.subr.mxu0 0.0
        %922 = vmatpush2.msra.mxu0 %v732
        %923 = vmatprep.subr.mxu0 0.0
        %924 = vmatpush2.msra.mxu0 %v731
        %925 = vmatprep.subr.mxu0 0.0
        %926 = vmatpush2.msra.mxu0 %v730
        %927 = vmatprep.subr.mxu0 0.0
        %928 = vmatpush2.msra.mxu0 %v729
        %929 = vmatprep.subr.mxu0 0.0
        %930 = vmatpush2.msra.mxu0 %v728
        %931 = vmatprep.subr.mxu0 0.0
        %932 = vmatpush2.msra.mxu0 %v727
        %933 = vmatprep.subr.mxu0 0.0
        %934 = vmatpush2.msra.mxu0 %v726
        %935 = vmatprep.subr.mxu0 0.0
        %936 = vmatpush2.msra.mxu0 %v725
        %937 = vmatprep.subr.mxu0 0.0
        %938 = vmatpush2.msra.mxu0 %v724
        %939 = vmatprep.subr.mxu0 0.0
        %940 = vmatpush2.msra.mxu0 %v723
        %941 = vmatprep.subr.mxu0 0.0
        %942 = vmatpush2.msra.mxu0 %v722
        %943 = vmatprep.mubr.f32.mxu0 %v641
        %944 = vmatmul.mubr.f32.gmra.mxu0 %v640
        %v945 = vpop.f32.mrf.mxu0
        %v946 = vadd.f32 %v876, %v945
        %v947 = vpop.f32.mrf.mxu0
        %948 = vdwg.mxu0
        %v949 = vld [vmem:[%s3] sm:$0x1]
        %v950 = vld [vmem:[%s4] sm:$0x1]
        %vm951 = vcmask 258048
        %v952 = vsel %vm951, %v946, 0.0
        %953 = vadd.xlane.f32.xlu0 %v952
        %v954 = vpop.xlane.xlu0 %953
        %v955 = vrcp.pop 32.0
        %v956 = vmul.f32 %v954, %v955
        %v957 = vsub.f32 %v946, %v956
        %v958 = vmul.f32 %v957, %v957
        %v959 = vsel %vm951, %v958, 0.0
        %960 = vadd.xlane.f32.xlu0 %v959
        %v961 = vpop.xlane.xlu0 %960
        %v962 = vmul.f32 %v961, %v955
        %v963 = vadd.f32 %v962, 1e-06
        %v964 = vrsqrt.pop %v963
        %v965 = vmul.f32 %v957, %v964
        %v967 = vlaneseq
        %v968 = vshrl.u32 %v967, 7
        %v969 = vsub.s32 0, %v968
        %v970 = vrot.slane %v949, %v969
        %v972 = vmul.f32 %v965, %v970
        %v974 = vlaneseq
        %v975 = vshrl.u32 %v974, 7
        %v976 = vsub.s32 0, %v975
        %v977 = vrot.slane %v950, %v976
        %v979 = vadd.f32 %v972, %v977
        %v980 = vld [vmem:[%s5] sm:$0xff]
        %v981 = vld [vmem:[%s5 + $0x8] sm:$0xff]
        %v982 = vld [vmem:[%s5 + $0x10] sm:$0xff]
        %v983 = vld [vmem:[%s5 + $0x18] sm:$0xff]
        %v984 = vld [vmem:[%s6] sm:$0x1]
        %v986 = vlaneseq
        %v987 = vshrl.u32 %v986, 7
        %v988 = vsub.s32 0, %v987
        %v989 = vrot.slane %v984, %v988
        %vm991 = vcmask 261120
        %v993 = vsel %vm991, %v979, 0
        %995 = vmatprep.subr.mxu0 0.0
        %996 = vmatpush1.msra.mxu0 0.0
        %997 = vmatprep.subr.mxu0 0.0
        %998 = vmatpush1.msra.mxu0 0.0
        %999 = vmatprep.subr.mxu0 0.0
        %1000 = vmatpush1.msra.mxu0 0.0
        %1001 = vmatprep.subr.mxu0 0.0
        %1002 = vmatpush1.msra.mxu0 0.0
        %1003 = vmatprep.subr.mxu0 0.0
        %1004 = vmatpush1.msra.mxu0 0.0
        %1005 = vmatprep.subr.mxu0 0.0
        %1006 = vmatpush1.msra.mxu0 0.0
        %1007 = vmatprep.subr.mxu0 0.0
        %1008 = vmatpush1.msra.mxu0 0.0
        %1009 = vmatprep.subr.mxu0 0.0
        %1010 = vmatpush1.msra.mxu0 0.0
        %1011 = vmatprep.subr.mxu0 0.0
        %1012 = vmatpush1.msra.mxu0 0.0
        %1013 = vmatprep.subr.mxu0 0.0
        %1014 = vmatpush1.msra.mxu0 0.0
        %1015 = vmatprep.subr.mxu0 0.0
        %1016 = vmatpush1.msra.mxu0 0.0
        %1017 = vmatprep.subr.mxu0 0.0
        %1018 = vmatpush1.msra.mxu0 0.0
        %1019 = vmatprep.subr.mxu0 0.0
        %1020 = vmatpush1.msra.mxu0 %v983
        %1021 = vmatprep.subr.mxu0 0.0
        %1022 = vmatpush1.msra.mxu0 %v982
        %1023 = vmatprep.subr.mxu0 0.0
        %1024 = vmatpush1.msra.mxu0 %v981
        %1025 = vmatprep.subr.mxu0 0.0
        %1026 = vmatpush1.msra.mxu0 %v980
        %1027 = vmatprep.subr.mxu0 0.0
        %1028 = vmatpush2.msra.mxu0 0.0
        %1029 = vmatprep.subr.mxu0 0.0
        %1030 = vmatpush2.msra.mxu0 0.0
        %1031 = vmatprep.subr.mxu0 0.0
        %1032 = vmatpush2.msra.mxu0 0.0
        %1033 = vmatprep.subr.mxu0 0.0
        %1034 = vmatpush2.msra.mxu0 0.0
        %1035 = vmatprep.subr.mxu0 0.0
        %1036 = vmatpush2.msra.mxu0 0.0
        %1037 = vmatprep.subr.mxu0 0.0
        %1038 = vmatpush2.msra.mxu0 0.0
        %1039 = vmatprep.subr.mxu0 0.0
        %1040 = vmatpush2.msra.mxu0 0.0
        %1041 = vmatprep.subr.mxu0 0.0
        %1042 = vmatpush2.msra.mxu0 0.0
        %1043 = vmatprep.subr.mxu0 0.0
        %1044 = vmatpush2.msra.mxu0 0.0
        %1045 = vmatprep.subr.mxu0 0.0
        %1046 = vmatpush2.msra.mxu0 0.0
        %1047 = vmatprep.subr.mxu0 0.0
        %1048 = vmatpush2.msra.mxu0 0.0
        %1049 = vmatprep.subr.mxu0 0.0
        %1050 = vmatpush2.msra.mxu0 0.0
        %1051 = vmatprep.subr.mxu0 0.0
        %1052 = vmatpush2.msra.mxu0 0.0
        %1053 = vmatprep.subr.mxu0 0.0
        %1054 = vmatpush2.msra.mxu0 0.0
        %1055 = vmatprep.subr.mxu0 0.0
        %1056 = vmatpush2.msra.mxu0 0.0
        %1057 = vmatprep.subr.mxu0 0.0
        %1058 = vmatpush2.msra.mxu0 0.0
        %1059 = vmatprep.mubr.f32.mxu0 0.0
        %1060 = vmatmul.mubr.f32.gmra.mxu0 %v993
        %v1061 = vpop.f32.mrf.mxu0
        %v1062 = vadd.f32 %v989, %v1061
        %v1063 = vpop.f32.mrf.mxu0
        %1064 = vdwg.mxu0
        %v1065 = vld [vmem:[%s7] sm:$0xff]
        %v1066 = vld [vmem:[%s7 + $0x8] sm:$0xff]
        %v1067 = vld [vmem:[%s7 + $0x10] sm:$0xff]
        %v1068 = vld [vmem:[%s7 + $0x18] sm:$0xff]
        %v1069 = vmul.f32 %v1062, 0.35355338
        %1071 = vrot.lane.b32.xlu0 %v1062, 96
        %v1072 = vpop.permute.xlu0 %1071
        %vm1073 = vcmask 64512
        %v1075 = vsel %vm1073, %v1069, 0
        %v1077 = vsel %vm1073, %v1072, 0
        %1079 = vmatprep.subr.mxu0 0.0
        %1080 = vmatpush1.xpose.msra.mxu0 0.0
        %1081 = vmatprep.subr.mxu0 0.0
        %1082 = vmatpush1.xpose.msra.mxu0 0.0
        %1083 = vmatprep.subr.mxu0 0.0
        %1084 = vmatpush1.xpose.msra.mxu0 0.0
        %1085 = vmatprep.subr.mxu0 0.0
        %1086 = vmatpush1.xpose.msra.mxu0 0.0
        %1087 = vmatprep.subr.mxu0 0.0
        %1088 = vmatpush1.xpose.msra.mxu0 0.0
        %1089 = vmatprep.subr.mxu0 0.0
        %1090 = vmatpush1.xpose.msra.mxu0 0.0
        %1091 = vmatprep.subr.mxu0 0.0
        %1092 = vmatpush1.xpose.msra.mxu0 0.0
        %1093 = vmatprep.subr.mxu0 0.0
        %1094 = vmatpush1.xpose.msra.mxu0 0.0
        %1095 = vmatprep.subr.mxu0 0.0
        %1096 = vmatpush1.xpose.msra.mxu0 0.0
        %1097 = vmatprep.subr.mxu0 0.0
        %1098 = vmatpush1.xpose.msra.mxu0 0.0
        %1099 = vmatprep.subr.mxu0 0.0
        %1100 = vmatpush1.xpose.msra.mxu0 0.0
        %1101 = vmatprep.subr.mxu0 0.0
        %1102 = vmatpush1.xpose.msra.mxu0 0.0
        %1103 = vmatprep.subr.mxu0 0.0
        %1104 = vmatpush1.xpose.msra.mxu0 0.0
        %1105 = vmatprep.subr.mxu0 0.0
        %1106 = vmatpush1.xpose.msra.mxu0 0.0
        %1107 = vmatprep.subr.mxu0 0.0
        %1108 = vmatpush1.xpose.msra.mxu0 0.0
        %1109 = vmatprep.subr.mxu0 0.0
        %1110 = vmatpush1.xpose.msra.mxu0 %v1077
        %1111 = vmatprep.subr.mxu0 0.0
        %1112 = vmatpush2.xpose.msra.mxu0 0.0
        %1113 = vmatprep.subr.mxu0 0.0
        %1114 = vmatpush2.xpose.msra.mxu0 0.0
        %1115 = vmatprep.subr.mxu0 0.0
        %1116 = vmatpush2.xpose.msra.mxu0 0.0
        %1117 = vmatprep.subr.mxu0 0.0
        %1118 = vmatpush2.xpose.msra.mxu0 0.0
        %1119 = vmatprep.subr.mxu0 0.0
        %1120 = vmatpush2.xpose.msra.mxu0 0.0
        %1121 = vmatprep.subr.mxu0 0.0
        %1122 = vmatpush2.xpose.msra.mxu0 0.0
        %1123 = vmatprep.subr.mxu0 0.0
        %1124 = vmatpush2.xpose.msra.mxu0 0.0
        %1125 = vmatprep.subr.mxu0 0.0
        %1126 = vmatpush2.xpose.msra.mxu0 0.0
        %1127 = vmatprep.subr.mxu0 0.0
        %1128 = vmatpush2.xpose.msra.mxu0 0.0
        %1129 = vmatprep.subr.mxu0 0.0
        %1130 = vmatpush2.xpose.msra.mxu0 0.0
        %1131 = vmatprep.subr.mxu0 0.0
        %1132 = vmatpush2.xpose.msra.mxu0 0.0
        %1133 = vmatprep.subr.mxu0 0.0
        %1134 = vmatpush2.xpose.msra.mxu0 0.0
        %1135 = vmatprep.subr.mxu0 0.0
        %1136 = vmatpush2.xpose.msra.mxu0 0.0
        %1137 = vmatprep.subr.mxu0 0.0
        %1138 = vmatpush2.xpose.msra.mxu0 0.0
        %1139 = vmatprep.subr.mxu0 0.0
        %1140 = vmatpush2.xpose.msra.mxu0 0.0
        %1141 = vmatprep.subr.mxu0 0.0
        %1142 = vmatpush2.xpose.msra.mxu0 0.0
        %1143 = vmatprep.mubr.f32.mxu0 0.0
        %1144 = vmatmul.mubr.f32.gmra.mxu0 %v1075
        %v1145 = vpop.f32.mrf.mxu0
        %v1146 = vadd.f32 0.0, %v1145
        %v1147 = vpop.f32.mrf.mxu0
        %1148 = vdwg.mxu0
        %vm1149 = vcmask 36864
        %v1150 = vsel %vm1149, %v1146, -inf
        %1151 = vmax.xlane.f32.xlu0 %v1150
        %v1152 = vpop.xlane.xlu0 %1151
        %v1153 = vsub.f32 %v1146, %v1152
        %v1154 = vmul.f32 %v1153, 1.442695
        %v1155 = vpow.pop %v1154
        %v1156 = vsel %vm1149, %v1155, 0.0
        %1157 = vadd.xlane.f32.xlu0 %v1156
        %v1158 = vpop.xlane.xlu0 %1157
        %v1159 = vrcp.pop %v1158
        %v1160 = vmul.f32 %v1155, %v1159
        %1161 = vrot.lane.b32.xlu0 %v1062, 64
        %v1162 = vpop.permute.xlu0 %1161
        %vm1163 = vcmask 39936
        %v1165 = vsel %vm1163, %v1160, 0
        %vm1167 = vcmask 1044480
        %v1168 = vsel %vm1167, %v1162, 0
        %1170 = vmatprep.subr.mxu0 0.0
        %1171 = vmatpush1.msra.mxu0 0.0
        %1172 = vmatprep.subr.mxu0 0.0
        %1173 = vmatpush1.msra.mxu0 0.0
        %1174 = vmatprep.subr.mxu0 0.0
        %1175 = vmatpush1.msra.mxu0 0.0
        %1176 = vmatprep.subr.mxu0 0.0
        %1177 = vmatpush1.msra.mxu0 0.0
        %1178 = vmatprep.subr.mxu0 0.0
        %1179 = vmatpush1.msra.mxu0 0.0
        %1180 = vmatprep.subr.mxu0 0.0
        %1181 = vmatpush1.msra.mxu0 0.0
        %1182 = vmatprep.subr.mxu0 0.0
        %1183 = vmatpush1.msra.mxu0 0.0
        %1184 = vmatprep.subr.mxu0 0.0
        %1185 = vmatpush1.msra.mxu0 0.0
        %1186 = vmatprep.subr.mxu0 0.0
        %1187 = vmatpush1.msra.mxu0 0.0
        %1188 = vmatprep.subr.mxu0 0.0
        %1189 = vmatpush1.msra.mxu0 0.0
        %1190 = vmatprep.subr.mxu0 0.0
        %1191 = vmatpush1.msra.mxu0 0.0
        %1192 = vmatprep.subr.mxu0 0.0
        %1193 = vmatpush1.msra.mxu0 0.0
        %1194 = vmatprep.subr.mxu0 0.0
        %1195 = vmatpush1.msra.mxu0 0.0
        %1196 = vmatprep.subr.mxu0 0.0
        %1197 = vmatpush1.msra.mxu0 0.0
        %1198 = vmatprep.subr.mxu0 0.0
        %1199 = vmatpush1.msra.mxu0 0.0
        %1200 = vmatprep.subr.mxu0 0.0
        %1201 = vmatpush1.msra.mxu0 %v1168
        %1202 = vmatprep.subr.mxu0 0.0
        %1203 = vmatpush2.msra.mxu0 0.0
        %1204 = vmatprep.subr.mxu0 0.0
        %1205 = vmatpush2.msra.mxu0 0.0
        %1206 = vmatprep.subr.mxu0 0.0
        %1207 = vmatpush2.msra.mxu0 0.0
        %1208 = vmatprep.subr.mxu0 0.0
        %1209 = vmatpush2.msra.mxu0 0.0
        %1210 = vmatprep.subr.mxu0 0.0
        %1211 = vmatpush2.msra.mxu0 0.0
        %1212 = vmatprep.subr.mxu0 0.0
        %1213 = vmatpush2.msra.mxu0 0.0
        %1214 = vmatprep.subr.mxu0 0.0
        %1215 = vmatpush2.msra.mxu0 0.0
        %1216 = vmatprep.subr.mxu0 0.0
        %1217 = vmatpush2.msra.mxu0 0.0
        %1218 = vmatprep.subr.mxu0 0.0
        %1219 = vmatpush2.msra.mxu0 0.0
        %1220 = vmatprep.subr.mxu0 0.0
        %1221 = vmatpush2.msra.mxu0 0.0
        %1222 = vmatprep.subr.mxu0 0.0
        %1223 = vmatpush2.msra.mxu0 0.0
        %1224 = vmatprep.subr.mxu0 0.0
        %1225 = vmatpush2.msra.mxu0 0.0
        %1226 = vmatprep.subr.mxu0 0.0
        %1227 = vmatpush2.msra.mxu0 0.0
        %1228 = vmatprep.subr.mxu0 0.0
        %1229 = vmatpush2.msra.mxu0 0.0
        %1230 = vmatprep.subr.mxu0 0.0
        %1231 = vmatpush2.msra.mxu0 0.0
        %1232 = vmatprep.subr.mxu0 0.0
        %1233 = vmatpush2.msra.mxu0 0.0
        %1234 = vmatprep.mubr.f32.mxu0 0.0
        %1235 = vmatmul.mubr.f32.gmra.mxu0 %v1165
        %v1236 = vpop.f32.mrf.mxu0
        %v1237 = vadd.f32 0.0, %v1236
        %v1238 = vpop.f32.mrf.mxu0
        %1239 = vdwg.mxu0
        %1240 = vrot.lane.b32.xlu0 %v1069, 120
        %v1241 = vpop.permute.xlu0 %1240
        %1242 = vrot.lane.b32.xlu0 %v1062, 88
        %v1243 = vpop.permute.xlu0 %1242
        %v1244 = vsel %vm1073, %v1241, 0
        %v1246 = vsel %vm1073, %v1243, 0
        %1248 = vmatprep.subr.mxu0 0.0
        %1249 = vmatpush1.xpose.msra.mxu0 0.0
        %1250 = vmatprep.subr.mxu0 0.0
        %1251 = vmatpush1.xpose.msra.mxu0 0.0
        %1252 = vmatprep.subr.mxu0 0.0
        %1253 = vmatpush1.xpose.msra.mxu0 0.0
        %1254 = vmatprep.subr.mxu0 0.0
        %1255 = vmatpush1.xpose.msra.mxu0 0.0
        %1256 = vmatprep.subr.mxu0 0.0
        %1257 = vmatpush1.xpose.msra.mxu0 0.0
        %1258 = vmatprep.subr.mxu0 0.0
        %1259 = vmatpush1.xpose.msra.mxu0 0.0
        %1260 = vmatprep.subr.mxu0 0.0
        %1261 = vmatpush1.xpose.msra.mxu0 0.0
        %1262 = vmatprep.subr.mxu0 0.0
        %1263 = vmatpush1.xpose.msra.mxu0 0.0
        %1264 = vmatprep.subr.mxu0 0.0
        %1265 = vmatpush1.xpose.msra.mxu0 0.0
        %1266 = vmatprep.subr.mxu0 0.0
        %1267 = vmatpush1.xpose.msra.mxu0 0.0
        %1268 = vmatprep.subr.mxu0 0.0
        %1269 = vmatpush1.xpose.msra.mxu0 0.0
        %1270 = vmatprep.subr.mxu0 0.0
        %1271 = vmatpush1.xpose.msra.mxu0 0.0
        %1272 = vmatprep.subr.mxu0 0.0
        %1273 = vmatpush1.xpose.msra.mxu0 0.0
        %1274 = vmatprep.subr.mxu0 0.0
        %1275 = vmatpush1.xpose.msra.mxu0 0.0
        %1276 = vmatprep.subr.mxu0 0.0
        %1277 = vmatpush1.xpose.msra.mxu0 0.0
        %1278 = vmatprep.subr.mxu0 0.0
        %1279 = vmatpush1.xpose.msra.mxu0 %v1246
        %1280 = vmatprep.subr.mxu0 0.0
        %1281 = vmatpush2.xpose.msra.mxu0 0.0
        %1282 = vmatprep.subr.mxu0 0.0
        %1283 = vmatpush2.xpose.msra.mxu0 0.0
        %1284 = vmatprep.subr.mxu0 0.0
        %1285 = vmatpush2.xpose.msra.mxu0 0.0
        %1286 = vmatprep.subr.mxu0 0.0
        %1287 = vmatpush2.xpose.msra.mxu0 0.0
        %1288 = vmatprep.subr.mxu0 0.0
        %1289 = vmatpush2.xpose.msra.mxu0 0.0
        %1290 = vmatprep.subr.mxu0 0.0
        %1291 = vmatpush2.xpose.msra.mxu0 0.0
        %1292 = vmatprep.subr.mxu0 0.0
        %1293 = vmatpush2.xpose.msra.mxu0 0.0
        %1294 = vmatprep.subr.mxu0 0.0
        %1295 = vmatpush2.xpose.msra.mxu0 0.0
        %1296 = vmatprep.subr.mxu0 0.0
        %1297 = vmatpush2.xpose.msra.mxu0 0.0
        %1298 = vmatprep.subr.mxu0 0.0
        %1299 = vmatpush2.xpose.msra.mxu0 0.0
        %1300 = vmatprep.subr.mxu0 0.0
        %1301 = vmatpush2.xpose.msra.mxu0 0.0
        %1302 = vmatprep.subr.mxu0 0.0
        %1303 = vmatpush2.xpose.msra.mxu0 0.0
        %1304 = vmatprep.subr.mxu0 0.0
        %1305 = vmatpush2.xpose.msra.mxu0 0.0
        %1306 = vmatprep.subr.mxu0 0.0
        %1307 = vmatpush2.xpose.msra.mxu0 0.0
        %1308 = vmatprep.subr.mxu0 0.0
        %1309 = vmatpush2.xpose.msra.mxu0 0.0
        %1310 = vmatprep.subr.mxu0 0.0
        %1311 = vmatpush2.xpose.msra.mxu0 0.0
        %1312 = vmatprep.mubr.f32.mxu0 0.0
        %1313 = vmatmul.mubr.f32.gmra.mxu0 %v1244
        %v1314 = vpop.f32.mrf.mxu0
        %v1315 = vadd.f32 0.0, %v1314
        %v1316 = vpop.f32.mrf.mxu0
        %1317 = vdwg.mxu0
        %v1318 = vsel %vm1149, %v1315, -inf
        %1319 = vmax.xlane.f32.xlu0 %v1318
        %v1320 = vpop.xlane.xlu0 %1319
        %v1321 = vsub.f32 %v1315, %v1320
        %v1322 = vmul.f32 %v1321, 1.442695
        %v1323 = vpow.pop %v1322
        %v1324 = vsel %vm1149, %v1323, 0.0
        %1325 = vadd.xlane.f32.xlu0 %v1324
        %v1326 = vpop.xlane.xlu0 %1325
        %v1327 = vrcp.pop %v1326
        %v1328 = vmul.f32 %v1323, %v1327
        %1329 = vrot.lane.b32.xlu0 %v1062, 56
        %v1330 = vpop.permute.xlu0 %1329
        %v1332 = vsel %vm1163, %v1328, 0
        %v1334 = vsel %vm1167, %v1330, 0
        %1336 = vmatprep.subr.mxu0 0.0
        %1337 = vmatpush1.msra.mxu0 0.0
        %1338 = vmatprep.subr.mxu0 0.0
        %1339 = vmatpush1.msra.mxu0 0.0
        %1340 = vmatprep.subr.mxu0 0.0
        %1341 = vmatpush1.msra.mxu0 0.0
        %1342 = vmatprep.subr.mxu0 0.0
        %1343 = vmatpush1.msra.mxu0 0.0
        %1344 = vmatprep.subr.mxu0 0.0
        %1345 = vmatpush1.msra.mxu0 0.0
        %1346 = vmatprep.subr.mxu0 0.0
        %1347 = vmatpush1.msra.mxu0 0.0
        %1348 = vmatprep.subr.mxu0 0.0
        %1349 = vmatpush1.msra.mxu0 0.0
        %1350 = vmatprep.subr.mxu0 0.0
        %1351 = vmatpush1.msra.mxu0 0.0
        %1352 = vmatprep.subr.mxu0 0.0
        %1353 = vmatpush1.msra.mxu0 0.0
        %1354 = vmatprep.subr.mxu0 0.0
        %1355 = vmatpush1.msra.mxu0 0.0
        %1356 = vmatprep.subr.mxu0 0.0
        %1357 = vmatpush1.msra.mxu0 0.0
        %1358 = vmatprep.subr.mxu0 0.0
        %1359 = vmatpush1.msra.mxu0 0.0
        %1360 = vmatprep.subr.mxu0 0.0
        %1361 = vmatpush1.msra.mxu0 0.0
        %1362 = vmatprep.subr.mxu0 0.0
        %1363 = vmatpush1.msra.mxu0 0.0
        %1364 = vmatprep.subr.mxu0 0.0
        %1365 = vmatpush1.msra.mxu0 0.0
        %1366 = vmatprep.subr.mxu0 0.0
        %1367 = vmatpush1.msra.mxu0 %v1334
        %1368 = vmatprep.subr.mxu0 0.0
        %1369 = vmatpush2.msra.mxu0 0.0
        %1370 = vmatprep.subr.mxu0 0.0
        %1371 = vmatpush2.msra.mxu0 0.0
        %1372 = vmatprep.subr.mxu0 0.0
        %1373 = vmatpush2.msra.mxu0 0.0
        %1374 = vmatprep.subr.mxu0 0.0
        %1375 = vmatpush2.msra.mxu0 0.0
        %1376 = vmatprep.subr.mxu0 0.0
        %1377 = vmatpush2.msra.mxu0 0.0
        %1378 = vmatprep.subr.mxu0 0.0
        %1379 = vmatpush2.msra.mxu0 0.0
        %1380 = vmatprep.subr.mxu0 0.0
        %1381 = vmatpush2.msra.mxu0 0.0
        %1382 = vmatprep.subr.mxu0 0.0
        %1383 = vmatpush2.msra.mxu0 0.0
        %1384 = vmatprep.subr.mxu0 0.0
        %1385 = vmatpush2.msra.mxu0 0.0
        %1386 = vmatprep.subr.mxu0 0.0
        %1387 = vmatpush2.msra.mxu0 0.0
        %1388 = vmatprep.subr.mxu0 0.0
        %1389 = vmatpush2.msra.mxu0 0.0
        %1390 = vmatprep.subr.mxu0 0.0
        %1391 = vmatpush2.msra.mxu0 0.0
        %1392 = vmatprep.subr.mxu0 0.0
        %1393 = vmatpush2.msra.mxu0 0.0
        %1394 = vmatprep.subr.mxu0 0.0
        %1395 = vmatpush2.msra.mxu0 0.0
        %1396 = vmatprep.subr.mxu0 0.0
        %1397 = vmatpush2.msra.mxu0 0.0
        %1398 = vmatprep.subr.mxu0 0.0
        %1399 = vmatpush2.msra.mxu0 0.0
        %1400 = vmatprep.mubr.f32.mxu0 0.0
        %1401 = vmatmul.mubr.f32.gmra.mxu0 %v1332
        %v1402 = vpop.f32.mrf.mxu0
        %v1403 = vadd.f32 0.0, %v1402
        %v1404 = vpop.f32.mrf.mxu0
        %1405 = vdwg.mxu0
        %v1407 = vsel %vm1073, %v1403, 0
        %1409 = vmatprep.subr.mxu0 0.0
        %1410 = vmatpush1.msra.mxu0 0.0
        %1411 = vmatprep.subr.mxu0 0.0
        %1412 = vmatpush1.msra.mxu0 0.0
        %1413 = vmatprep.subr.mxu0 0.0
        %1414 = vmatpush1.msra.mxu0 0.0
        %1415 = vmatprep.subr.mxu0 0.0
        %1416 = vmatpush1.msra.mxu0 0.0
        %1417 = vmatprep.subr.mxu0 0.0
        %1418 = vmatpush1.msra.mxu0 0.0
        %1419 = vmatprep.subr.mxu0 0.0
        %1420 = vmatpush1.msra.mxu0 0.0
        %1421 = vmatprep.subr.mxu0 0.0
        %1422 = vmatpush1.msra.mxu0 0.0
        %1423 = vmatprep.subr.mxu0 0.0
        %1424 = vmatpush1.msra.mxu0 0.0
        %1425 = vmatprep.subr.mxu0 0.0
        %1426 = vmatpush1.msra.mxu0 0.0
        %1427 = vmatprep.subr.mxu0 0.0
        %1428 = vmatpush1.msra.mxu0 0.0
        %1429 = vmatprep.subr.mxu0 0.0
        %1430 = vmatpush1.msra.mxu0 0.0
        %1431 = vmatprep.subr.mxu0 0.0
        %1432 = vmatpush1.msra.mxu0 0.0
        %1433 = vmatprep.subr.mxu0 0.0
        %1434 = vmatpush1.msra.mxu0 0.0
        %1435 = vmatprep.subr.mxu0 0.0
        %1436 = vmatpush1.msra.mxu0 0.0
        %1437 = vmatprep.subr.mxu0 0.0
        %1438 = vmatpush1.msra.mxu0 0.0
        %1439 = vmatprep.subr.mxu0 0.0
        %1440 = vmatpush1.msra.mxu0 %v1066
        %1441 = vmatprep.subr.mxu0 0.0
        %1442 = vmatpush2.msra.mxu0 0.0
        %1443 = vmatprep.subr.mxu0 0.0
        %1444 = vmatpush2.msra.mxu0 0.0
        %1445 = vmatprep.subr.mxu0 0.0
        %1446 = vmatpush2.msra.mxu0 0.0
        %1447 = vmatprep.subr.mxu0 0.0
        %1448 = vmatpush2.msra.mxu0 0.0
        %1449 = vmatprep.subr.mxu0 0.0
        %1450 = vmatpush2.msra.mxu0 0.0
        %1451 = vmatprep.subr.mxu0 0.0
        %1452 = vmatpush2.msra.mxu0 0.0
        %1453 = vmatprep.subr.mxu0 0.0
        %1454 = vmatpush2.msra.mxu0 0.0
        %1455 = vmatprep.subr.mxu0 0.0
        %1456 = vmatpush2.msra.mxu0 0.0
        %1457 = vmatprep.subr.mxu0 0.0
        %1458 = vmatpush2.msra.mxu0 0.0
        %1459 = vmatprep.subr.mxu0 0.0
        %1460 = vmatpush2.msra.mxu0 0.0
        %1461 = vmatprep.subr.mxu0 0.0
        %1462 = vmatpush2.msra.mxu0 0.0
        %1463 = vmatprep.subr.mxu0 0.0
        %1464 = vmatpush2.msra.mxu0 0.0
        %1465 = vmatprep.subr.mxu0 0.0
        %1466 = vmatpush2.msra.mxu0 0.0
        %1467 = vmatprep.subr.mxu0 0.0
        %1468 = vmatpush2.msra.mxu0 0.0
        %1469 = vmatprep.subr.mxu0 0.0
        %1470 = vmatpush2.msra.mxu0 0.0
        %1471 = vmatprep.subr.mxu0 0.0
        %1472 = vmatpush2.msra.mxu0 0.0
        %1473 = vmatprep.mubr.f32.mxu0 0.0
        %1474 = vmatmul.mubr.f32.gmra.mxu0 %v1407
        %v1475 = vpop.f32.mrf.mxu0
        %v1476 = vadd.f32 0.0, %v1475
        %v1477 = vpop.f32.mrf.mxu0
        %1478 = vdwg.mxu0
        %v1480 = vsel %vm1073, %v1237, 0
        %1482 = vmatprep.subr.mxu0 0.0
        %1483 = vmatpush1.msra.mxu0 0.0
        %1484 = vmatprep.subr.mxu0 0.0
        %1485 = vmatpush1.msra.mxu0 0.0
        %1486 = vmatprep.subr.mxu0 0.0
        %1487 = vmatpush1.msra.mxu0 0.0
        %1488 = vmatprep.subr.mxu0 0.0
        %1489 = vmatpush1.msra.mxu0 0.0
        %1490 = vmatprep.subr.mxu0 0.0
        %1491 = vmatpush1.msra.mxu0 0.0
        %1492 = vmatprep.subr.mxu0 0.0
        %1493 = vmatpush1.msra.mxu0 0.0
        %1494 = vmatprep.subr.mxu0 0.0
        %1495 = vmatpush1.msra.mxu0 0.0
        %1496 = vmatprep.subr.mxu0 0.0
        %1497 = vmatpush1.msra.mxu0 0.0
        %1498 = vmatprep.subr.mxu0 0.0
        %1499 = vmatpush1.msra.mxu0 0.0
        %1500 = vmatprep.subr.mxu0 0.0
        %1501 = vmatpush1.msra.mxu0 0.0
        %1502 = vmatprep.subr.mxu0 0.0
        %1503 = vmatpush1.msra.mxu0 0.0
        %1504 = vmatprep.subr.mxu0 0.0
        %1505 = vmatpush1.msra.mxu0 0.0
        %1506 = vmatprep.subr.mxu0 0.0
        %1507 = vmatpush1.msra.mxu0 0.0
        %1508 = vmatprep.subr.mxu0 0.0
        %1509 = vmatpush1.msra.mxu0 0.0
        %1510 = vmatprep.subr.mxu0 0.0
        %1511 = vmatpush1.msra.mxu0 0.0
        %1512 = vmatprep.subr.mxu0 0.0
        %1513 = vmatpush1.msra.mxu0 %v1065
        %1514 = vmatprep.subr.mxu0 0.0
        %1515 = vmatpush2.msra.mxu0 0.0
        %1516 = vmatprep.subr.mxu0 0.0
        %1517 = vmatpush2.msra.mxu0 0.0
        %1518 = vmatprep.subr.mxu0 0.0
        %1519 = vmatpush2.msra.mxu0 0.0
        %1520 = vmatprep.subr.mxu0 0.0
        %1521 = vmatpush2.msra.mxu0 0.0
        %1522 = vmatprep.subr.mxu0 0.0
        %1523 = vmatpush2.msra.mxu0 0.0
        %1524 = vmatprep.subr.mxu0 0.0
        %1525 = vmatpush2.msra.mxu0 0.0
        %1526 = vmatprep.subr.mxu0 0.0
        %1527 = vmatpush2.msra.mxu0 0.0
        %1528 = vmatprep.subr.mxu0 0.0
        %1529 = vmatpush2.msra.mxu0 0.0
        %1530 = vmatprep.subr.mxu0 0.0
        %1531 = vmatpush2.msra.mxu0 0.0
        %1532 = vmatprep.subr.mxu0 0.0
        %1533 = vmatpush2.msra.mxu0 0.0
        %1534 = vmatprep.subr.mxu0 0.0
        %1535 = vmatpush2.msra.mxu0 0.0
        %1536 = vmatprep.subr.mxu0 0.0
        %1537 = vmatpush2.msra.mxu0 0.0
        %1538 = vmatprep.subr.mxu0 0.0
        %1539 = vmatpush2.msra.mxu0 0.0
        %1540 = vmatprep.subr.mxu0 0.0
        %1541 = vmatpush2.msra.mxu0 0.0
        %1542 = vmatprep.subr.mxu0 0.0
        %1543 = vmatpush2.msra.mxu0 0.0
        %1544 = vmatprep.subr.mxu0 0.0
        %1545 = vmatpush2.msra.mxu0 0.0
        %1546 = vmatprep.mubr.f32.mxu0 0.0
        %1547 = vmatmul.mubr.f32.gmra.mxu0 %v1480
        %v1548 = vpop.f32.mrf.mxu0
        %v1549 = vadd.f32 %v1476, %v1548
        %v1550 = vpop.f32.mrf.mxu0
        %1551 = vdwg.mxu0
        %1552 = vrot.lane.b32.xlu0 %v1069, 112
        %v1553 = vpop.permute.xlu0 %1552
        %1554 = vrot.lane.b32.xlu0 %v1062, 80
        %v1555 = vpop.permute.xlu0 %1554
        %v1556 = vsel %vm1073, %v1553, 0
        %v1558 = vsel %vm1073, %v1555, 0
        %1560 = vmatprep.subr.mxu0 0.0
        %1561 = vmatpush1.xpose.msra.mxu0 0.0
        %1562 = vmatprep.subr.mxu0 0.0
        %1563 = vmatpush1.xpose.msra.mxu0 0.0
        %1564 = vmatprep.subr.mxu0 0.0
        %1565 = vmatpush1.xpose.msra.mxu0 0.0
        %1566 = vmatprep.subr.mxu0 0.0
        %1567 = vmatpush1.xpose.msra.mxu0 0.0
        %1568 = vmatprep.subr.mxu0 0.0
        %1569 = vmatpush1.xpose.msra.mxu0 0.0
        %1570 = vmatprep.subr.mxu0 0.0
        %1571 = vmatpush1.xpose.msra.mxu0 0.0
        %1572 = vmatprep.subr.mxu0 0.0
        %1573 = vmatpush1.xpose.msra.mxu0 0.0
        %1574 = vmatprep.subr.mxu0 0.0
        %1575 = vmatpush1.xpose.msra.mxu0 0.0
        %1576 = vmatprep.subr.mxu0 0.0
        %1577 = vmatpush1.xpose.msra.mxu0 0.0
        %1578 = vmatprep.subr.mxu0 0.0
        %1579 = vmatpush1.xpose.msra.mxu0 0.0
        %1580 = vmatprep.subr.mxu0 0.0
        %1581 = vmatpush1.xpose.msra.mxu0 0.0
        %1582 = vmatprep.subr.mxu0 0.0
        %1583 = vmatpush1.xpose.msra.mxu0 0.0
        %1584 = vmatprep.subr.mxu0 0.0
        %1585 = vmatpush1.xpose.msra.mxu0 0.0
        %1586 = vmatprep.subr.mxu0 0.0
        %1587 = vmatpush1.xpose.msra.mxu0 0.0
        %1588 = vmatprep.subr.mxu0 0.0
        %1589 = vmatpush1.xpose.msra.mxu0 0.0
        %1590 = vmatprep.subr.mxu0 0.0
        %1591 = vmatpush1.xpose.msra.mxu0 %v1558
        %1592 = vmatprep.subr.mxu0 0.0
        %1593 = vmatpush2.xpose.msra.mxu0 0.0
        %1594 = vmatprep.subr.mxu0 0.0
        %1595 = vmatpush2.xpose.msra.mxu0 0.0
        %1596 = vmatprep.subr.mxu0 0.0
        %1597 = vmatpush2.xpose.msra.mxu0 0.0
        %1598 = vmatprep.subr.mxu0 0.0
        %1599 = vmatpush2.xpose.msra.mxu0 0.0
        %1600 = vmatprep.subr.mxu0 0.0
        %1601 = vmatpush2.xpose.msra.mxu0 0.0
        %1602 = vmatprep.subr.mxu0 0.0
        %1603 = vmatpush2.xpose.msra.mxu0 0.0
        %1604 = vmatprep.subr.mxu0 0.0
        %1605 = vmatpush2.xpose.msra.mxu0 0.0
        %1606 = vmatprep.subr.mxu0 0.0
        %1607 = vmatpush2.xpose.msra.mxu0 0.0
        %1608 = vmatprep.subr.mxu0 0.0
        %1609 = vmatpush2.xpose.msra.mxu0 0.0
        %1610 = vmatprep.subr.mxu0 0.0
        %1611 = vmatpush2.xpose.msra.mxu0 0.0
        %1612 = vmatprep.subr.mxu0 0.0
        %1613 = vmatpush2.xpose.msra.mxu0 0.0
        %1614 = vmatprep.subr.mxu0 0.0
        %1615 = vmatpush2.xpose.msra.mxu0 0.0
        %1616 = vmatprep.subr.mxu0 0.0
        %1617 = vmatpush2.xpose.msra.mxu0 0.0
        %1618 = vmatprep.subr.mxu0 0.0
        %1619 = vmatpush2.xpose.msra.mxu0 0.0
        %1620 = vmatprep.subr.mxu0 0.0
        %1621 = vmatpush2.xpose.msra.mxu0 0.0
        %1622 = vmatprep.subr.mxu0 0.0
        %1623 = vmatpush2.xpose.msra.mxu0 0.0
        %1624 = vmatprep.mubr.f32.mxu0 0.0
        %1625 = vmatmul.mubr.f32.gmra.mxu0 %v1556
        %v1626 = vpop.f32.mrf.mxu0
        %v1627 = vadd.f32 0.0, %v1626
        %v1628 = vpop.f32.mrf.mxu0
        %1629 = vdwg.mxu0
        %v1630 = vsel %vm1149, %v1627, -inf
        %1631 = vmax.xlane.f32.xlu0 %v1630
        %v1632 = vpop.xlane.xlu0 %1631
        %v1633 = vsub.f32 %v1627, %v1632
        %v1634 = vmul.f32 %v1633, 1.442695
        %v1635 = vpow.pop %v1634
        %v1636 = vsel %vm1149, %v1635, 0.0
        %1637 = vadd.xlane.f32.xlu0 %v1636
        %v1638 = vpop.xlane.xlu0 %1637
        %v1639 = vrcp.pop %v1638
        %v1640 = vmul.f32 %v1635, %v1639
        %1641 = vrot.lane.b32.xlu0 %v1062, 48
        %v1642 = vpop.permute.xlu0 %1641
        %v1644 = vsel %vm1163, %v1640, 0
        %v1646 = vsel %vm1167, %v1642, 0
        %1648 = vmatprep.subr.mxu0 0.0
        %1649 = vmatpush1.msra.mxu0 0.0
        %1650 = vmatprep.subr.mxu0 0.0
        %1651 = vmatpush1.msra.mxu0 0.0
        %1652 = vmatprep.subr.mxu0 0.0
        %1653 = vmatpush1.msra.mxu0 0.0
        %1654 = vmatprep.subr.mxu0 0.0
        %1655 = vmatpush1.msra.mxu0 0.0
        %1656 = vmatprep.subr.mxu0 0.0
        %1657 = vmatpush1.msra.mxu0 0.0
        %1658 = vmatprep.subr.mxu0 0.0
        %1659 = vmatpush1.msra.mxu0 0.0
        %1660 = vmatprep.subr.mxu0 0.0
        %1661 = vmatpush1.msra.mxu0 0.0
        %1662 = vmatprep.subr.mxu0 0.0
        %1663 = vmatpush1.msra.mxu0 0.0
        %1664 = vmatprep.subr.mxu0 0.0
        %1665 = vmatpush1.msra.mxu0 0.0
        %1666 = vmatprep.subr.mxu0 0.0
        %1667 = vmatpush1.msra.mxu0 0.0
        %1668 = vmatprep.subr.mxu0 0.0
        %1669 = vmatpush1.msra.mxu0 0.0
        %1670 = vmatprep.subr.mxu0 0.0
        %1671 = vmatpush1.msra.mxu0 0.0
        %1672 = vmatprep.subr.mxu0 0.0
        %1673 = vmatpush1.msra.mxu0 0.0
        %1674 = vmatprep.subr.mxu0 0.0
        %1675 = vmatpush1.msra.mxu0 0.0
        %1676 = vmatprep.subr.mxu0 0.0
        %1677 = vmatpush1.msra.mxu0 0.0
        %1678 = vmatprep.subr.mxu0 0.0
        %1679 = vmatpush1.msra.mxu0 %v1646
        %1680 = vmatprep.subr.mxu0 0.0
        %1681 = vmatpush2.msra.mxu0 0.0
        %1682 = vmatprep.subr.mxu0 0.0
        %1683 = vmatpush2.msra.mxu0 0.0
        %1684 = vmatprep.subr.mxu0 0.0
        %1685 = vmatpush2.msra.mxu0 0.0
        %1686 = vmatprep.subr.mxu0 0.0
        %1687 = vmatpush2.msra.mxu0 0.0
        %1688 = vmatprep.subr.mxu0 0.0
        %1689 = vmatpush2.msra.mxu0 0.0
        %1690 = vmatprep.subr.mxu0 0.0
        %1691 = vmatpush2.msra.mxu0 0.0
        %1692 = vmatprep.subr.mxu0 0.0
        %1693 = vmatpush2.msra.mxu0 0.0
        %1694 = vmatprep.subr.mxu0 0.0
        %1695 = vmatpush2.msra.mxu0 0.0
        %1696 = vmatprep.subr.mxu0 0.0
        %1697 = vmatpush2.msra.mxu0 0.0
        %1698 = vmatprep.subr.mxu0 0.0
        %1699 = vmatpush2.msra.mxu0 0.0
        %1700 = vmatprep.subr.mxu0 0.0
        %1701 = vmatpush2.msra.mxu0 0.0
        %1702 = vmatprep.subr.mxu0 0.0
        %1703 = vmatpush2.msra.mxu0 0.0
        %1704 = vmatprep.subr.mxu0 0.0
        %1705 = vmatpush2.msra.mxu0 0.0
        %1706 = vmatprep.subr.mxu0 0.0
        %1707 = vmatpush2.msra.mxu0 0.0
        %1708 = vmatprep.subr.mxu0 0.0
        %1709 = vmatpush2.msra.mxu0 0.0
        %1710 = vmatprep.subr.mxu0 0.0
        %1711 = vmatpush2.msra.mxu0 0.0
        %1712 = vmatprep.mubr.f32.mxu0 0.0
        %1713 = vmatmul.mubr.f32.gmra.mxu0 %v1644
        %v1714 = vpop.f32.mrf.mxu0
        %v1715 = vadd.f32 0.0, %v1714
        %v1716 = vpop.f32.mrf.mxu0
        %1717 = vdwg.mxu0
        %v1719 = vsel %vm1073, %v1715, 0
        %1721 = vmatprep.subr.mxu0 0.0
        %1722 = vmatpush1.msra.mxu0 0.0
        %1723 = vmatprep.subr.mxu0 0.0
        %1724 = vmatpush1.msra.mxu0 0.0
        %1725 = vmatprep.subr.mxu0 0.0
        %1726 = vmatpush1.msra.mxu0 0.0
        %1727 = vmatprep.subr.mxu0 0.0
        %1728 = vmatpush1.msra.mxu0 0.0
        %1729 = vmatprep.subr.mxu0 0.0
        %1730 = vmatpush1.msra.mxu0 0.0
        %1731 = vmatprep.subr.mxu0 0.0
        %1732 = vmatpush1.msra.mxu0 0.0
        %1733 = vmatprep.subr.mxu0 0.0
        %1734 = vmatpush1.msra.mxu0 0.0
        %1735 = vmatprep.subr.mxu0 0.0
        %1736 = vmatpush1.msra.mxu0 0.0
        %1737 = vmatprep.subr.mxu0 0.0
        %1738 = vmatpush1.msra.mxu0 0.0
        %1739 = vmatprep.subr.mxu0 0.0
        %1740 = vmatpush1.msra.mxu0 0.0
        %1741 = vmatprep.subr.mxu0 0.0
        %1742 = vmatpush1.msra.mxu0 0.0
        %1743 = vmatprep.subr.mxu0 0.0
        %1744 = vmatpush1.msra.mxu0 0.0
        %1745 = vmatprep.subr.mxu0 0.0
        %1746 = vmatpush1.msra.mxu0 0.0
        %1747 = vmatprep.subr.mxu0 0.0
        %1748 = vmatpush1.msra.mxu0 0.0
        %1749 = vmatprep.subr.mxu0 0.0
        %1750 = vmatpush1.msra.mxu0 0.0
        %1751 = vmatprep.subr.mxu0 0.0
        %1752 = vmatpush1.msra.mxu0 %v1067
        %1753 = vmatprep.subr.mxu0 0.0
        %1754 = vmatpush2.msra.mxu0 0.0
        %1755 = vmatprep.subr.mxu0 0.0
        %1756 = vmatpush2.msra.mxu0 0.0
        %1757 = vmatprep.subr.mxu0 0.0
        %1758 = vmatpush2.msra.mxu0 0.0
        %1759 = vmatprep.subr.mxu0 0.0
        %1760 = vmatpush2.msra.mxu0 0.0
        %1761 = vmatprep.subr.mxu0 0.0
        %1762 = vmatpush2.msra.mxu0 0.0
        %1763 = vmatprep.subr.mxu0 0.0
        %1764 = vmatpush2.msra.mxu0 0.0
        %1765 = vmatprep.subr.mxu0 0.0
        %1766 = vmatpush2.msra.mxu0 0.0
        %1767 = vmatprep.subr.mxu0 0.0
        %1768 = vmatpush2.msra.mxu0 0.0
        %1769 = vmatprep.subr.mxu0 0.0
        %1770 = vmatpush2.msra.mxu0 0.0
        %1771 = vmatprep.subr.mxu0 0.0
        %1772 = vmatpush2.msra.mxu0 0.0
        %1773 = vmatprep.subr.mxu0 0.0
        %1774 = vmatpush2.msra.mxu0 0.0
        %1775 = vmatprep.subr.mxu0 0.0
        %1776 = vmatpush2.msra.mxu0 0.0
        %1777 = vmatprep.subr.mxu0 0.0
        %1778 = vmatpush2.msra.mxu0 0.0
        %1779 = vmatprep.subr.mxu0 0.0
        %1780 = vmatpush2.msra.mxu0 0.0
        %1781 = vmatprep.subr.mxu0 0.0
        %1782 = vmatpush2.msra.mxu0 0.0
        %1783 = vmatprep.subr.mxu0 0.0
        %1784 = vmatpush2.msra.mxu0 0.0
        %1785 = vmatprep.mubr.f32.mxu0 0.0
        %1786 = vmatmul.mubr.f32.gmra.mxu0 %v1719
        %v1787 = vpop.f32.mrf.mxu0
        %v1788 = vadd.f32 0.0, %v1787
        %v1789 = vpop.f32.mrf.mxu0
        %1790 = vdwg.mxu0
        %v1791 = vadd.f32 %v1549, %v1788
        %1792 = vrot.lane.b32.xlu0 %v1069, 104
        %v1793 = vpop.permute.xlu0 %1792
        %1794 = vrot.lane.b32.xlu0 %v1062, 72
        %v1795 = vpop.permute.xlu0 %1794
        %v1796 = vsel %vm1073, %v1793, 0
        %v1798 = vsel %vm1073, %v1795, 0
        %1800 = vmatprep.subr.mxu0 0.0
        %1801 = vmatpush1.xpose.msra.mxu0 0.0
        %1802 = vmatprep.subr.mxu0 0.0
        %1803 = vmatpush1.xpose.msra.mxu0 0.0
        %1804 = vmatprep.subr.mxu0 0.0
        %1805 = vmatpush1.xpose.msra.mxu0 0.0
        %1806 = vmatprep.subr.mxu0 0.0
        %1807 = vmatpush1.xpose.msra.mxu0 0.0
        %1808 = vmatprep.subr.mxu0 0.0
        %1809 = vmatpush1.xpose.msra.mxu0 0.0
        %1810 = vmatprep.subr.mxu0 0.0
        %1811 = vmatpush1.xpose.msra.mxu0 0.0
        %1812 = vmatprep.subr.mxu0 0.0
        %1813 = vmatpush1.xpose.msra.mxu0 0.0
        %1814 = vmatprep.subr.mxu0 0.0
        %1815 = vmatpush1.xpose.msra.mxu0 0.0
        %1816 = vmatprep.subr.mxu0 0.0
        %1817 = vmatpush1.xpose.msra.mxu0 0.0
        %1818 = vmatprep.subr.mxu0 0.0
        %1819 = vmatpush1.xpose.msra.mxu0 0.0
        %1820 = vmatprep.subr.mxu0 0.0
        %1821 = vmatpush1.xpose.msra.mxu0 0.0
        %1822 = vmatprep.subr.mxu0 0.0
        %1823 = vmatpush1.xpose.msra.mxu0 0.0
        %1824 = vmatprep.subr.mxu0 0.0
        %1825 = vmatpush1.xpose.msra.mxu0 0.0
        %1826 = vmatprep.subr.mxu0 0.0
        %1827 = vmatpush1.xpose.msra.mxu0 0.0
        %1828 = vmatprep.subr.mxu0 0.0
        %1829 = vmatpush1.xpose.msra.mxu0 0.0
        %1830 = vmatprep.subr.mxu0 0.0
        %1831 = vmatpush1.xpose.msra.mxu0 %v1798
        %1832 = vmatprep.subr.mxu0 0.0
        %1833 = vmatpush2.xpose.msra.mxu0 0.0
        %1834 = vmatprep.subr.mxu0 0.0
        %1835 = vmatpush2.xpose.msra.mxu0 0.0
        %1836 = vmatprep.subr.mxu0 0.0
        %1837 = vmatpush2.xpose.msra.mxu0 0.0
        %1838 = vmatprep.subr.mxu0 0.0
        %1839 = vmatpush2.xpose.msra.mxu0 0.0
        %1840 = vmatprep.subr.mxu0 0.0
        %1841 = vmatpush2.xpose.msra.mxu0 0.0
        %1842 = vmatprep.subr.mxu0 0.0
        %1843 = vmatpush2.xpose.msra.mxu0 0.0
        %1844 = vmatprep.subr.mxu0 0.0
        %1845 = vmatpush2.xpose.msra.mxu0 0.0
        %1846 = vmatprep.subr.mxu0 0.0
        %1847 = vmatpush2.xpose.msra.mxu0 0.0
        %1848 = vmatprep.subr.mxu0 0.0
        %1849 = vmatpush2.xpose.msra.mxu0 0.0
        %1850 = vmatprep.subr.mxu0 0.0
        %1851 = vmatpush2.xpose.msra.mxu0 0.0
        %1852 = vmatprep.subr.mxu0 0.0
        %1853 = vmatpush2.xpose.msra.mxu0 0.0
        %1854 = vmatprep.subr.mxu0 0.0
        %1855 = vmatpush2.xpose.msra.mxu0 0.0
        %1856 = vmatprep.subr.mxu0 0.0
        %1857 = vmatpush2.xpose.msra.mxu0 0.0
        %1858 = vmatprep.subr.mxu0 0.0
        %1859 = vmatpush2.xpose.msra.mxu0 0.0
        %1860 = vmatprep.subr.mxu0 0.0
        %1861 = vmatpush2.xpose.msra.mxu0 0.0
        %1862 = vmatprep.subr.mxu0 0.0
        %1863 = vmatpush2.xpose.msra.mxu0 0.0
        %1864 = vmatprep.mubr.f32.mxu0 0.0
        %1865 = vmatmul.mubr.f32.gmra.mxu0 %v1796
        %v1866 = vpop.f32.mrf.mxu0
        %v1867 = vadd.f32 0.0, %v1866
        %v1868 = vpop.f32.mrf.mxu0
        %1869 = vdwg.mxu0
        %v1870 = vsel %vm1149, %v1867, -inf
        %1871 = vmax.xlane.f32.xlu0 %v1870
        %v1872 = vpop.xlane.xlu0 %1871
        %v1873 = vsub.f32 %v1867, %v1872
        %v1874 = vmul.f32 %v1873, 1.442695
        %v1875 = vpow.pop %v1874
        %v1876 = vsel %vm1149, %v1875, 0.0
        %1877 = vadd.xlane.f32.xlu0 %v1876
        %v1878 = vpop.xlane.xlu0 %1877
        %v1879 = vrcp.pop %v1878
        %v1880 = vmul.f32 %v1875, %v1879
        %1881 = vrot.lane.b32.xlu0 %v1062, 40
        %v1882 = vpop.permute.xlu0 %1881
        %v1884 = vsel %vm1163, %v1880, 0
        %v1886 = vsel %vm1167, %v1882, 0
        %1888 = vmatprep.subr.mxu0 0.0
        %1889 = vmatpush1.msra.mxu0 0.0
        %1890 = vmatprep.subr.mxu0 0.0
        %1891 = vmatpush1.msra.mxu0 0.0
        %1892 = vmatprep.subr.mxu0 0.0
        %1893 = vmatpush1.msra.mxu0 0.0
        %1894 = vmatprep.subr.mxu0 0.0
        %1895 = vmatpush1.msra.mxu0 0.0
        %1896 = vmatprep.subr.mxu0 0.0
        %1897 = vmatpush1.msra.mxu0 0.0
        %1898 = vmatprep.subr.mxu0 0.0
        %1899 = vmatpush1.msra.mxu0 0.0
        %1900 = vmatprep.subr.mxu0 0.0
        %1901 = vmatpush1.msra.mxu0 0.0
        %1902 = vmatprep.subr.mxu0 0.0
        %1903 = vmatpush1.msra.mxu0 0.0
        %1904 = vmatprep.subr.mxu0 0.0
        %1905 = vmatpush1.msra.mxu0 0.0
        %1906 = vmatprep.subr.mxu0 0.0
        %1907 = vmatpush1.msra.mxu0 0.0
        %1908 = vmatprep.subr.mxu0 0.0
        %1909 = vmatpush1.msra.mxu0 0.0
        %1910 = vmatprep.subr.mxu0 0.0
        %1911 = vmatpush1.msra.mxu0 0.0
        %1912 = vmatprep.subr.mxu0 0.0
        %1913 = vmatpush1.msra.mxu0 0.0
        %1914 = vmatprep.subr.mxu0 0.0
        %1915 = vmatpush1.msra.mxu0 0.0
        %1916 = vmatprep.subr.mxu0 0.0
        %1917 = vmatpush1.msra.mxu0 0.0
        %1918 = vmatprep.subr.mxu0 0.0
        %1919 = vmatpush1.msra.mxu0 %v1886
        %1920 = vmatprep.subr.mxu0 0.0
        %1921 = vmatpush2.msra.mxu0 0.0
        %1922 = vmatprep.subr.mxu0 0.0
        %1923 = vmatpush2.msra.mxu0 0.0
        %1924 = vmatprep.subr.mxu0 0.0
        %1925 = vmatpush2.msra.mxu0 0.0
        %1926 = vmatprep.subr.mxu0 0.0
        %1927 = vmatpush2.msra.mxu0 0.0
        %1928 = vmatprep.subr.mxu0 0.0
        %1929 = vmatpush2.msra.mxu0 0.0
        %1930 = vmatprep.subr.mxu0 0.0
        %1931 = vmatpush2.msra.mxu0 0.0
        %1932 = vmatprep.subr.mxu0 0.0
        %1933 = vmatpush2.msra.mxu0 0.0
        %1934 = vmatprep.subr.mxu0 0.0
        %1935 = vmatpush2.msra.mxu0 0.0
        %1936 = vmatprep.subr.mxu0 0.0
        %1937 = vmatpush2.msra.mxu0 0.0
        %1938 = vmatprep.subr.mxu0 0.0
        %1939 = vmatpush2.msra.mxu0 0.0
        %1940 = vmatprep.subr.mxu0 0.0
        %1941 = vmatpush2.msra.mxu0 0.0
        %1942 = vmatprep.subr.mxu0 0.0
        %1943 = vmatpush2.msra.mxu0 0.0
        %1944 = vmatprep.subr.mxu0 0.0
        %1945 = vmatpush2.msra.mxu0 0.0
        %1946 = vmatprep.subr.mxu0 0.0
        %1947 = vmatpush2.msra.mxu0 0.0
        %1948 = vmatprep.subr.mxu0 0.0
        %1949 = vmatpush2.msra.mxu0 0.0
        %1950 = vmatprep.subr.mxu0 0.0
        %1951 = vmatpush2.msra.mxu0 0.0
        %1952 = vmatprep.mubr.f32.mxu0 0.0
        %1953 = vmatmul.mubr.f32.gmra.mxu0 %v1884
        %v1954 = vpop.f32.mrf.mxu0
        %v1955 = vadd.f32 0.0, %v1954
        %v1956 = vpop.f32.mrf.mxu0
        %1957 = vdwg.mxu0
        %v1959 = vsel %vm1073, %v1955, 0
        %1961 = vmatprep.subr.mxu0 0.0
        %1962 = vmatpush1.msra.mxu0 0.0
        %1963 = vmatprep.subr.mxu0 0.0
        %1964 = vmatpush1.msra.mxu0 0.0
        %1965 = vmatprep.subr.mxu0 0.0
        %1966 = vmatpush1.msra.mxu0 0.0
        %1967 = vmatprep.subr.mxu0 0.0
        %1968 = vmatpush1.msra.mxu0 0.0
        %1969 = vmatprep.subr.mxu0 0.0
        %1970 = vmatpush1.msra.mxu0 0.0
        %1971 = vmatprep.subr.mxu0 0.0
        %1972 = vmatpush1.msra.mxu0 0.0
        %1973 = vmatprep.subr.mxu0 0.0
        %1974 = vmatpush1.msra.mxu0 0.0
        %1975 = vmatprep.subr.mxu0 0.0
        %1976 = vmatpush1.msra.mxu0 0.0
        %1977 = vmatprep.subr.mxu0 0.0
        %1978 = vmatpush1.msra.mxu0 0.0
        %1979 = vmatprep.subr.mxu0 0.0
        %1980 = vmatpush1.msra.mxu0 0.0
        %1981 = vmatprep.subr.mxu0 0.0
        %1982 = vmatpush1.msra.mxu0 0.0
        %1983 = vmatprep.subr.mxu0 0.0
        %1984 = vmatpush1.msra.mxu0 0.0
        %1985 = vmatprep.subr.mxu0 0.0
        %1986 = vmatpush1.msra.mxu0 0.0
        %1987 = vmatprep.subr.mxu0 0.0
        %1988 = vmatpush1.msra.mxu0 0.0
        %1989 = vmatprep.subr.mxu0 0.0
        %1990 = vmatpush1.msra.mxu0 0.0
        %1991 = vmatprep.subr.mxu0 0.0
        %1992 = vmatpush1.msra.mxu0 %v1068
        %1993 = vmatprep.subr.mxu0 0.0
        %1994 = vmatpush2.msra.mxu0 0.0
        %1995 = vmatprep.subr.mxu0 0.0
        %1996 = vmatpush2.msra.mxu0 0.0
        %1997 = vmatprep.subr.mxu0 0.0
        %1998 = vmatpush2.msra.mxu0 0.0
        %1999 = vmatprep.subr.mxu0 0.0
        %2000 = vmatpush2.msra.mxu0 0.0
        %2001 = vmatprep.subr.mxu0 0.0
        %2002 = vmatpush2.msra.mxu0 0.0
        %2003 = vmatprep.subr.mxu0 0.0
        %2004 = vmatpush2.msra.mxu0 0.0
        %2005 = vmatprep.subr.mxu0 0.0
        %2006 = vmatpush2.msra.mxu0 0.0
        %2007 = vmatprep.subr.mxu0 0.0
        %2008 = vmatpush2.msra.mxu0 0.0
        %2009 = vmatprep.subr.mxu0 0.0
        %2010 = vmatpush2.msra.mxu0 0.0
        %2011 = vmatprep.subr.mxu0 0.0
        %2012 = vmatpush2.msra.mxu0 0.0
        %2013 = vmatprep.subr.mxu0 0.0
        %2014 = vmatpush2.msra.mxu0 0.0
        %2015 = vmatprep.subr.mxu0 0.0
        %2016 = vmatpush2.msra.mxu0 0.0
        %2017 = vmatprep.subr.mxu0 0.0
        %2018 = vmatpush2.msra.mxu0 0.0
        %2019 = vmatprep.subr.mxu0 0.0
        %2020 = vmatpush2.msra.mxu0 0.0
        %2021 = vmatprep.subr.mxu0 0.0
        %2022 = vmatpush2.msra.mxu0 0.0
        %2023 = vmatprep.subr.mxu0 0.0
        %2024 = vmatpush2.msra.mxu0 0.0
        %2025 = vmatprep.mubr.f32.mxu0 0.0
        %2026 = vmatmul.mubr.f32.gmra.mxu0 %v1959
        %v2027 = vpop.f32.mrf.mxu0
        %v2028 = vadd.f32 0.0, %v2027
        %v2029 = vpop.f32.mrf.mxu0
        %2030 = vdwg.mxu0
        %v2031 = vadd.f32 %v1791, %v2028
        %v2032 = vadd.f32 %v946, %v2031
        %v2033 = vld [vmem:[%s8] sm:$0x1]
        %v2035 = vlaneseq
        %v2036 = vshrl.u32 %v2035, 7
        %v2037 = vsub.s32 0, %v2036
        %v2038 = vrot.slane %v2033, %v2037
        %v2040 = vadd.f32 %v2032, %v2038
        %v2041 = vld [vmem:[%s9] sm:$0x1]
        %v2042 = vld [vmem:[%s10] sm:$0x1]
        %v2043 = vsel %vm951, %v2040, 0.0
        %2044 = vadd.xlane.f32.xlu0 %v2043
        %v2045 = vpop.xlane.xlu0 %2044
        %v2046 = vmul.f32 %v2045, %v955
        %v2047 = vsub.f32 %v2040, %v2046
        %v2048 = vmul.f32 %v2047, %v2047
        %v2049 = vsel %vm951, %v2048, 0.0
        %2050 = vadd.xlane.f32.xlu0 %v2049
        %v2051 = vpop.xlane.xlu0 %2050
        %v2052 = vmul.f32 %v2051, %v955
        %v2053 = vadd.f32 %v2052, 1e-06
        %v2054 = vrsqrt.pop %v2053
        %v2055 = vmul.f32 %v2047, %v2054
        %v2057 = vlaneseq
        %v2058 = vshrl.u32 %v2057, 7
        %v2059 = vsub.s32 0, %v2058
        %v2060 = vrot.slane %v2041, %v2059
        %v2062 = vmul.f32 %v2055, %v2060
        %v2064 = vlaneseq
        %v2065 = vshrl.u32 %v2064, 7
        %v2066 = vsub.s32 0, %v2065
        %v2067 = vrot.slane %v2042, %v2066
        %v2069 = vadd.f32 %v2062, %v2067
        %v2070 = vld [vmem:[%s11] sm:$0xff]
        %v2071 = vld [vmem:[%s11 + $0x8] sm:$0xff]
        %v2072 = vld [vmem:[%s11 + $0x10] sm:$0xff]
        %v2073 = vld [vmem:[%s11 + $0x18] sm:$0xff]
        %v2074 = vld [vmem:[%s12] sm:$0x1]
        %v2076 = vlaneseq
        %v2077 = vshrl.u32 %v2076, 7
        %v2078 = vsub.s32 0, %v2077
        %v2079 = vrot.slane %v2074, %v2078
        %v2082 = vsel %vm991, %v2069, 0
        %2084 = vmatprep.subr.mxu0 0.0
        %2085 = vmatpush1.msra.mxu0 0.0
        %2086 = vmatprep.subr.mxu0 0.0
        %2087 = vmatpush1.msra.mxu0 0.0
        %2088 = vmatprep.subr.mxu0 0.0
        %2089 = vmatpush1.msra.mxu0 0.0
        %2090 = vmatprep.subr.mxu0 0.0
        %2091 = vmatpush1.msra.mxu0 0.0
        %2092 = vmatprep.subr.mxu0 0.0
        %2093 = vmatpush1.msra.mxu0 0.0
        %2094 = vmatprep.subr.mxu0 0.0
        %2095 = vmatpush1.msra.mxu0 0.0
        %2096 = vmatprep.subr.mxu0 0.0
        %2097 = vmatpush1.msra.mxu0 0.0
        %2098 = vmatprep.subr.mxu0 0.0
        %2099 = vmatpush1.msra.mxu0 0.0
        %2100 = vmatprep.subr.mxu0 0.0
        %2101 = vmatpush1.msra.mxu0 0.0
        %2102 = vmatprep.subr.mxu0 0.0
        %2103 = vmatpush1.msra.mxu0 0.0
        %2104 = vmatprep.subr.mxu0 0.0
        %2105 = vmatpush1.msra.mxu0 0.0
        %2106 = vmatprep.subr.mxu0 0.0
        %2107 = vmatpush1.msra.mxu0 0.0
        %2108 = vmatprep.subr.mxu0 0.0
        %2109 = vmatpush1.msra.mxu0 %v2073
        %2110 = vmatprep.subr.mxu0 0.0
        %2111 = vmatpush1.msra.mxu0 %v2072
        %2112 = vmatprep.subr.mxu0 0.0
        %2113 = vmatpush1.msra.mxu0 %v2071
        %2114 = vmatprep.subr.mxu0 0.0
        %2115 = vmatpush1.msra.mxu0 %v2070
        %2116 = vmatprep.subr.mxu0 0.0
        %2117 = vmatpush2.msra.mxu0 0.0
        %2118 = vmatprep.subr.mxu0 0.0
        %2119 = vmatpush2.msra.mxu0 0.0
        %2120 = vmatprep.subr.mxu0 0.0
        %2121 = vmatpush2.msra.mxu0 0.0
        %2122 = vmatprep.subr.mxu0 0.0
        %2123 = vmatpush2.msra.mxu0 0.0
        %2124 = vmatprep.subr.mxu0 0.0
        %2125 = vmatpush2.msra.mxu0 0.0
        %2126 = vmatprep.subr.mxu0 0.0
        %2127 = vmatpush2.msra.mxu0 0.0
        %2128 = vmatprep.subr.mxu0 0.0
        %2129 = vmatpush2.msra.mxu0 0.0
        %2130 = vmatprep.subr.mxu0 0.0
        %2131 = vmatpush2.msra.mxu0 0.0
        %2132 = vmatprep.subr.mxu0 0.0
        %2133 = vmatpush2.msra.mxu0 0.0
        %2134 = vmatprep.subr.mxu0 0.0
        %2135 = vmatpush2.msra.mxu0 0.0
        %2136 = vmatprep.subr.mxu0 0.0
        %2137 = vmatpush2.msra.mxu0 0.0
        %2138 = vmatprep.subr.mxu0 0.0
        %2139 = vmatpush2.msra.mxu0 0.0
        %2140 = vmatprep.subr.mxu0 0.0
        %2141 = vmatpush2.msra.mxu0 0.0
        %2142 = vmatprep.subr.mxu0 0.0
        %2143 = vmatpush2.msra.mxu0 0.0
        %2144 = vmatprep.subr.mxu0 0.0
        %2145 = vmatpush2.msra.mxu0 0.0
        %2146 = vmatprep.subr.mxu0 0.0
        %2147 = vmatpush2.msra.mxu0 0.0
        %2148 = vmatprep.mubr.f32.mxu0 0.0
        %2149 = vmatmul.mubr.f32.gmra.mxu0 %v2082
        %v2150 = vpop.f32.mrf.mxu0
        %v2151 = vadd.f32 %v2079, %v2150
        %v2152 = vpop.f32.mrf.mxu0
        %2153 = vdwg.mxu0
        %v2154 = vmul.f32 %v2151, %v2151
        %v2155 = vmul.f32 %v2151, %v2154
        %v2156 = vmul.f32 %v2155, 0.044715
        %v2157 = vadd.f32 %v2151, %v2156
        %v2158 = vmul.f32 %v2157, 0.7978846
        %v2159 = vtanh.pop %v2158
        %v2160 = vadd.f32 %v2159, 1.0
        %v2161 = vmul.f32 %v2160, 0.5
        %v2162 = vmul.f32 %v2151, %v2161
        %v2163 = vld [vmem:[%s13] sm:$0xff]
        %v2164 = vld [vmem:[%s13 + $0x8] sm:$0xff]
        %v2165 = vld [vmem:[%s13 + $0x10] sm:$0xff]
        %v2166 = vld [vmem:[%s13 + $0x18] sm:$0xff]
        %v2167 = vld [vmem:[%s13 + $0x20] sm:$0xff]
        %v2168 = vld [vmem:[%s13 + $0x28] sm:$0xff]
        %v2169 = vld [vmem:[%s13 + $0x30] sm:$0xff]
        %v2170 = vld [vmem:[%s13 + $0x38] sm:$0xff]
        %v2171 = vld [vmem:[%s13 + $0x40] sm:$0xff]
        %v2172 = vld [vmem:[%s13 + $0x48] sm:$0xff]
        %v2173 = vld [vmem:[%s13 + $0x50] sm:$0xff]
        %v2174 = vld [vmem:[%s13 + $0x58] sm:$0xff]
        %v2175 = vld [vmem:[%s13 + $0x60] sm:$0xff]
        %v2176 = vld [vmem:[%s13 + $0x68] sm:$0xff]
        %v2177 = vld [vmem:[%s13 + $0x70] sm:$0xff]
        %v2178 = vld [vmem:[%s13 + $0x78] sm:$0xff]
        %2179 = vmatprep.subr.mxu0 0.0
        %2180 = vmatpush1.msra.mxu0 %v2178
        %2181 = vmatprep.subr.mxu0 0.0
        %2182 = vmatpush1.msra.mxu0 %v2177
        %2183 = vmatprep.subr.mxu0 0.0
        %2184 = vmatpush1.msra.mxu0 %v2176
        %2185 = vmatprep.subr.mxu0 0.0
        %2186 = vmatpush1.msra.mxu0 %v2175
        %2187 = vmatprep.subr.mxu0 0.0
        %2188 = vmatpush1.msra.mxu0 %v2174
        %2189 = vmatprep.subr.mxu0 0.0
        %2190 = vmatpush1.msra.mxu0 %v2173
        %2191 = vmatprep.subr.mxu0 0.0
        %2192 = vmatpush1.msra.mxu0 %v2172
        %2193 = vmatprep.subr.mxu0 0.0
        %2194 = vmatpush1.msra.mxu0 %v2171
        %2195 = vmatprep.subr.mxu0 0.0
        %2196 = vmatpush1.msra.mxu0 %v2170
        %2197 = vmatprep.subr.mxu0 0.0
        %2198 = vmatpush1.msra.mxu0 %v2169
        %2199 = vmatprep.subr.mxu0 0.0
        %2200 = vmatpush1.msra.mxu0 %v2168
        %2201 = vmatprep.subr.mxu0 0.0
        %2202 = vmatpush1.msra.mxu0 %v2167
        %2203 = vmatprep.subr.mxu0 0.0
        %2204 = vmatpush1.msra.mxu0 %v2166
        %2205 = vmatprep.subr.mxu0 0.0
        %2206 = vmatpush1.msra.mxu0 %v2165
        %2207 = vmatprep.subr.mxu0 0.0
        %2208 = vmatpush1.msra.mxu0 %v2164
        %2209 = vmatprep.subr.mxu0 0.0
        %2210 = vmatpush1.msra.mxu0 %v2163
        %2211 = vmatprep.subr.mxu0 0.0
        %2212 = vmatpush2.msra.mxu0 0.0
        %2213 = vmatprep.subr.mxu0 0.0
        %2214 = vmatpush2.msra.mxu0 0.0
        %2215 = vmatprep.subr.mxu0 0.0
        %2216 = vmatpush2.msra.mxu0 0.0
        %2217 = vmatprep.subr.mxu0 0.0
        %2218 = vmatpush2.msra.mxu0 0.0
        %2219 = vmatprep.subr.mxu0 0.0
        %2220 = vmatpush2.msra.mxu0 0.0
        %2221 = vmatprep.subr.mxu0 0.0
        %2222 = vmatpush2.msra.mxu0 0.0
        %2223 = vmatprep.subr.mxu0 0.0
        %2224 = vmatpush2.msra.mxu0 0.0
        %2225 = vmatprep.subr.mxu0 0.0
        %2226 = vmatpush2.msra.mxu0 0.0
        %2227 = vmatprep.subr.mxu0 0.0
        %2228 = vmatpush2.msra.mxu0 0.0
        %2229 = vmatprep.subr.mxu0 0.0
        %2230 = vmatpush2.msra.mxu0 0.0
        %2231 = vmatprep.subr.mxu0 0.0
        %2232 = vmatpush2.msra.mxu0 0.0
        %2233 = vmatprep.subr.mxu0 0.0
        %2234 = vmatpush2.msra.mxu0 0.0
        %2235 = vmatprep.subr.mxu0 0.0
        %2236 = vmatpush2.msra.mxu0 0.0
        %2237 = vmatprep.subr.mxu0 0.0
        %2238 = vmatpush2.msra.mxu0 0.0
        %2239 = vmatprep.subr.mxu0 0.0
        %2240 = vmatpush2.msra.mxu0 0.0
        %2241 = vmatprep.subr.mxu0 0.0
        %2242 = vmatpush2.msra.mxu0 0.0
        %2243 = vmatprep.mubr.f32.mxu0 0.0
        %2244 = vmatmul.mubr.f32.gmra.mxu0 %v2162
        %v2245 = vpop.f32.mrf.mxu0
        %v2246 = vadd.f32 0.0, %v2245
        %v2247 = vpop.f32.mrf.mxu0
        %2248 = vdwg.mxu0
        %v2249 = vadd.f32 %v2040, %v2246
        %v2250 = vld [vmem:[%s14] sm:$0x1]
        %v2252 = vlaneseq
        %v2253 = vshrl.u32 %v2252, 7
        %v2254 = vsub.s32 0, %v2253
        %v2255 = vrot.slane %v2250, %v2254
        %v2257 = vadd.f32 %v2249, %v2255
        %s2258 = scalar_lea.vmem %s3, 1
        %v2259 = vld [vmem:[%s2258] sm:$0x1]
        %s2260 = scalar_lea.vmem %s4, 1
        %v2261 = vld [vmem:[%s2260] sm:$0x1]
        %v2262 = vsel %vm951, %v2257, 0.0
        %2263 = vadd.xlane.f32.xlu0 %v2262
        %v2264 = vpop.xlane.xlu0 %2263
        %v2265 = vmul.f32 %v2264, %v955
        %v2266 = vsub.f32 %v2257, %v2265
        %v2267 = vmul.f32 %v2266, %v2266
        %v2268 = vsel %vm951, %v2267, 0.0
        %2269 = vadd.xlane.f32.xlu0 %v2268
        %v2270 = vpop.xlane.xlu0 %2269
        %v2271 = vmul.f32 %v2270, %v955
        %v2272 = vadd.f32 %v2271, 1e-06
        %v2273 = vrsqrt.pop %v2272
        %v2274 = vmul.f32 %v2266, %v2273
        %v2276 = vlaneseq
        %v2277 = vshrl.u32 %v2276, 7
        %v2278 = vsub.s32 0, %v2277
        %v2279 = vrot.slane %v2259, %v2278
        %v2281 = vmul.f32 %v2274, %v2279
        %v2283 = vlaneseq
        %v2284 = vshrl.u32 %v2283, 7
        %v2285 = vsub.s32 0, %v2284
        %v2286 = vrot.slane %v2261, %v2285
        %v2288 = vadd.f32 %v2281, %v2286
        %s2289 = scalar_lea.vmem %s5, 32
        %v2290 = vld [vmem:[%s2289] sm:$0xff]
        %v2291 = vld [vmem:[%s2289 + $0x8] sm:$0xff]
        %v2292 = vld [vmem:[%s2289 + $0x10] sm:$0xff]
        %v2293 = vld [vmem:[%s2289 + $0x18] sm:$0xff]
        %s2294 = scalar_lea.vmem %s6, 1
        %v2295 = vld [vmem:[%s2294] sm:$0x1]
        %v2297 = vlaneseq
        %v2298 = vshrl.u32 %v2297, 7
        %v2299 = vsub.s32 0, %v2298
        %v2300 = vrot.slane %v2295, %v2299
        %v2303 = vsel %vm991, %v2288, 0
        %2305 = vmatprep.subr.mxu0 0.0
        %2306 = vmatpush1.msra.mxu0 0.0
        %2307 = vmatprep.subr.mxu0 0.0
        %2308 = vmatpush1.msra.mxu0 0.0
        %2309 = vmatprep.subr.mxu0 0.0
        %2310 = vmatpush1.msra.mxu0 0.0
        %2311 = vmatprep.subr.mxu0 0.0
        %2312 = vmatpush1.msra.mxu0 0.0
        %2313 = vmatprep.subr.mxu0 0.0
        %2314 = vmatpush1.msra.mxu0 0.0
        %2315 = vmatprep.subr.mxu0 0.0
        %2316 = vmatpush1.msra.mxu0 0.0
        %2317 = vmatprep.subr.mxu0 0.0
        %2318 = vmatpush1.msra.mxu0 0.0
        %2319 = vmatprep.subr.mxu0 0.0
        %2320 = vmatpush1.msra.mxu0 0.0
        %2321 = vmatprep.subr.mxu0 0.0
        %2322 = vmatpush1.msra.mxu0 0.0
        %2323 = vmatprep.subr.mxu0 0.0
        %2324 = vmatpush1.msra.mxu0 0.0
        %2325 = vmatprep.subr.mxu0 0.0
        %2326 = vmatpush1.msra.mxu0 0.0
        %2327 = vmatprep.subr.mxu0 0.0
        %2328 = vmatpush1.msra.mxu0 0.0
        %2329 = vmatprep.subr.mxu0 0.0
        %2330 = vmatpush1.msra.mxu0 %v2293
        %2331 = vmatprep.subr.mxu0 0.0
        %2332 = vmatpush1.msra.mxu0 %v2292
        %2333 = vmatprep.subr.mxu0 0.0
        %2334 = vmatpush1.msra.mxu0 %v2291
        %2335 = vmatprep.subr.mxu0 0.0
        %2336 = vmatpush1.msra.mxu0 %v2290
        %2337 = vmatprep.subr.mxu0 0.0
        %2338 = vmatpush2.msra.mxu0 0.0
        %2339 = vmatprep.subr.mxu0 0.0
        %2340 = vmatpush2.msra.mxu0 0.0
        %2341 = vmatprep.subr.mxu0 0.0
        %2342 = vmatpush2.msra.mxu0 0.0
        %2343 = vmatprep.subr.mxu0 0.0
        %2344 = vmatpush2.msra.mxu0 0.0
        %2345 = vmatprep.subr.mxu0 0.0
        %2346 = vmatpush2.msra.mxu0 0.0
        %2347 = vmatprep.subr.mxu0 0.0
        %2348 = vmatpush2.msra.mxu0 0.0
        %2349 = vmatprep.subr.mxu0 0.0
        %2350 = vmatpush2.msra.mxu0 0.0
        %2351 = vmatprep.subr.mxu0 0.0
        %2352 = vmatpush2.msra.mxu0 0.0
        %2353 = vmatprep.subr.mxu0 0.0
        %2354 = vmatpush2.msra.mxu0 0.0
        %2355 = vmatprep.subr.mxu0 0.0
        %2356 = vmatpush2.msra.mxu0 0.0
        %2357 = vmatprep.subr.mxu0 0.0
        %2358 = vmatpush2.msra.mxu0 0.0
        %2359 = vmatprep.subr.mxu0 0.0
        %2360 = vmatpush2.msra.mxu0 0.0
        %2361 = vmatprep.subr.mxu0 0.0
        %2362 = vmatpush2.msra.mxu0 0.0
        %2363 = vmatprep.subr.mxu0 0.0
        %2364 = vmatpush2.msra.mxu0 0.0
        %2365 = vmatprep.subr.mxu0 0.0
        %2366 = vmatpush2.msra.mxu0 0.0
        %2367 = vmatprep.subr.mxu0 0.0
        %2368 = vmatpush2.msra.mxu0 0.0
        %2369 = vmatprep.mubr.f32.mxu0 0.0
        %2370 = vmatmul.mubr.f32.gmra.mxu0 %v2303
        %v2371 = vpop.f32.mrf.mxu0
        %v2372 = vadd.f32 %v2300, %v2371
        %v2373 = vpop.f32.mrf.mxu0
        %2374 = vdwg.mxu0
        %s2375 = scalar_lea.vmem %s7, 32
        %v2376 = vld [vmem:[%s2375] sm:$0xff]
        %v2377 = vld [vmem:[%s2375 + $0x8] sm:$0xff]
        %v2378 = vld [vmem:[%s2375 + $0x10] sm:$0xff]
        %v2379 = vld [vmem:[%s2375 + $0x18] sm:$0xff]
        %v2380 = vmul.f32 %v2372, 0.35355338
        %2382 = vrot.lane.b32.xlu0 %v2372, 96
        %v2383 = vpop.permute.xlu0 %2382
        %v2385 = vsel %vm1073, %v2380, 0
        %v2387 = vsel %vm1073, %v2383, 0
        %2389 = vmatprep.subr.mxu0 0.0
        %2390 = vmatpush1.xpose.msra.mxu0 0.0
        %2391 = vmatprep.subr.mxu0 0.0
        %2392 = vmatpush1.xpose.msra.mxu0 0.0
        %2393 = vmatprep.subr.mxu0 0.0
        %2394 = vmatpush1.xpose.msra.mxu0 0.0
        %2395 = vmatprep.subr.mxu0 0.0
        %2396 = vmatpush1.xpose.msra.mxu0 0.0
        %2397 = vmatprep.subr.mxu0 0.0
        %2398 = vmatpush1.xpose.msra.mxu0 0.0
        %2399 = vmatprep.subr.mxu0 0.0
        %2400 = vmatpush1.xpose.msra.mxu0 0.0
        %2401 = vmatprep.subr.mxu0 0.0
        %2402 = vmatpush1.xpose.msra.mxu0 0.0
        %2403 = vmatprep.subr.mxu0 0.0
        %2404 = vmatpush1.xpose.msra.mxu0 0.0
        %2405 = vmatprep.subr.mxu0 0.0
        %2406 = vmatpush1.xpose.msra.mxu0 0.0
        %2407 = vmatprep.subr.mxu0 0.0
        %2408 = vmatpush1.xpose.msra.mxu0 0.0
        %2409 = vmatprep.subr.mxu0 0.0
        %2410 = vmatpush1.xpose.msra.mxu0 0.0
        %2411 = vmatprep.subr.mxu0 0.0
        %2412 = vmatpush1.xpose.msra.mxu0 0.0
        %2413 = vmatprep.subr.mxu0 0.0
        %2414 = vmatpush1.xpose.msra.mxu0 0.0
        %2415 = vmatprep.subr.mxu0 0.0
        %2416 = vmatpush1.xpose.msra.mxu0 0.0
        %2417 = vmatprep.subr.mxu0 0.0
        %2418 = vmatpush1.xpose.msra.mxu0 0.0
        %2419 = vmatprep.subr.mxu0 0.0
        %2420 = vmatpush1.xpose.msra.mxu0 %v2387
        %2421 = vmatprep.subr.mxu0 0.0
        %2422 = vmatpush2.xpose.msra.mxu0 0.0
        %2423 = vmatprep.subr.mxu0 0.0
        %2424 = vmatpush2.xpose.msra.mxu0 0.0
        %2425 = vmatprep.subr.mxu0 0.0
        %2426 = vmatpush2.xpose.msra.mxu0 0.0
        %2427 = vmatprep.subr.mxu0 0.0
        %2428 = vmatpush2.xpose.msra.mxu0 0.0
        %2429 = vmatprep.subr.mxu0 0.0
        %2430 = vmatpush2.xpose.msra.mxu0 0.0
        %2431 = vmatprep.subr.mxu0 0.0
        %2432 = vmatpush2.xpose.msra.mxu0 0.0
        %2433 = vmatprep.subr.mxu0 0.0
        %2434 = vmatpush2.xpose.msra.mxu0 0.0
        %2435 = vmatprep.subr.mxu0 0.0
        %2436 = vmatpush2.xpose.msra.mxu0 0.0
        %2437 = vmatprep.subr.mxu0 0.0
        %2438 = vmatpush2.xpose.msra.mxu0 0.0
        %2439 = vmatprep.subr.mxu0 0.0
        %2440 = vmatpush2.xpose.msra.mxu0 0.0
        %2441 = vmatprep.subr.mxu0 0.0
        %2442 = vmatpush2.xpose.msra.mxu0 0.0
        %2443 = vmatprep.subr.mxu0 0.0
        %2444 = vmatpush2.xpose.msra.mxu0 0.0
        %2445 = vmatprep.subr.mxu0 0.0
        %2446 = vmatpush2.xpose.msra.mxu0 0.0
        %2447 = vmatprep.subr.mxu0 0.0
        %2448 = vmatpush2.xpose.msra.mxu0 0.0
        %2449 = vmatprep.subr.mxu0 0.0
        %2450 = vmatpush2.xpose.msra.mxu0 0.0
        %2451 = vmatprep.subr.mxu0 0.0
        %2452 = vmatpush2.xpose.msra.mxu0 0.0
        %2453 = vmatprep.mubr.f32.mxu0 0.0
        %2454 = vmatmul.mubr.f32.gmra.mxu0 %v2385
        %v2455 = vpop.f32.mrf.mxu0
        %v2456 = vadd.f32 0.0, %v2455
        %v2457 = vpop.f32.mrf.mxu0
        %2458 = vdwg.mxu0
        %v2459 = vsel %vm1149, %v2456, -inf
        %2460 = vmax.xlane.f32.xlu0 %v2459
        %v2461 = vpop.xlane.xlu0 %2460
        %v2462 = vsub.f32 %v2456, %v2461
        %v2463 = vmul.f32 %v2462, 1.442695
        %v2464 = vpow.pop %v2463
        %v2465 = vsel %vm1149, %v2464, 0.0
        %2466 = vadd.xlane.f32.xlu0 %v2465
        %v2467 = vpop.xlane.xlu0 %2466
        %v2468 = vrcp.pop %v2467
        %v2469 = vmul.f32 %v2464, %v2468
        %2470 = vrot.lane.b32.xlu0 %v2372, 64
        %v2471 = vpop.permute.xlu0 %2470
        %v2473 = vsel %vm1163, %v2469, 0
        %v2475 = vsel %vm1167, %v2471, 0
        %2477 = vmatprep.subr.mxu0 0.0
        %2478 = vmatpush1.msra.mxu0 0.0
        %2479 = vmatprep.subr.mxu0 0.0
        %2480 = vmatpush1.msra.mxu0 0.0
        %2481 = vmatprep.subr.mxu0 0.0
        %2482 = vmatpush1.msra.mxu0 0.0
        %2483 = vmatprep.subr.mxu0 0.0
        %2484 = vmatpush1.msra.mxu0 0.0
        %2485 = vmatprep.subr.mxu0 0.0
        %2486 = vmatpush1.msra.mxu0 0.0
        %2487 = vmatprep.subr.mxu0 0.0
        %2488 = vmatpush1.msra.mxu0 0.0
        %2489 = vmatprep.subr.mxu0 0.0
        %2490 = vmatpush1.msra.mxu0 0.0
        %2491 = vmatprep.subr.mxu0 0.0
        %2492 = vmatpush1.msra.mxu0 0.0
        %2493 = vmatprep.subr.mxu0 0.0
        %2494 = vmatpush1.msra.mxu0 0.0
        %2495 = vmatprep.subr.mxu0 0.0
        %2496 = vmatpush1.msra.mxu0 0.0
        %2497 = vmatprep.subr.mxu0 0.0
        %2498 = vmatpush1.msra.mxu0 0.0
        %2499 = vmatprep.subr.mxu0 0.0
        %2500 = vmatpush1.msra.mxu0 0.0
        %2501 = vmatprep.subr.mxu0 0.0
        %2502 = vmatpush1.msra.mxu0 0.0
        %2503 = vmatprep.subr.mxu0 0.0
        %2504 = vmatpush1.msra.mxu0 0.0
        %2505 = vmatprep.subr.mxu0 0.0
        %2506 = vmatpush1.msra.mxu0 0.0
        %2507 = vmatprep.subr.mxu0 0.0
        %2508 = vmatpush1.msra.mxu0 %v2475
        %2509 = vmatprep.subr.mxu0 0.0
        %2510 = vmatpush2.msra.mxu0 0.0
        %2511 = vmatprep.subr.mxu0 0.0
        %2512 = vmatpush2.msra.mxu0 0.0
        %2513 = vmatprep.subr.mxu0 0.0
        %2514 = vmatpush2.msra.mxu0 0.0
        %2515 = vmatprep.subr.mxu0 0.0
        %2516 = vmatpush2.msra.mxu0 0.0
        %2517 = vmatprep.subr.mxu0 0.0
        %2518 = vmatpush2.msra.mxu0 0.0
        %2519 = vmatprep.subr.mxu0 0.0
        %2520 = vmatpush2.msra.mxu0 0.0
        %2521 = vmatprep.subr.mxu0 0.0
        %2522 = vmatpush2.msra.mxu0 0.0
        %2523 = vmatprep.subr.mxu0 0.0
        %2524 = vmatpush2.msra.mxu0 0.0
        %2525 = vmatprep.subr.mxu0 0.0
        %2526 = vmatpush2.msra.mxu0 0.0
        %2527 = vmatprep.subr.mxu0 0.0
        %2528 = vmatpush2.msra.mxu0 0.0
        %2529 = vmatprep.subr.mxu0 0.0
        %2530 = vmatpush2.msra.mxu0 0.0
        %2531 = vmatprep.subr.mxu0 0.0
        %2532 = vmatpush2.msra.mxu0 0.0
        %2533 = vmatprep.subr.mxu0 0.0
        %2534 = vmatpush2.msra.mxu0 0.0
        %2535 = vmatprep.subr.mxu0 0.0
        %2536 = vmatpush2.msra.mxu0 0.0
        %2537 = vmatprep.subr.mxu0 0.0
        %2538 = vmatpush2.msra.mxu0 0.0
        %2539 = vmatprep.subr.mxu0 0.0
        %2540 = vmatpush2.msra.mxu0 0.0
        %2541 = vmatprep.mubr.f32.mxu0 0.0
        %2542 = vmatmul.mubr.f32.gmra.mxu0 %v2473
        %v2543 = vpop.f32.mrf.mxu0
        %v2544 = vadd.f32 0.0, %v2543
        %v2545 = vpop.f32.mrf.mxu0
        %2546 = vdwg.mxu0
        %2547 = vrot.lane.b32.xlu0 %v2380, 120
        %v2548 = vpop.permute.xlu0 %2547
        %2549 = vrot.lane.b32.xlu0 %v2372, 88
        %v2550 = vpop.permute.xlu0 %2549
        %v2551 = vsel %vm1073, %v2548, 0
        %v2553 = vsel %vm1073, %v2550, 0
        %2555 = vmatprep.subr.mxu0 0.0
        %2556 = vmatpush1.xpose.msra.mxu0 0.0
        %2557 = vmatprep.subr.mxu0 0.0
        %2558 = vmatpush1.xpose.msra.mxu0 0.0
        %2559 = vmatprep.subr.mxu0 0.0
        %2560 = vmatpush1.xpose.msra.mxu0 0.0
        %2561 = vmatprep.subr.mxu0 0.0
        %2562 = vmatpush1.xpose.msra.mxu0 0.0
        %2563 = vmatprep.subr.mxu0 0.0
        %2564 = vmatpush1.xpose.msra.mxu0 0.0
        %2565 = vmatprep.subr.mxu0 0.0
        %2566 = vmatpush1.xpose.msra.mxu0 0.0
        %2567 = vmatprep.subr.mxu0 0.0
        %2568 = vmatpush1.xpose.msra.mxu0 0.0
        %2569 = vmatprep.subr.mxu0 0.0
        %2570 = vmatpush1.xpose.msra.mxu0 0.0
        %2571 = vmatprep.subr.mxu0 0.0
        %2572 = vmatpush1.xpose.msra.mxu0 0.0
        %2573 = vmatprep.subr.mxu0 0.0
        %2574 = vmatpush1.xpose.msra.mxu0 0.0
        %2575 = vmatprep.subr.mxu0 0.0
        %2576 = vmatpush1.xpose.msra.mxu0 0.0
        %2577 = vmatprep.subr.mxu0 0.0
        %2578 = vmatpush1.xpose.msra.mxu0 0.0
        %2579 = vmatprep.subr.mxu0 0.0
        %2580 = vmatpush1.xpose.msra.mxu0 0.0
        %2581 = vmatprep.subr.mxu0 0.0
        %2582 = vmatpush1.xpose.msra.mxu0 0.0
        %2583 = vmatprep.subr.mxu0 0.0
        %2584 = vmatpush1.xpose.msra.mxu0 0.0
        %2585 = vmatprep.subr.mxu0 0.0
        %2586 = vmatpush1.xpose.msra.mxu0 %v2553
        %2587 = vmatprep.subr.mxu0 0.0
        %2588 = vmatpush2.xpose.msra.mxu0 0.0
        %2589 = vmatprep.subr.mxu0 0.0
        %2590 = vmatpush2.xpose.msra.mxu0 0.0
        %2591 = vmatprep.subr.mxu0 0.0
        %2592 = vmatpush2.xpose.msra.mxu0 0.0
        %2593 = vmatprep.subr.mxu0 0.0
        %2594 = vmatpush2.xpose.msra.mxu0 0.0
        %2595 = vmatprep.subr.mxu0 0.0
        %2596 = vmatpush2.xpose.msra.mxu0 0.0
        %2597 = vmatprep.subr.mxu0 0.0
        %2598 = vmatpush2.xpose.msra.mxu0 0.0
        %2599 = vmatprep.subr.mxu0 0.0
        %2600 = vmatpush2.xpose.msra.mxu0 0.0
        %2601 = vmatprep.subr.mxu0 0.0
        %2602 = vmatpush2.xpose.msra.mxu0 0.0
        %2603 = vmatprep.subr.mxu0 0.0
        %2604 = vmatpush2.xpose.msra.mxu0 0.0
        %2605 = vmatprep.subr.mxu0 0.0
        %2606 = vmatpush2.xpose.msra.mxu0 0.0
        %2607 = vmatprep.subr.mxu0 0.0
        %2608 = vmatpush2.xpose.msra.mxu0 0.0
        %2609 = vmatprep.subr.mxu0 0.0
        %2610 = vmatpush2.xpose.msra.mxu0 0.0
        %2611 = vmatprep.subr.mxu0 0.0
        %2612 = vmatpush2.xpose.msra.mxu0 0.0
        %2613 = vmatprep.subr.mxu0 0.0
        %2614 = vmatpush2.xpose.msra.mxu0 0.0
        %2615 = vmatprep.subr.mxu0 0.0
        %2616 = vmatpush2.xpose.msra.mxu0 0.0
        %2617 = vmatprep.subr.mxu0 0.0
        %2618 = vmatpush2.xpose.msra.mxu0 0.0
        %2619 = vmatprep.mubr.f32.mxu0 0.0
        %2620 = vmatmul.mubr.f32.gmra.mxu0 %v2551
        %v2621 = vpop.f32.mrf.mxu0
        %v2622 = vadd.f32 0.0, %v2621
        %v2623 = vpop.f32.mrf.mxu0
        %2624 = vdwg.mxu0
        %v2625 = vsel %vm1149, %v2622, -inf
        %2626 = vmax.xlane.f32.xlu0 %v2625
        %v2627 = vpop.xlane.xlu0 %2626
        %v2628 = vsub.f32 %v2622, %v2627
        %v2629 = vmul.f32 %v2628, 1.442695
        %v2630 = vpow.pop %v2629
        %v2631 = vsel %vm1149, %v2630, 0.0
        %2632 = vadd.xlane.f32.xlu0 %v2631
        %v2633 = vpop.xlane.xlu0 %2632
        %v2634 = vrcp.pop %v2633
        %v2635 = vmul.f32 %v2630, %v2634
        %2636 = vrot.lane.b32.xlu0 %v2372, 56
        %v2637 = vpop.permute.xlu0 %2636
        %v2639 = vsel %vm1163, %v2635, 0
        %v2641 = vsel %vm1167, %v2637, 0
        %2643 = vmatprep.subr.mxu0 0.0
        %2644 = vmatpush1.msra.mxu0 0.0
        %2645 = vmatprep.subr.mxu0 0.0
        %2646 = vmatpush1.msra.mxu0 0.0
        %2647 = vmatprep.subr.mxu0 0.0
        %2648 = vmatpush1.msra.mxu0 0.0
        %2649 = vmatprep.subr.mxu0 0.0
        %2650 = vmatpush1.msra.mxu0 0.0
        %2651 = vmatprep.subr.mxu0 0.0
        %2652 = vmatpush1.msra.mxu0 0.0
        %2653 = vmatprep.subr.mxu0 0.0
        %2654 = vmatpush1.msra.mxu0 0.0
        %2655 = vmatprep.subr.mxu0 0.0
        %2656 = vmatpush1.msra.mxu0 0.0
        %2657 = vmatprep.subr.mxu0 0.0
        %2658 = vmatpush1.msra.mxu0 0.0
        %2659 = vmatprep.subr.mxu0 0.0
        %2660 = vmatpush1.msra.mxu0 0.0
        %2661 = vmatprep.subr.mxu0 0.0
        %2662 = vmatpush1.msra.mxu0 0.0
        %2663 = vmatprep.subr.mxu0 0.0
        %2664 = vmatpush1.msra.mxu0 0.0
        %2665 = vmatprep.subr.mxu0 0.0
        %2666 = vmatpush1.msra.mxu0 0.0
        %2667 = vmatprep.subr.mxu0 0.0
        %2668 = vmatpush1.msra.mxu0 0.0
        %2669 = vmatprep.subr.mxu0 0.0
        %2670 = vmatpush1.msra.mxu0 0.0
        %2671 = vmatprep.subr.mxu0 0.0
        %2672 = vmatpush1.msra.mxu0 0.0
        %2673 = vmatprep.subr.mxu0 0.0
        %2674 = vmatpush1.msra.mxu0 %v2641
        %2675 = vmatprep.subr.mxu0 0.0
        %2676 = vmatpush2.msra.mxu0 0.0
        %2677 = vmatprep.subr.mxu0 0.0
        %2678 = vmatpush2.msra.mxu0 0.0
        %2679 = vmatprep.subr.mxu0 0.0
        %2680 = vmatpush2.msra.mxu0 0.0
        %2681 = vmatprep.subr.mxu0 0.0
        %2682 = vmatpush2.msra.mxu0 0.0
        %2683 = vmatprep.subr.mxu0 0.0
        %2684 = vmatpush2.msra.mxu0 0.0
        %2685 = vmatprep.subr.mxu0 0.0
        %2686 = vmatpush2.msra.mxu0 0.0
        %2687 = vmatprep.subr.mxu0 0.0
        %2688 = vmatpush2.msra.mxu0 0.0
        %2689 = vmatprep.subr.mxu0 0.0
        %2690 = vmatpush2.msra.mxu0 0.0
        %2691 = vmatprep.subr.mxu0 0.0
        %2692 = vmatpush2.msra.mxu0 0.0
        %2693 = vmatprep.subr.mxu0 0.0
        %2694 = vmatpush2.msra.mxu0 0.0
        %2695 = vmatprep.subr.mxu0 0.0
        %2696 = vmatpush2.msra.mxu0 0.0
        %2697 = vmatprep.subr.mxu0 0.0
        %2698 = vmatpush2.msra.mxu0 0.0
        %2699 = vmatprep.subr.mxu0 0.0
        %2700 = vmatpush2.msra.mxu0 0.0
        %2701 = vmatprep.subr.mxu0 0.0
        %2702 = vmatpush2.msra.mxu0 0.0
        %2703 = vmatprep.subr.mxu0 0.0
        %2704 = vmatpush2.msra.mxu0 0.0
        %2705 = vmatprep.subr.mxu0 0.0
        %2706 = vmatpush2.msra.mxu0 0.0
        %2707 = vmatprep.mubr.f32.mxu0 0.0
        %2708 = vmatmul.mubr.f32.gmra.mxu0 %v2639
        %v2709 = vpop.f32.mrf.mxu0
        %v2710 = vadd.f32 0.0, %v2709
        %v2711 = vpop.f32.mrf.mxu0
        %2712 = vdwg.mxu0
        %v2714 = vsel %vm1073, %v2710, 0
        %2716 = vmatprep.subr.mxu0 0.0
        %2717 = vmatpush1.msra.mxu0 0.0
        %2718 = vmatprep.subr.mxu0 0.0
        %2719 = vmatpush1.msra.mxu0 0.0
        %2720 = vmatprep.subr.mxu0 0.0
        %2721 = vmatpush1.msra.mxu0 0.0
        %2722 = vmatprep.subr.mxu0 0.0
        %2723 = vmatpush1.msra.mxu0 0.0
        %2724 = vmatprep.subr.mxu0 0.0
        %2725 = vmatpush1.msra.mxu0 0.0
        %2726 = vmatprep.subr.mxu0 0.0
        %2727 = vmatpush1.msra.mxu0 0.0
        %2728 = vmatprep.subr.mxu0 0.0
        %2729 = vmatpush1.msra.mxu0 0.0
        %2730 = vmatprep.subr.mxu0 0.0
        %2731 = vmatpush1.msra.mxu0 0.0
        %2732 = vmatprep.subr.mxu0 0.0
        %2733 = vmatpush1.msra.mxu0 0.0
        %2734 = vmatprep.subr.mxu0 0.0
        %2735 = vmatpush1.msra.mxu0 0.0
        %2736 = vmatprep.subr.mxu0 0.0
        %2737 = vmatpush1.msra.mxu0 0.0
        %2738 = vmatprep.subr.mxu0 0.0
        %2739 = vmatpush1.msra.mxu0 0.0
        %2740 = vmatprep.subr.mxu0 0.0
        %2741 = vmatpush1.msra.mxu0 0.0
        %2742 = vmatprep.subr.mxu0 0.0
        %2743 = vmatpush1.msra.mxu0 0.0
        %2744 = vmatprep.subr.mxu0 0.0
        %2745 = vmatpush1.msra.mxu0 0.0
        %2746 = vmatprep.subr.mxu0 0.0
        %2747 = vmatpush1.msra.mxu0 %v2377
        %2748 = vmatprep.subr.mxu0 0.0
        %2749 = vmatpush2.msra.mxu0 0.0
        %2750 = vmatprep.subr.mxu0 0.0
        %2751 = vmatpush2.msra.mxu0 0.0
        %2752 = vmatprep.subr.mxu0 0.0
        %2753 = vmatpush2.msra.mxu0 0.0
        %2754 = vmatprep.subr.mxu0 0.0
        %2755 = vmatpush2.msra.mxu0 0.0
        %2756 = vmatprep.subr.mxu0 0.0
        %2757 = vmatpush2.msra.mxu0 0.0
        %2758 = vmatprep.subr.mxu0 0.0
        %2759 = vmatpush2.msra.mxu0 0.0
        %2760 = vmatprep.subr.mxu0 0.0
        %2761 = vmatpush2.msra.mxu0 0.0
        %2762 = vmatprep.subr.mxu0 0.0
        %2763 = vmatpush2.msra.mxu0 0.0
        %2764 = vmatprep.subr.mxu0 0.0
        %2765 = vmatpush2.msra.mxu0 0.0
        %2766 = vmatprep.subr.mxu0 0.0
        %2767 = vmatpush2.msra.mxu0 0.0
        %2768 = vmatprep.subr.mxu0 0.0
        %2769 = vmatpush2.msra.mxu0 0.0
        %2770 = vmatprep.subr.mxu0 0.0
        %2771 = vmatpush2.msra.mxu0 0.0
        %2772 = vmatprep.subr.mxu0 0.0
        %2773 = vmatpush2.msra.mxu0 0.0
        %2774 = vmatprep.subr.mxu0 0.0
        %2775 = vmatpush2.msra.mxu0 0.0
        %2776 = vmatprep.subr.mxu0 0.0
        %2777 = vmatpush2.msra.mxu0 0.0
        %2778 = vmatprep.subr.mxu0 0.0
        %2779 = vmatpush2.msra.mxu0 0.0
        %2780 = vmatprep.mubr.f32.mxu0 0.0
        %2781 = vmatmul.mubr.f32.gmra.mxu0 %v2714
        %v2782 = vpop.f32.mrf.mxu0
        %v2783 = vadd.f32 0.0, %v2782
        %v2784 = vpop.f32.mrf.mxu0
        %2785 = vdwg.mxu0
        %v2787 = vsel %vm1073, %v2544, 0
        %2789 = vmatprep.subr.mxu0 0.0
        %2790 = vmatpush1.msra.mxu0 0.0
        %2791 = vmatprep.subr.mxu0 0.0
        %2792 = vmatpush1.msra.mxu0 0.0
        %2793 = vmatprep.subr.mxu0 0.0
        %2794 = vmatpush1.msra.mxu0 0.0
        %2795 = vmatprep.subr.mxu0 0.0
        %2796 = vmatpush1.msra.mxu0 0.0
        %2797 = vmatprep.subr.mxu0 0.0
        %2798 = vmatpush1.msra.mxu0 0.0
        %2799 = vmatprep.subr.mxu0 0.0
        %2800 = vmatpush1.msra.mxu0 0.0
        %2801 = vmatprep.subr.mxu0 0.0
        %2802 = vmatpush1.msra.mxu0 0.0
        %2803 = vmatprep.subr.mxu0 0.0
        %2804 = vmatpush1.msra.mxu0 0.0
        %2805 = vmatprep.subr.mxu0 0.0
        %2806 = vmatpush1.msra.mxu0 0.0
        %2807 = vmatprep.subr.mxu0 0.0
        %2808 = vmatpush1.msra.mxu0 0.0
        %2809 = vmatprep.subr.mxu0 0.0
        %2810 = vmatpush1.msra.mxu0 0.0
        %2811 = vmatprep.subr.mxu0 0.0
        %2812 = vmatpush1.msra.mxu0 0.0
        %2813 = vmatprep.subr.mxu0 0.0
        %2814 = vmatpush1.msra.mxu0 0.0
        %2815 = vmatprep.subr.mxu0 0.0
        %2816 = vmatpush1.msra.mxu0 0.0
        %2817 = vmatprep.subr.mxu0 0.0
        %2818 = vmatpush1.msra.mxu0 0.0
        %2819 = vmatprep.subr.mxu0 0.0
        %2820 = vmatpush1.msra.mxu0 %v2376
        %2821 = vmatprep.subr.mxu0 0.0
        %2822 = vmatpush2.msra.mxu0 0.0
        %2823 = vmatprep.subr.mxu0 0.0
        %2824 = vmatpush2.msra.mxu0 0.0
        %2825 = vmatprep.subr.mxu0 0.0
        %2826 = vmatpush2.msra.mxu0 0.0
        %2827 = vmatprep.subr.mxu0 0.0
        %2828 = vmatpush2.msra.mxu0 0.0
        %2829 = vmatprep.subr.mxu0 0.0
        %2830 = vmatpush2.msra.mxu0 0.0
        %2831 = vmatprep.subr.mxu0 0.0
        %2832 = vmatpush2.msra.mxu0 0.0
        %2833 = vmatprep.subr.mxu0 0.0
        %2834 = vmatpush2.msra.mxu0 0.0
        %2835 = vmatprep.subr.mxu0 0.0
        %2836 = vmatpush2.msra.mxu0 0.0
        %2837 = vmatprep.subr.mxu0 0.0
        %2838 = vmatpush2.msra.mxu0 0.0
        %2839 = vmatprep.subr.mxu0 0.0
        %2840 = vmatpush2.msra.mxu0 0.0
        %2841 = vmatprep.subr.mxu0 0.0
        %2842 = vmatpush2.msra.mxu0 0.0
        %2843 = vmatprep.subr.mxu0 0.0
        %2844 = vmatpush2.msra.mxu0 0.0
        %2845 = vmatprep.subr.mxu0 0.0
        %2846 = vmatpush2.msra.mxu0 0.0
        %2847 = vmatprep.subr.mxu0 0.0
        %2848 = vmatpush2.msra.mxu0 0.0
        %2849 = vmatprep.subr.mxu0 0.0
        %2850 = vmatpush2.msra.mxu0 0.0
        %2851 = vmatprep.subr.mxu0 0.0
        %2852 = vmatpush2.msra.mxu0 0.0
        %2853 = vmatprep.mubr.f32.mxu0 0.0
        %2854 = vmatmul.mubr.f32.gmra.mxu0 %v2787
        %v2855 = vpop.f32.mrf.mxu0
        %v2856 = vadd.f32 %v2783, %v2855
        %v2857 = vpop.f32.mrf.mxu0
        %2858 = vdwg.mxu0
        %2859 = vrot.lane.b32.xlu0 %v2380, 112
        %v2860 = vpop.permute.xlu0 %2859
        %2861 = vrot.lane.b32.xlu0 %v2372, 80
        %v2862 = vpop.permute.xlu0 %2861
        %v2863 = vsel %vm1073, %v2860, 0
        %v2865 = vsel %vm1073, %v2862, 0
        %2867 = vmatprep.subr.mxu0 0.0
        %2868 = vmatpush1.xpose.msra.mxu0 0.0
        %2869 = vmatprep.subr.mxu0 0.0
        %2870 = vmatpush1.xpose.msra.mxu0 0.0
        %2871 = vmatprep.subr.mxu0 0.0
        %2872 = vmatpush1.xpose.msra.mxu0 0.0
        %2873 = vmatprep.subr.mxu0 0.0
        %2874 = vmatpush1.xpose.msra.mxu0 0.0
        %2875 = vmatprep.subr.mxu0 0.0
        %2876 = vmatpush1.xpose.msra.mxu0 0.0
        %2877 = vmatprep.subr.mxu0 0.0
        %2878 = vmatpush1.xpose.msra.mxu0 0.0
        %2879 = vmatprep.subr.mxu0 0.0
        %2880 = vmatpush1.xpose.msra.mxu0 0.0
        %2881 = vmatprep.subr.mxu0 0.0
        %2882 = vmatpush1.xpose.msra.mxu0 0.0
        %2883 = vmatprep.subr.mxu0 0.0
        %2884 = vmatpush1.xpose.msra.mxu0 0.0
        %2885 = vmatprep.subr.mxu0 0.0
        %2886 = vmatpush1.xpose.msra.mxu0 0.0
        %2887 = vmatprep.subr.mxu0 0.0
        %2888 = vmatpush1.xpose.msra.mxu0 0.0
        %2889 = vmatprep.subr.mxu0 0.0
        %2890 = vmatpush1.xpose.msra.mxu0 0.0
        %2891 = vmatprep.subr.mxu0 0.0
        %2892 = vmatpush1.xpose.msra.mxu0 0.0
        %2893 = vmatprep.subr.mxu0 0.0
        %2894 = vmatpush1.xpose.msra.mxu0 0.0
        %2895 = vmatprep.subr.mxu0 0.0
        %2896 = vmatpush1.xpose.msra.mxu0 0.0
        %2897 = vmatprep.subr.mxu0 0.0
        %2898 = vmatpush1.xpose.msra.mxu0 %v2865
        %2899 = vmatprep.subr.mxu0 0.0
        %2900 = vmatpush2.xpose.msra.mxu0 0.0
        %2901 = vmatprep.subr.mxu0 0.0
        %2902 = vmatpush2.xpose.msra.mxu0 0.0
        %2903 = vmatprep.subr.mxu0 0.0
        %2904 = vmatpush2.xpose.msra.mxu0 0.0
        %2905 = vmatprep.subr.mxu0 0.0
        %2906 = vmatpush2.xpose.msra.mxu0 0.0
        %2907 = vmatprep.subr.mxu0 0.0
        %2908 = vmatpush2.xpose.msra.mxu0 0.0
        %2909 = vmatprep.subr.mxu0 0.0
        %2910 = vmatpush2.xpose.msra.mxu0 0.0
        %2911 = vmatprep.subr.mxu0 0.0
        %2912 = vmatpush2.xpose.msra.mxu0 0.0
        %2913 = vmatprep.subr.mxu0 0.0
        %2914 = vmatpush2.xpose.msra.mxu0 0.0
        %2915 = vmatprep.subr.mxu0 0.0
        %2916 = vmatpush2.xpose.msra.mxu0 0.0
        %2917 = vmatprep.subr.mxu0 0.0
        %2918 = vmatpush2.xpose.msra.mxu0 0.0
        %2919 = vmatprep.subr.mxu0 0.0
        %2920 = vmatpush2.xpose.msra.mxu0 0.0
        %2921 = vmatprep.subr.mxu0 0.0
        %2922 = vmatpush2.xpose.msra.mxu0 0.0
        %2923 = vmatprep.subr.mxu0 0.0
        %2924 = vmatpush2.xpose.msra.mxu0 0.0
        %2925 = vmatprep.subr.mxu0 0.0
        %2926 = vmatpush2.xpose.msra.mxu0 0.0
        %2927 = vmatprep.subr.mxu0 0.0
        %2928 = vmatpush2.xpose.msra.mxu0 0.0
        %2929 = vmatprep.subr.mxu0 0.0
        %2930 = vmatpush2.xpose.msra.mxu0 0.0
        %2931 = vmatprep.mubr.f32.mxu0 0.0
        %2932 = vmatmul.mubr.f32.gmra.mxu0 %v2863
        %v2933 = vpop.f32.mrf.mxu0
        %v2934 = vadd.f32 0.0, %v2933
        %v2935 = vpop.f32.mrf.mxu0
        %2936 = vdwg.mxu0
        %v2937 = vsel %vm1149, %v2934, -inf
        %2938 = vmax.xlane.f32.xlu0 %v2937
        %v2939 = vpop.xlane.xlu0 %2938
        %v2940 = vsub.f32 %v2934, %v2939
        %v2941 = vmul.f32 %v2940, 1.442695
        %v2942 = vpow.pop %v2941
        %v2943 = vsel %vm1149, %v2942, 0.0
        %2944 = vadd.xlane.f32.xlu0 %v2943
        %v2945 = vpop.xlane.xlu0 %2944
        %v2946 = vrcp.pop %v2945
        %v2947 = vmul.f32 %v2942, %v2946
        %2948 = vrot.lane.b32.xlu0 %v2372, 48
        %v2949 = vpop.permute.xlu0 %2948
        %v2951 = vsel %vm1163, %v2947, 0
        %v2953 = vsel %vm1167, %v2949, 0
        %2955 = vmatprep.subr.mxu0 0.0
        %2956 = vmatpush1.msra.mxu0 0.0
        %2957 = vmatprep.subr.mxu0 0.0
        %2958 = vmatpush1.msra.mxu0 0.0
        %2959 = vmatprep.subr.mxu0 0.0
        %2960 = vmatpush1.msra.mxu0 0.0
        %2961 = vmatprep.subr.mxu0 0.0
        %2962 = vmatpush1.msra.mxu0 0.0
        %2963 = vmatprep.subr.mxu0 0.0
        %2964 = vmatpush1.msra.mxu0 0.0
        %2965 = vmatprep.subr.mxu0 0.0
        %2966 = vmatpush1.msra.mxu0 0.0
        %2967 = vmatprep.subr.mxu0 0.0
        %2968 = vmatpush1.msra.mxu0 0.0
        %2969 = vmatprep.subr.mxu0 0.0
        %2970 = vmatpush1.msra.mxu0 0.0
        %2971 = vmatprep.subr.mxu0 0.0
        %2972 = vmatpush1.msra.mxu0 0.0
        %2973 = vmatprep.subr.mxu0 0.0
        %2974 = vmatpush1.msra.mxu0 0.0
        %2975 = vmatprep.subr.mxu0 0.0
        %2976 = vmatpush1.msra.mxu0 0.0
        %2977 = vmatprep.subr.mxu0 0.0
        %2978 = vmatpush1.msra.mxu0 0.0
        %2979 = vmatprep.subr.mxu0 0.0
        %2980 = vmatpush1.msra.mxu0 0.0
        %2981 = vmatprep.subr.mxu0 0.0
        %2982 = vmatpush1.msra.mxu0 0.0
        %2983 = vmatprep.subr.mxu0 0.0
        %2984 = vmatpush1.msra.mxu0 0.0
        %2985 = vmatprep.subr.mxu0 0.0
        %2986 = vmatpush1.msra.mxu0 %v2953
        %2987 = vmatprep.subr.mxu0 0.0
        %2988 = vmatpush2.msra.mxu0 0.0
        %2989 = vmatprep.subr.mxu0 0.0
        %2990 = vmatpush2.msra.mxu0 0.0
        %2991 = vmatprep.subr.mxu0 0.0
        %2992 = vmatpush2.msra.mxu0 0.0
        %2993 = vmatprep.subr.mxu0 0.0
        %2994 = vmatpush2.msra.mxu0 0.0
        %2995 = vmatprep.subr.mxu0 0.0
        %2996 = vmatpush2.msra.mxu0 0.0
        %2997 = vmatprep.subr.mxu0 0.0
        %2998 = vmatpush2.msra.mxu0 0.0
        %2999 = vmatprep.subr.mxu0 0.0
        %3000 = vmatpush2.msra.mxu0 0.0
        %3001 = vmatprep.subr.mxu0 0.0
        %3002 = vmatpush2.msra.mxu0 0.0
        %3003 = vmatprep.subr.mxu0 0.0
        %3004 = vmatpush2.msra.mxu0 0.0
        %3005 = vmatprep.subr.mxu0 0.0
        %3006 = vmatpush2.msra.mxu0 0.0
        %3007 = vmatprep.subr.mxu0 0.0
        %3008 = vmatpush2.msra.mxu0 0.0
        %3009 = vmatprep.subr.mxu0 0.0
        %3010 = vmatpush2.msra.mxu0 0.0
        %3011 = vmatprep.subr.mxu0 0.0
        %3012 = vmatpush2.msra.mxu0 0.0
        %3013 = vmatprep.subr.mxu0 0.0
        %3014 = vmatpush2.msra.mxu0 0.0
        %3015 = vmatprep.subr.mxu0 0.0
        %3016 = vmatpush2.msra.mxu0 0.0
        %3017 = vmatprep.subr.mxu0 0.0
        %3018 = vmatpush2.msra.mxu0 0.0
        %3019 = vmatprep.mubr.f32.mxu0 0.0
        %3020 = vmatmul.mubr.f32.gmra.mxu0 %v2951
        %v3021 = vpop.f32.mrf.mxu0
        %v3022 = vadd.f32 0.0, %v3021
        %v3023 = vpop.f32.mrf.mxu0
        %3024 = vdwg.mxu0
        %v3026 = vsel %vm1073, %v3022, 0
        %3028 = vmatprep.subr.mxu0 0.0
        %3029 = vmatpush1.msra.mxu0 0.0
        %3030 = vmatprep.subr.mxu0 0.0
        %3031 = vmatpush1.msra.mxu0 0.0
        %3032 = vmatprep.subr.mxu0 0.0
        %3033 = vmatpush1.msra.mxu0 0.0
        %3034 = vmatprep.subr.mxu0 0.0
        %3035 = vmatpush1.msra.mxu0 0.0
        %3036 = vmatprep.subr.mxu0 0.0
        %3037 = vmatpush1.msra.mxu0 0.0
        %3038 = vmatprep.subr.mxu0 0.0
        %3039 = vmatpush1.msra.mxu0 0.0
        %3040 = vmatprep.subr.mxu0 0.0
        %3041 = vmatpush1.msra.mxu0 0.0
        %3042 = vmatprep.subr.mxu0 0.0
        %3043 = vmatpush1.msra.mxu0 0.0
        %3044 = vmatprep.subr.mxu0 0.0
        %3045 = vmatpush1.msra.mxu0 0.0
        %3046 = vmatprep.subr.mxu0 0.0
        %3047 = vmatpush1.msra.mxu0 0.0
        %3048 = vmatprep.subr.mxu0 0.0
        %3049 = vmatpush1.msra.mxu0 0.0
        %3050 = vmatprep.subr.mxu0 0.0
        %3051 = vmatpush1.msra.mxu0 0.0
        %3052 = vmatprep.subr.mxu0 0.0
        %3053 = vmatpush1.msra.mxu0 0.0
        %3054 = vmatprep.subr.mxu0 0.0
        %3055 = vmatpush1.msra.mxu0 0.0
        %3056 = vmatprep.subr.mxu0 0.0
        %3057 = vmatpush1.msra.mxu0 0.0
        %3058 = vmatprep.subr.mxu0 0.0
        %3059 = vmatpush1.msra.mxu0 %v2378
        %3060 = vmatprep.subr.mxu0 0.0
        %3061 = vmatpush2.msra.mxu0 0.0
        %3062 = vmatprep.subr.mxu0 0.0
        %3063 = vmatpush2.msra.mxu0 0.0
        %3064 = vmatprep.subr.mxu0 0.0
        %3065 = vmatpush2.msra.mxu0 0.0
        %3066 = vmatprep.subr.mxu0 0.0
        %3067 = vmatpush2.msra.mxu0 0.0
        %3068 = vmatprep.subr.mxu0 0.0
        %3069 = vmatpush2.msra.mxu0 0.0
        %3070 = vmatprep.subr.mxu0 0.0
        %3071 = vmatpush2.msra.mxu0 0.0
        %3072 = vmatprep.subr.mxu0 0.0
        %3073 = vmatpush2.msra.mxu0 0.0
        %3074 = vmatprep.subr.mxu0 0.0
        %3075 = vmatpush2.msra.mxu0 0.0
        %3076 = vmatprep.subr.mxu0 0.0
        %3077 = vmatpush2.msra.mxu0 0.0
        %3078 = vmatprep.subr.mxu0 0.0
        %3079 = vmatpush2.msra.mxu0 0.0
        %3080 = vmatprep.subr.mxu0 0.0
        %3081 = vmatpush2.msra.mxu0 0.0
        %3082 = vmatprep.subr.mxu0 0.0
        %3083 = vmatpush2.msra.mxu0 0.0
        %3084 = vmatprep.subr.mxu0 0.0
        %3085 = vmatpush2.msra.mxu0 0.0
        %3086 = vmatprep.subr.mxu0 0.0
        %3087 = vmatpush2.msra.mxu0 0.0
        %3088 = vmatprep.subr.mxu0 0.0
        %3089 = vmatpush2.msra.mxu0 0.0
        %3090 = vmatprep.subr.mxu0 0.0
        %3091 = vmatpush2.msra.mxu0 0.0
        %3092 = vmatprep.mubr.f32.mxu0 0.0
        %3093 = vmatmul.mubr.f32.gmra.mxu0 %v3026
        %v3094 = vpop.f32.mrf.mxu0
        %v3095 = vadd.f32 0.0, %v3094
        %v3096 = vpop.f32.mrf.mxu0
        %3097 = vdwg.mxu0
        %v3098 = vadd.f32 %v2856, %v3095
        %3099 = vrot.lane.b32.xlu0 %v2380, 104
        %v3100 = vpop.permute.xlu0 %3099
        %3101 = vrot.lane.b32.xlu0 %v2372, 72
        %v3102 = vpop.permute.xlu0 %3101
        %v3103 = vsel %vm1073, %v3100, 0
        %v3105 = vsel %vm1073, %v3102, 0
        %3107 = vmatprep.subr.mxu0 0.0
        %3108 = vmatpush1.xpose.msra.mxu0 0.0
        %3109 = vmatprep.subr.mxu0 0.0
        %3110 = vmatpush1.xpose.msra.mxu0 0.0
        %3111 = vmatprep.subr.mxu0 0.0
        %3112 = vmatpush1.xpose.msra.mxu0 0.0
        %3113 = vmatprep.subr.mxu0 0.0
        %3114 = vmatpush1.xpose.msra.mxu0 0.0
        %3115 = vmatprep.subr.mxu0 0.0
        %3116 = vmatpush1.xpose.msra.mxu0 0.0
        %3117 = vmatprep.subr.mxu0 0.0
        %3118 = vmatpush1.xpose.msra.mxu0 0.0
        %3119 = vmatprep.subr.mxu0 0.0
        %3120 = vmatpush1.xpose.msra.mxu0 0.0
        %3121 = vmatprep.subr.mxu0 0.0
        %3122 = vmatpush1.xpose.msra.mxu0 0.0
        %3123 = vmatprep.subr.mxu0 0.0
        %3124 = vmatpush1.xpose.msra.mxu0 0.0
        %3125 = vmatprep.subr.mxu0 0.0
        %3126 = vmatpush1.xpose.msra.mxu0 0.0
        %3127 = vmatprep.subr.mxu0 0.0
        %3128 = vmatpush1.xpose.msra.mxu0 0.0
        %3129 = vmatprep.subr.mxu0 0.0
        %3130 = vmatpush1.xpose.msra.mxu0 0.0
        %3131 = vmatprep.subr.mxu0 0.0
        %3132 = vmatpush1.xpose.msra.mxu0 0.0
        %3133 = vmatprep.subr.mxu0 0.0
        %3134 = vmatpush1.xpose.msra.mxu0 0.0
        %3135 = vmatprep.subr.mxu0 0.0
        %3136 = vmatpush1.xpose.msra.mxu0 0.0
        %3137 = vmatprep.subr.mxu0 0.0
        %3138 = vmatpush1.xpose.msra.mxu0 %v3105
        %3139 = vmatprep.subr.mxu0 0.0
        %3140 = vmatpush2.xpose.msra.mxu0 0.0
        %3141 = vmatprep.subr.mxu0 0.0
        %3142 = vmatpush2.xpose.msra.mxu0 0.0
        %3143 = vmatprep.subr.mxu0 0.0
        %3144 = vmatpush2.xpose.msra.mxu0 0.0
        %3145 = vmatprep.subr.mxu0 0.0
        %3146 = vmatpush2.xpose.msra.mxu0 0.0
        %3147 = vmatprep.subr.mxu0 0.0
        %3148 = vmatpush2.xpose.msra.mxu0 0.0
        %3149 = vmatprep.subr.mxu0 0.0
        %3150 = vmatpush2.xpose.msra.mxu0 0.0
        %3151 = vmatprep.subr.mxu0 0.0
        %3152 = vmatpush2.xpose.msra.mxu0 0.0
        %3153 = vmatprep.subr.mxu0 0.0
        %3154 = vmatpush2.xpose.msra.mxu0 0.0
        %3155 = vmatprep.subr.mxu0 0.0
        %3156 = vmatpush2.xpose.msra.mxu0 0.0
        %3157 = vmatprep.subr.mxu0 0.0
        %3158 = vmatpush2.xpose.msra.mxu0 0.0
        %3159 = vmatprep.subr.mxu0 0.0
        %3160 = vmatpush2.xpose.msra.mxu0 0.0
        %3161 = vmatprep.subr.mxu0 0.0
        %3162 = vmatpush2.xpose.msra.mxu0 0.0
        %3163 = vmatprep.subr.mxu0 0.0
        %3164 = vmatpush2.xpose.msra.mxu0 0.0
        %3165 = vmatprep.subr.mxu0 0.0
        %3166 = vmatpush2.xpose.msra.mxu0 0.0
        %3167 = vmatprep.subr.mxu0 0.0
        %3168 = vmatpush2.xpose.msra.mxu0 0.0
        %3169 = vmatprep.subr.mxu0 0.0
        %3170 = vmatpush2.xpose.msra.mxu0 0.0
        %3171 = vmatprep.mubr.f32.mxu0 0.0
        %3172 = vmatmul.mubr.f32.gmra.mxu0 %v3103
        %v3173 = vpop.f32.mrf.mxu0
        %v3174 = vadd.f32 0.0, %v3173
        %v3175 = vpop.f32.mrf.mxu0
        %3176 = vdwg.mxu0
        %v3177 = vsel %vm1149, %v3174, -inf
        %3178 = vmax.xlane.f32.xlu0 %v3177
        %v3179 = vpop.xlane.xlu0 %3178
        %v3180 = vsub.f32 %v3174, %v3179
        %v3181 = vmul.f32 %v3180, 1.442695
        %v3182 = vpow.pop %v3181
        %v3183 = vsel %vm1149, %v3182, 0.0
        %3184 = vadd.xlane.f32.xlu0 %v3183
        %v3185 = vpop.xlane.xlu0 %3184
        %v3186 = vrcp.pop %v3185
        %v3187 = vmul.f32 %v3182, %v3186
        %3188 = vrot.lane.b32.xlu0 %v2372, 40
        %v3189 = vpop.permute.xlu0 %3188
        %v3191 = vsel %vm1163, %v3187, 0
        %v3193 = vsel %vm1167, %v3189, 0
        %3195 = vmatprep.subr.mxu0 0.0
        %3196 = vmatpush1.msra.mxu0 0.0
        %3197 = vmatprep.subr.mxu0 0.0
        %3198 = vmatpush1.msra.mxu0 0.0
        %3199 = vmatprep.subr.mxu0 0.0
        %3200 = vmatpush1.msra.mxu0 0.0
        %3201 = vmatprep.subr.mxu0 0.0
        %3202 = vmatpush1.msra.mxu0 0.0
        %3203 = vmatprep.subr.mxu0 0.0
        %3204 = vmatpush1.msra.mxu0 0.0
        %3205 = vmatprep.subr.mxu0 0.0
        %3206 = vmatpush1.msra.mxu0 0.0
        %3207 = vmatprep.subr.mxu0 0.0
        %3208 = vmatpush1.msra.mxu0 0.0
        %3209 = vmatprep.subr.mxu0 0.0
        %3210 = vmatpush1.msra.mxu0 0.0
        %3211 = vmatprep.subr.mxu0 0.0
        %3212 = vmatpush1.msra.mxu0 0.0
        %3213 = vmatprep.subr.mxu0 0.0
        %3214 = vmatpush1.msra.mxu0 0.0
        %3215 = vmatprep.subr.mxu0 0.0
        %3216 = vmatpush1.msra.mxu0 0.0
        %3217 = vmatprep.subr.mxu0 0.0
        %3218 = vmatpush1.msra.mxu0 0.0
        %3219 = vmatprep.subr.mxu0 0.0
        %3220 = vmatpush1.msra.mxu0 0.0
        %3221 = vmatprep.subr.mxu0 0.0
        %3222 = vmatpush1.msra.mxu0 0.0
        %3223 = vmatprep.subr.mxu0 0.0
        %3224 = vmatpush1.msra.mxu0 0.0
        %3225 = vmatprep.subr.mxu0 0.0
        %3226 = vmatpush1.msra.mxu0 %v3193
        %3227 = vmatprep.subr.mxu0 0.0
        %3228 = vmatpush2.msra.mxu0 0.0
        %3229 = vmatprep.subr.mxu0 0.0
        %3230 = vmatpush2.msra.mxu0 0.0
        %3231 = vmatprep.subr.mxu0 0.0
        %3232 = vmatpush2.msra.mxu0 0.0
        %3233 = vmatprep.subr.mxu0 0.0
        %3234 = vmatpush2.msra.mxu0 0.0
        %3235 = vmatprep.subr.mxu0 0.0
        %3236 = vmatpush2.msra.mxu0 0.0
        %3237 = vmatprep.subr.mxu0 0.0
        %3238 = vmatpush2.msra.mxu0 0.0
        %3239 = vmatprep.subr.mxu0 0.0
        %3240 = vmatpush2.msra.mxu0 0.0
        %3241 = vmatprep.subr.mxu0 0.0
        %3242 = vmatpush2.msra.mxu0 0.0
        %3243 = vmatprep.subr.mxu0 0.0
        %3244 = vmatpush2.msra.mxu0 0.0
        %3245 = vmatprep.subr.mxu0 0.0
        %3246 = vmatpush2.msra.mxu0 0.0
        %3247 = vmatprep.subr.mxu0 0.0
        %3248 = vmatpush2.msra.mxu0 0.0
        %3249 = vmatprep.subr.mxu0 0.0
        %3250 = vmatpush2.msra.mxu0 0.0
        %3251 = vmatprep.subr.mxu0 0.0
        %3252 = vmatpush2.msra.mxu0 0.0
        %3253 = vmatprep.subr.mxu0 0.0
        %3254 = vmatpush2.msra.mxu0 0.0
        %3255 = vmatprep.subr.mxu0 0.0
        %3256 = vmatpush2.msra.mxu0 0.0
        %3257 = vmatprep.subr.mxu0 0.0
        %3258 = vmatpush2.msra.mxu0 0.0
        %3259 = vmatprep.mubr.f32.mxu0 0.0
        %3260 = vmatmul.mubr.f32.gmra.mxu0 %v3191
        %v3261 = vpop.f32.mrf.mxu0
        %v3262 = vadd.f32 0.0, %v3261
        %v3263 = vpop.f32.mrf.mxu0
        %3264 = vdwg.mxu0
        %v3266 = vsel %vm1073, %v3262, 0
        %3268 = vmatprep.subr.mxu0 0.0
        %3269 = vmatpush1.msra.mxu0 0.0
        %3270 = vmatprep.subr.mxu0 0.0
        %3271 = vmatpush1.msra.mxu0 0.0
        %3272 = vmatprep.subr.mxu0 0.0
        %3273 = vmatpush1.msra.mxu0 0.0
        %3274 = vmatprep.subr.mxu0 0.0
        %3275 = vmatpush1.msra.mxu0 0.0
        %3276 = vmatprep.subr.mxu0 0.0
        %3277 = vmatpush1.msra.mxu0 0.0
        %3278 = vmatprep.subr.mxu0 0.0
        %3279 = vmatpush1.msra.mxu0 0.0
        %3280 = vmatprep.subr.mxu0 0.0
        %3281 = vmatpush1.msra.mxu0 0.0
        %3282 = vmatprep.subr.mxu0 0.0
        %3283 = vmatpush1.msra.mxu0 0.0
        %3284 = vmatprep.subr.mxu0 0.0
        %3285 = vmatpush1.msra.mxu0 0.0
        %3286 = vmatprep.subr.mxu0 0.0
        %3287 = vmatpush1.msra.mxu0 0.0
        %3288 = vmatprep.subr.mxu0 0.0
        %3289 = vmatpush1.msra.mxu0 0.0
        %3290 = vmatprep.subr.mxu0 0.0
        %3291 = vmatpush1.msra.mxu0 0.0
        %3292 = vmatprep.subr.mxu0 0.0
        %3293 = vmatpush1.msra.mxu0 0.0
        %3294 = vmatprep.subr.mxu0 0.0
        %3295 = vmatpush1.msra.mxu0 0.0
        %3296 = vmatprep.subr.mxu0 0.0
        %3297 = vmatpush1.msra.mxu0 0.0
        %3298 = vmatprep.subr.mxu0 0.0
        %3299 = vmatpush1.msra.mxu0 %v2379
        %3300 = vmatprep.subr.mxu0 0.0
        %3301 = vmatpush2.msra.mxu0 0.0
        %3302 = vmatprep.subr.mxu0 0.0
        %3303 = vmatpush2.msra.mxu0 0.0
        %3304 = vmatprep.subr.mxu0 0.0
        %3305 = vmatpush2.msra.mxu0 0.0
        %3306 = vmatprep.subr.mxu0 0.0
        %3307 = vmatpush2.msra.mxu0 0.0
        %3308 = vmatprep.subr.mxu0 0.0
        %3309 = vmatpush2.msra.mxu0 0.0
        %3310 = vmatprep.subr.mxu0 0.0
        %3311 = vmatpush2.msra.mxu0 0.0
        %3312 = vmatprep.subr.mxu0 0.0
        %3313 = vmatpush2.msra.mxu0 0.0
        %3314 = vmatprep.subr.mxu0 0.0
        %3315 = vmatpush2.msra.mxu0 0.0
        %3316 = vmatprep.subr.mxu0 0.0
        %3317 = vmatpush2.msra.mxu0 0.0
        %3318 = vmatprep.subr.mxu0 0.0
        %3319 = vmatpush2.msra.mxu0 0.0
        %3320 = vmatprep.subr.mxu0 0.0
        %3321 = vmatpush2.msra.mxu0 0.0
        %3322 = vmatprep.subr.mxu0 0.0
        %3323 = vmatpush2.msra.mxu0 0.0
        %3324 = vmatprep.subr.mxu0 0.0
        %3325 = vmatpush2.msra.mxu0 0.0
        %3326 = vmatprep.subr.mxu0 0.0
        %3327 = vmatpush2.msra.mxu0 0.0
        %3328 = vmatprep.subr.mxu0 0.0
        %3329 = vmatpush2.msra.mxu0 0.0
        %3330 = vmatprep.subr.mxu0 0.0
        %3331 = vmatpush2.msra.mxu0 0.0
        %3332 = vmatprep.mubr.f32.mxu0 0.0
        %3333 = vmatmul.mubr.f32.gmra.mxu0 %v3266
        %v3334 = vpop.f32.mrf.mxu0
        %v3335 = vadd.f32 0.0, %v3334
        %v3336 = vpop.f32.mrf.mxu0
        %3337 = vdwg.mxu0
        %v3338 = vadd.f32 %v3098, %v3335
        %v3339 = vadd.f32 %v2257, %v3338
        %s3340 = scalar_lea.vmem %s8, 1
        %v3341 = vld [vmem:[%s3340] sm:$0x1]
        %v3343 = vlaneseq
        %v3344 = vshrl.u32 %v3343, 7
        %v3345 = vsub.s32 0, %v3344
        %v3346 = vrot.slane %v3341, %v3345
        %v3348 = vadd.f32 %v3339, %v3346
        %s3349 = scalar_lea.vmem %s9, 1
        %v3350 = vld [vmem:[%s3349] sm:$0x1]
        %s3351 = scalar_lea.vmem %s10, 1
        %v3352 = vld [vmem:[%s3351] sm:$0x1]
        %v3353 = vsel %vm951, %v3348, 0.0
        %3354 = vadd.xlane.f32.xlu0 %v3353
        %v3355 = vpop.xlane.xlu0 %3354
        %v3356 = vmul.f32 %v3355, %v955
        %v3357 = vsub.f32 %v3348, %v3356
        %v3358 = vmul.f32 %v3357, %v3357
        %v3359 = vsel %vm951, %v3358, 0.0
        %3360 = vadd.xlane.f32.xlu0 %v3359
        %v3361 = vpop.xlane.xlu0 %3360
        %v3362 = vmul.f32 %v3361, %v955
        %v3363 = vadd.f32 %v3362, 1e-06
        %v3364 = vrsqrt.pop %v3363
        %v3365 = vmul.f32 %v3357, %v3364
        %v3367 = vlaneseq
        %v3368 = vshrl.u32 %v3367, 7
        %v3369 = vsub.s32 0, %v3368
        %v3370 = vrot.slane %v3350, %v3369
        %v3372 = vmul.f32 %v3365, %v3370
        %v3374 = vlaneseq
        %v3375 = vshrl.u32 %v3374, 7
        %v3376 = vsub.s32 0, %v3375
        %v3377 = vrot.slane %v3352, %v3376
        %v3379 = vadd.f32 %v3372, %v3377
        %s3380 = scalar_lea.vmem %s11, 32
        %v3381 = vld [vmem:[%s3380] sm:$0xff]
        %v3382 = vld [vmem:[%s3380 + $0x8] sm:$0xff]
        %v3383 = vld [vmem:[%s3380 + $0x10] sm:$0xff]
        %v3384 = vld [vmem:[%s3380 + $0x18] sm:$0xff]
        %s3385 = scalar_lea.vmem %s12, 1
        %v3386 = vld [vmem:[%s3385] sm:$0x1]
        %v3388 = vlaneseq
        %v3389 = vshrl.u32 %v3388, 7
        %v3390 = vsub.s32 0, %v3389
        %v3391 = vrot.slane %v3386, %v3390
        %v3394 = vsel %vm991, %v3379, 0
        %3396 = vmatprep.subr.mxu0 0.0
        %3397 = vmatpush1.msra.mxu0 0.0
        %3398 = vmatprep.subr.mxu0 0.0
        %3399 = vmatpush1.msra.mxu0 0.0
        %3400 = vmatprep.subr.mxu0 0.0
        %3401 = vmatpush1.msra.mxu0 0.0
        %3402 = vmatprep.subr.mxu0 0.0
        %3403 = vmatpush1.msra.mxu0 0.0
        %3404 = vmatprep.subr.mxu0 0.0
        %3405 = vmatpush1.msra.mxu0 0.0
        %3406 = vmatprep.subr.mxu0 0.0
        %3407 = vmatpush1.msra.mxu0 0.0
        %3408 = vmatprep.subr.mxu0 0.0
        %3409 = vmatpush1.msra.mxu0 0.0
        %3410 = vmatprep.subr.mxu0 0.0
        %3411 = vmatpush1.msra.mxu0 0.0
        %3412 = vmatprep.subr.mxu0 0.0
        %3413 = vmatpush1.msra.mxu0 0.0
        %3414 = vmatprep.subr.mxu0 0.0
        %3415 = vmatpush1.msra.mxu0 0.0
        %3416 = vmatprep.subr.mxu0 0.0
        %3417 = vmatpush1.msra.mxu0 0.0
        %3418 = vmatprep.subr.mxu0 0.0
        %3419 = vmatpush1.msra.mxu0 0.0
        %3420 = vmatprep.subr.mxu0 0.0
        %3421 = vmatpush1.msra.mxu0 %v3384
        %3422 = vmatprep.subr.mxu0 0.0
        %3423 = vmatpush1.msra.mxu0 %v3383
        %3424 = vmatprep.subr.mxu0 0.0
        %3425 = vmatpush1.msra.mxu0 %v3382
        %3426 = vmatprep.subr.mxu0 0.0
        %3427 = vmatpush1.msra.mxu0 %v3381
        %3428 = vmatprep.subr.mxu0 0.0
        %3429 = vmatpush2.msra.mxu0 0.0
        %3430 = vmatprep.subr.mxu0 0.0
        %3431 = vmatpush2.msra.mxu0 0.0
        %3432 = vmatprep.subr.mxu0 0.0
        %3433 = vmatpush2.msra.mxu0 0.0
        %3434 = vmatprep.subr.mxu0 0.0
        %3435 = vmatpush2.msra.mxu0 0.0
        %3436 = vmatprep.subr.mxu0 0.0
        %3437 = vmatpush2.msra.mxu0 0.0
        %3438 = vmatprep.subr.mxu0 0.0
        %3439 = vmatpush2.msra.mxu0 0.0
        %3440 = vmatprep.subr.mxu0 0.0
        %3441 = vmatpush2.msra.mxu0 0.0
        %3442 = vmatprep.subr.mxu0 0.0
        %3443 = vmatpush2.msra.mxu0 0.0
        %3444 = vmatprep.subr.mxu0 0.0
        %3445 = vmatpush2.msra.mxu0 0.0
        %3446 = vmatprep.subr.mxu0 0.0
        %3447 = vmatpush2.msra.mxu0 0.0
        %3448 = vmatprep.subr.mxu0 0.0
        %3449 = vmatpush2.msra.mxu0 0.0
        %3450 = vmatprep.subr.mxu0 0.0
        %3451 = vmatpush2.msra.mxu0 0.0
        %3452 = vmatprep.subr.mxu0 0.0
        %3453 = vmatpush2.msra.mxu0 0.0
        %3454 = vmatprep.subr.mxu0 0.0
        %3455 = vmatpush2.msra.mxu0 0.0
        %3456 = vmatprep.subr.mxu0 0.0
        %3457 = vmatpush2.msra.mxu0 0.0
        %3458 = vmatprep.subr.mxu0 0.0
        %3459 = vmatpush2.msra.mxu0 0.0
        %3460 = vmatprep.mubr.f32.mxu0 0.0
        %3461 = vmatmul.mubr.f32.gmra.mxu0 %v3394
        %v3462 = vpop.f32.mrf.mxu0
        %v3463 = vadd.f32 %v3391, %v3462
        %v3464 = vpop.f32.mrf.mxu0
        %3465 = vdwg.mxu0
        %v3466 = vmul.f32 %v3463, %v3463
        %v3467 = vmul.f32 %v3463, %v3466
        %v3468 = vmul.f32 %v3467, 0.044715
        %v3469 = vadd.f32 %v3463, %v3468
        %v3470 = vmul.f32 %v3469, 0.7978846
        %v3471 = vtanh.pop %v3470
        %v3472 = vadd.f32 %v3471, 1.0
        %v3473 = vmul.f32 %v3472, 0.5
        %v3474 = vmul.f32 %v3463, %v3473
        %s3475 = scalar_lea.vmem %s13, 128
        %v3476 = vld [vmem:[%s3475] sm:$0xff]
        %v3477 = vld [vmem:[%s3475 + $0x8] sm:$0xff]
        %v3478 = vld [vmem:[%s3475 + $0x10] sm:$0xff]
        %v3479 = vld [vmem:[%s3475 + $0x18] sm:$0xff]
        %v3480 = vld [vmem:[%s3475 + $0x20] sm:$0xff]
        %v3481 = vld [vmem:[%s3475 + $0x28] sm:$0xff]
        %v3482 = vld [vmem:[%s3475 + $0x30] sm:$0xff]
        %v3483 = vld [vmem:[%s3475 + $0x38] sm:$0xff]
        %v3484 = vld [vmem:[%s3475 + $0x40] sm:$0xff]
        %v3485 = vld [vmem:[%s3475 + $0x48] sm:$0xff]
        %v3486 = vld [vmem:[%s3475 + $0x50] sm:$0xff]
        %v3487 = vld [vmem:[%s3475 + $0x58] sm:$0xff]
        %v3488 = vld [vmem:[%s3475 + $0x60] sm:$0xff]
        %v3489 = vld [vmem:[%s3475 + $0x68] sm:$0xff]
        %v3490 = vld [vmem:[%s3475 + $0x70] sm:$0xff]
        %v3491 = vld [vmem:[%s3475 + $0x78] sm:$0xff]
        %3492 = vmatprep.subr.mxu0 0.0
        %3493 = vmatpush1.msra.mxu0 %v3491
        %3494 = vmatprep.subr.mxu0 0.0
        %3495 = vmatpush1.msra.mxu0 %v3490
        %3496 = vmatprep.subr.mxu0 0.0
        %3497 = vmatpush1.msra.mxu0 %v3489
        %3498 = vmatprep.subr.mxu0 0.0
        %3499 = vmatpush1.msra.mxu0 %v3488
        %3500 = vmatprep.subr.mxu0 0.0
        %3501 = vmatpush1.msra.mxu0 %v3487
        %3502 = vmatprep.subr.mxu0 0.0
        %3503 = vmatpush1.msra.mxu0 %v3486
        %3504 = vmatprep.subr.mxu0 0.0
        %3505 = vmatpush1.msra.mxu0 %v3485
        %3506 = vmatprep.subr.mxu0 0.0
        %3507 = vmatpush1.msra.mxu0 %v3484
        %3508 = vmatprep.subr.mxu0 0.0
        %3509 = vmatpush1.msra.mxu0 %v3483
        %3510 = vmatprep.subr.mxu0 0.0
        %3511 = vmatpush1.msra.mxu0 %v3482
        %3512 = vmatprep.subr.mxu0 0.0
        %3513 = vmatpush1.msra.mxu0 %v3481
        %3514 = vmatprep.subr.mxu0 0.0
        %3515 = vmatpush1.msra.mxu0 %v3480
        %3516 = vmatprep.subr.mxu0 0.0
        %3517 = vmatpush1.msra.mxu0 %v3479
        %3518 = vmatprep.subr.mxu0 0.0
        %3519 = vmatpush1.msra.mxu0 %v3478
        %3520 = vmatprep.subr.mxu0 0.0
        %3521 = vmatpush1.msra.mxu0 %v3477
        %3522 = vmatprep.subr.mxu0 0.0
        %3523 = vmatpush1.msra.mxu0 %v3476
        %3524 = vmatprep.subr.mxu0 0.0
        %3525 = vmatpush2.msra.mxu0 0.0
        %3526 = vmatprep.subr.mxu0 0.0
        %3527 = vmatpush2.msra.mxu0 0.0
        %3528 = vmatprep.subr.mxu0 0.0
        %3529 = vmatpush2.msra.mxu0 0.0
        %3530 = vmatprep.subr.mxu0 0.0
        %3531 = vmatpush2.msra.mxu0 0.0
        %3532 = vmatprep.subr.mxu0 0.0
        %3533 = vmatpush2.msra.mxu0 0.0
        %3534 = vmatprep.subr.mxu0 0.0
        %3535 = vmatpush2.msra.mxu0 0.0
        %3536 = vmatprep.subr.mxu0 0.0
        %3537 = vmatpush2.msra.mxu0 0.0
        %3538 = vmatprep.subr.mxu0 0.0
        %3539 = vmatpush2.msra.mxu0 0.0
        %3540 = vmatprep.subr.mxu0 0.0
        %3541 = vmatpush2.msra.mxu0 0.0
        %3542 = vmatprep.subr.mxu0 0.0
        %3543 = vmatpush2.msra.mxu0 0.0
        %3544 = vmatprep.subr.mxu0 0.0
        %3545 = vmatpush2.msra.mxu0 0.0
        %3546 = vmatprep.subr.mxu0 0.0
        %3547 = vmatpush2.msra.mxu0 0.0
        %3548 = vmatprep.subr.mxu0 0.0
        %3549 = vmatpush2.msra.mxu0 0.0
        %3550 = vmatprep.subr.mxu0 0.0
        %3551 = vmatpush2.msra.mxu0 0.0
        %3552 = vmatprep.subr.mxu0 0.0
        %3553 = vmatpush2.msra.mxu0 0.0
        %3554 = vmatprep.subr.mxu0 0.0
        %3555 = vmatpush2.msra.mxu0 0.0
        %3556 = vmatprep.mubr.f32.mxu0 0.0
        %3557 = vmatmul.mubr.f32.gmra.mxu0 %v3474
        %v3558 = vpop.f32.mrf.mxu0
        %v3559 = vadd.f32 0.0, %v3558
        %v3560 = vpop.f32.mrf.mxu0
        %3561 = vdwg.mxu0
        %v3562 = vadd.f32 %v3348, %v3559
        %s3563 = scalar_lea.vmem %s14, 1
        %v3564 = vld [vmem:[%s3563] sm:$0x1]
        %v3566 = vlaneseq
        %v3567 = vshrl.u32 %v3566, 7
        %v3568 = vsub.s32 0, %v3567
        %v3569 = vrot.slane %v3564, %v3568
        %v3571 = vadd.f32 %v3562, %v3569
        %v3572 = vld [vmem:[%s15] sm:$0x1]
        %v3573 = vld [vmem:[%s16] sm:$0x1]
        %v3574 = vsel %vm951, %v3571, 0.0
        %3575 = vadd.xlane.f32.xlu0 %v3574
        %v3576 = vpop.xlane.xlu0 %3575
        %v3577 = vmul.f32 %v3576, %v955
        %v3578 = vsub.f32 %v3571, %v3577
        %v3579 = vmul.f32 %v3578, %v3578
        %v3580 = vsel %vm951, %v3579, 0.0
        %3581 = vadd.xlane.f32.xlu0 %v3580
        %v3582 = vpop.xlane.xlu0 %3581
        %v3583 = vmul.f32 %v3582, %v955
        %v3584 = vadd.f32 %v3583, 1e-06
        %v3585 = vrsqrt.pop %v3584
        %v3586 = vmul.f32 %v3578, %v3585
        %v3588 = vlaneseq
        %v3589 = vshrl.u32 %v3588, 7
        %v3590 = vsub.s32 0, %v3589
        %v3591 = vrot.slane %v3572, %v3590
        %v3593 = vmul.f32 %v3586, %v3591
        %v3595 = vlaneseq
        %v3596 = vshrl.u32 %v3595, 7
        %v3597 = vsub.s32 0, %v3596
        %v3598 = vrot.slane %v3573, %v3597
        %v3600 = vadd.f32 %v3593, %v3598
        %v3601 = vld [vmem:[%s17] sm:$0xff]
        %v3602 = vld [vmem:[%s17 + $0x8] sm:$0xff]
        %v3603 = vld [vmem:[%s17 + $0x10] sm:$0xff]
        %v3604 = vld [vmem:[%s17 + $0x18] sm:$0xff]
        %v3605 = vld [vmem:[%s18] sm:$0x1]
        %v3607 = vsel %vm991, %v3600, 0
        %3609 = vmatprep.subr.mxu0 0.0
        %3610 = vmatpush1.msra.mxu0 0.0
        %3611 = vmatprep.subr.mxu0 0.0
        %3612 = vmatpush1.msra.mxu0 0.0
        %3613 = vmatprep.subr.mxu0 0.0
        %3614 = vmatpush1.msra.mxu0 0.0
        %3615 = vmatprep.subr.mxu0 0.0
        %3616 = vmatpush1.msra.mxu0 0.0
        %3617 = vmatprep.subr.mxu0 0.0
        %3618 = vmatpush1.msra.mxu0 0.0
        %3619 = vmatprep.subr.mxu0 0.0
        %3620 = vmatpush1.msra.mxu0 0.0
        %3621 = vmatprep.subr.mxu0 0.0
        %3622 = vmatpush1.msra.mxu0 0.0
        %3623 = vmatprep.subr.mxu0 0.0
        %3624 = vmatpush1.msra.mxu0 0.0
        %3625 = vmatprep.subr.mxu0 0.0
        %3626 = vmatpush1.msra.mxu0 0.0
        %3627 = vmatprep.subr.mxu0 0.0
        %3628 = vmatpush1.msra.mxu0 0.0
        %3629 = vmatprep.subr.mxu0 0.0
        %3630 = vmatpush1.msra.mxu0 0.0
        %3631 = vmatprep.subr.mxu0 0.0
        %3632 = vmatpush1.msra.mxu0 0.0
        %3633 = vmatprep.subr.mxu0 0.0
        %3634 = vmatpush1.msra.mxu0 %v3604
        %3635 = vmatprep.subr.mxu0 0.0
        %3636 = vmatpush1.msra.mxu0 %v3603
        %3637 = vmatprep.subr.mxu0 0.0
        %3638 = vmatpush1.msra.mxu0 %v3602
        %3639 = vmatprep.subr.mxu0 0.0
        %3640 = vmatpush1.msra.mxu0 %v3601
        %3641 = vmatprep.subr.mxu0 0.0
        %3642 = vmatpush2.msra.mxu0 0.0
        %3643 = vmatprep.subr.mxu0 0.0
        %3644 = vmatpush2.msra.mxu0 0.0
        %3645 = vmatprep.subr.mxu0 0.0
        %3646 = vmatpush2.msra.mxu0 0.0
        %3647 = vmatprep.subr.mxu0 0.0
        %3648 = vmatpush2.msra.mxu0 0.0
        %3649 = vmatprep.subr.mxu0 0.0
        %3650 = vmatpush2.msra.mxu0 0.0
        %3651 = vmatprep.subr.mxu0 0.0
        %3652 = vmatpush2.msra.mxu0 0.0
        %3653 = vmatprep.subr.mxu0 0.0
        %3654 = vmatpush2.msra.mxu0 0.0
        %3655 = vmatprep.subr.mxu0 0.0
        %3656 = vmatpush2.msra.mxu0 0.0
        %3657 = vmatprep.subr.mxu0 0.0
        %3658 = vmatpush2.msra.mxu0 0.0
        %3659 = vmatprep.subr.mxu0 0.0
        %3660 = vmatpush2.msra.mxu0 0.0
        %3661 = vmatprep.subr.mxu0 0.0
        %3662 = vmatpush2.msra.mxu0 0.0
        %3663 = vmatprep.subr.mxu0 0.0
        %3664 = vmatpush2.msra.mxu0 0.0
        %3665 = vmatprep.subr.mxu0 0.0
        %3666 = vmatpush2.msra.mxu0 0.0
        %3667 = vmatprep.subr.mxu0 0.0
        %3668 = vmatpush2.msra.mxu0 0.0
        %3669 = vmatprep.subr.mxu0 0.0
        %3670 = vmatpush2.msra.mxu0 0.0
        %3671 = vmatprep.subr.mxu0 0.0
        %3672 = vmatpush2.msra.mxu0 0.0
        %3673 = vmatprep.mubr.f32.mxu0 0.0
        %3674 = vmatmul.mubr.f32.gmra.mxu0 %v3607
        %v3675 = vpop.f32.mrf.mxu0
        %v3676 = vadd.f32 %v3605, %v3675
        %v3677 = vpop.f32.mrf.mxu0
        %3678 = vdwg.mxu0
        %vm3679 = vcmask 57344
        %3680 = vst.msk [vmem:[%s622] sm:$0x1] %vm3679, %v3676
        %v3681 = vxor.u32 %v3676, 2147483648
        %v3682 = vmul.f32 %v3681, 1.442695
        %v3683 = vpow.pop %v3682
        %v3684 = vadd.f32 %v3683, 1.0
        %v3685 = vrcp.pop %v3684
        %v3686 = vmul.f32 1.0, %v3685
        %3688 = vrot.lane.b32.xlu0 %v3686, 120
        %v3689 = vpop.permute.xlu0 %3688
        %vm3691 = vcmask 0
        %3692 = vst.msk [vmem:[%s635] sm:$0x1] %vm3691, %v3689
        %s3693 = sand.u32 %s447, 1
        %s3694 = scalar_lea.sflag [#allocation3], %s3693
        %s3695 = sand.u32 %s447, 1
        %s3696 = scalar_lea.vmem [#allocation2], %s3695
        %p3697 = scmp.lt.s32.totalorder %s35, 1
        %s3698 = scalar_select %p3697, %s35, 1
        %s3699 = scalar_lea.vmem %s20, %s3698
        // Predicated region
        $region97: #{forward.1} parent=95 // pred_check
          %p3700 = pneg %p457
        $region98: #{forward.1} parent=95 // pred_check_branch
          %3702 = sbr.rel (%p3700) target = $region100
        $region99: #{forward.1} parent=95 // pred_region
          %s3704 = ssub.s32 16, 16
          %3705 = vsyncadd %s3694, %s3704
          %s3706 = smul.addr %s35, 16
          %s3707 = scalar_lea.hbm %s19, %s3706
          %s3709 = sshll.u32 %s3696, 4
          %s3710 = int_to_ptr.vmem [resolvable:$true] %s3709
          %3712 = dma.vmem_to_hbm [thread:$0]  %s3710, 16, %s3707, %s3694
        $region100: #{forward.1} parent=95 // pred_fallthru
          _
        // Predicated region
        $region101: #{forward.1} parent=95 // pred_check
          %p3713 = pneg %p483
        $region102: #{forward.1} parent=95 // pred_check_branch
          %3715 = sbr.rel (%p3713) target = $region104
        $region103: #{forward.1} parent=95 // pred_region
          _
        $region104: #{forward.1} parent=95 // pred_fallthru
          _
      $region96: #{forward.1} parent=5 // pred_fallthru
        _
      %p3716 = scmp.le.s32.totalorder 2, %s30
      // Predicated region
      $region105: #{forward.1} parent=5 // pred_check
        %p3717 = pneg %p3716
      $region106: #{forward.1} parent=5 // pred_check_branch
        %3719 = sbr.rel (%p3717) target = $region108
      $region107: #{forward.1} parent=5 // pred_region
        %s3720 = ssub.s32 %s30, 2
        // Predicated region
        $region109: #{forward.1} parent=107 // pred_check
          %p3721 = pneg %p463
        $region110: #{forward.1} parent=107 // pred_check_branch
          %3723 = sbr.rel (%p3721) target = $region112
        $region111: #{forward.1} parent=107 // pred_region
          %s3724 = sand.u32 %s448, 1
          %s3725 = scalar_lea.sflag [#allocation3], %s3724
          %s3726 = sand.u32 %s448, 1
          %s3727 = scalar_lea.vmem [#allocation2], %s3726
          %3728 = dma.done %s3725, 16
        $region112: #{forward.1} parent=107 // pred_fallthru
          _
        // Predicated region
        $region113: #{forward.1} parent=107 // pred_check
          %p3729 = pneg %p489
        $region114: #{forward.1} parent=107 // pred_check_branch
          %3731 = sbr.rel (%p3729) target = $region116
        $region115: #{forward.1} parent=107 // pred_region
          %p3732 = scmp.lt.s32.totalorder %s36, 1
          %s3733 = scalar_select %p3732, %s36, 1
          %s3734 = scalar_lea.vmem %s20, %s3733
        $region116: #{forward.1} parent=107 // pred_fallthru
          _
      $region108: #{forward.1} parent=5 // pred_fallthru
        _
    $region6: #{forward.1} parent=1 // loop_footer
      %s34 = sadd.s32 1, %s30
    $region7: #{forward.1} parent=1 // loop_footer_branch
      %29 = sbr.rel target = $region3
    $region8: #{forward.1} parent=1 // loop_exit
      _
    %3735 = vsyncpa [#allocation3], 1
    %s3736 = scalar_lea.sflag [#allocation3], 1
    %3737 = vsyncpa %s3736, 1

</llo_original>
